<compile_context>
chip_gen: v5e
topology: v5e:2x2
jax: 0.10.0
libtpu: 0.0.40
codegen_flags: <defaults>
</compile_context>

<pallas_src>
import jax
import jax.numpy as jnp
from jax import lax
from jax.experimental import pallas as pl
from jax.experimental.pallas import tpu as pltpu


_MM_DTYPE = jnp.bfloat16          # MXU input dtype (accumulation stays f32)
_LANE = 128
_SUBLANE = 8
_VMEM_TILE_BUDGET = 24 * 1024 * 1024   # double-buffered tile budget
_VMEM_LIMIT = 48 * 1024 * 1024         # explicit scoped-VMEM limit (< v7x 64 MiB)


# ------------------------- Pallas kernels -------------------------

def _convmm_kernel(a_ref, b_ref, o_ref):
    o_ref[...] = jnp.dot(a_ref[...], b_ref[...],
                         preferred_element_type=jnp.float32)


def _convmm_tanh_kernel(a_ref, b_ref, o_ref):
    acc = jnp.dot(a_ref[...], b_ref[...], preferred_element_type=jnp.float32)
    o_ref[...] = jnp.tanh(acc)


def _bn_relu_kernel(x_ref, g_ref, b_ref, o_ref):
    # x: (tc, M) channel-major; batch statistics over M (= N*H*W), matching
    # nn.BatchNorm2d training-mode normalization (biased variance, eps=1e-5).
    x = x_ref[...]
    mean = jnp.mean(x, axis=1, keepdims=True)
    var = jnp.mean(jnp.square(x - mean), axis=1, keepdims=True)
    xhat = (x - mean) * lax.rsqrt(var + 1e-5)
    o_ref[...] = jnp.maximum(g_ref[...] * xhat + b_ref[...], 0.0)


# ------------------------- Pallas wrappers -------------------------

def _round_up(x, m):
    return (x + m - 1) // m * m


def _pick_tn(m_pad, k, cout_pad, elem_bytes):
    """Largest lane tile (multiple of 128, divisor of m_pad, <= 2048) that
    keeps double-buffered A/B/O tiles under the VMEM budget."""
    cap = min(m_pad, 2048)
    for cand in range(cap, _LANE - 1, -_LANE):
        if m_pad % cand != 0:
            continue
        need = 2 * (cout_pad * k * elem_bytes
                    + k * cand * elem_bytes
                    + cout_pad * cand * 4)
        if need <= _VMEM_TILE_BUDGET:
            return cand
    return _LANE


def pallas_conv_matmul(a, b, fuse_tanh=False):
    """(Cout, K) @ (K, M) -> (Cout, M) f32, tiled along M (lane-dense)."""
    cout, k = a.shape
    k2, m = b.shape
    assert k == k2
    cout_pad = _round_up(cout, _SUBLANE)
    m_pad = _round_up(m, _LANE)
    if cout_pad != cout:
        a = jnp.pad(a, ((0, cout_pad - cout), (0, 0)))
    if m_pad != m:
        b = jnp.pad(b, ((0, 0), (0, m_pad - m)))
    elem = jnp.dtype(a.dtype).itemsize
    tn = _pick_tn(m_pad, k, cout_pad, elem)
    kernel = _convmm_tanh_kernel if fuse_tanh else _convmm_kernel
    out = pl.pallas_call(
        kernel,
        out_shape=jax.ShapeDtypeStruct((cout_pad, m_pad), jnp.float32),
        grid=(m_pad // tn,),
        in_specs=[pl.BlockSpec((cout_pad, k), lambda i: (0, 0)),
                  pl.BlockSpec((k, tn), lambda i: (0, i))],
        out_specs=pl.BlockSpec((cout_pad, tn), lambda i: (0, i)),
        compiler_params=pltpu.CompilerParams(
            dimension_semantics=("parallel",),
            vmem_limit_bytes=_VMEM_LIMIT),
    )(a, b)
    if cout_pad != cout or m_pad != m:
        out = out[:cout, :m]
    return out


def pallas_bn_relu(x_cm, gamma, beta):
    """BatchNorm2d (batch stats) + ReLU on a channel-major (C, M) slab."""
    c, m = x_cm.shape
    tc = 8 if c % 8 == 0 else c
    return pl.pallas_call(
        _bn_relu_kernel,
        out_shape=jax.ShapeDtypeStruct((c, m), jnp.float32),
        grid=(c // tc,),
        in_specs=[pl.BlockSpec((tc, m), lambda i: (i, 0)),
                  pl.BlockSpec((tc, 1), lambda i: (i, 0)),
                  pl.BlockSpec((tc, 1), lambda i: (i, 0))],
        out_specs=pl.BlockSpec((tc, m), lambda i: (i, 0)),
        compiler_params=pltpu.CompilerParams(
            dimension_semantics=("parallel",)),
    )(x_cm,
      gamma.reshape(c, 1).astype(jnp.float32),
      beta.reshape(c, 1).astype(jnp.float32))


# ------------------------- ConvTranspose2d (channel-major) -------------------

def conv_transpose2d_cm(x_cm, w, stride, padding, fuse_tanh=False):
    """x_cm: (Cin, N, H, W); w: (Cin, Cout, K, K) (PyTorch layout), bias-free.

    Returns (y_cm, (Cout, N, OH, OW)) with y_cm = (Cout, N*OH*OW), f32.
    """
    cin, n, h, wd = x_cm.shape
    _, cout, kk, _ = w.shape
    edge = kk - 1 - padding
    x_lo = x_cm.astype(_MM_DTYPE)
    # zero-insert (stride-1) between pixels, then edge-pad by K-1-padding
    xp = lax.pad(x_lo, jnp.asarray(0, dtype=x_lo.dtype),
                 [(0, 0, 0), (0, 0, 0),
                  (edge, edge, stride - 1), (edge, edge, stride - 1)])
    hp, wp = xp.shape[2], xp.shape[3]
    oh, ow = hp - kk + 1, wp - kk + 1
    # channel-major im2col: (Cin*K*K, N*OH*OW); ordering cin-major then (kh,kw)
    # TODO(synk): fuse this im2col into the matmul grid (KH*KW "arbitrary"
    # axis + f32 accumulator scratch) to avoid materializing patches in HBM.
    cols = [xp[:, :, ih:ih + oh, iw:iw + ow]
            for ih in range(kk) for iw in range(kk)]
    col = jnp.stack(cols, axis=1)                        # (Cin, K*K, N, OH, OW)
    patches_t = col.reshape(cin * kk * kk, n * oh * ow)
    # spatially flipped kernel arranged to (Cout, Cin*K*K) -- matches patches_t
    a = (w[:, :, ::-1, ::-1].transpose(1, 0, 2, 3)
         .reshape(cout, cin * kk * kk).astype(_MM_DTYPE))
    y_cm = pallas_conv_matmul(a, patches_t, fuse_tanh=fuse_tanh)
    return y_cm, (cout, n, oh, ow)


# ------------------------- Generator forward -------------------------

def generator_forward(x, params):
    (w1, g1, b1), (w2, g2, b2), (w3, g3, b3), (w4, g4, b4), w5 = params
    # NCHW -> channel-major once, at the very beginning (tiny tensor).
    x_cm = x.transpose(1, 0, 2, 3)                       # (nz, N, 1, 1)

    def block(x_cm, w, g, b, stride, pad):
        y_cm, (cout, n, oh, ow) = conv_transpose2d_cm(x_cm, w, stride, pad)
        y_cm = pallas_bn_relu(y_cm, g, b)                # stays (C, M)
        return y_cm.reshape(cout, n, oh, ow)             # channel-major 4D

    x_cm = block(x_cm, w1, g1, b1, stride=1, pad=0)      # (8*ngf, N, 4, 4)
    x_cm = block(x_cm, w2, g2, b2, stride=2, pad=1)      # (4*ngf, N, 8, 8)
    x_cm = block(x_cm, w3, g3, b3, stride=2, pad=1)      # (2*ngf, N, 16, 16)
    x_cm = block(x_cm, w4, g4, b4, stride=2, pad=1)      # (ngf,  N, 32, 32)
    y_cm, (cout, n, oh, ow) = conv_transpose2d_cm(
        x_cm, w5, stride=2, padding=1, fuse_tanh=True)   # (nc, N*64*64), tanh'd
    # single transpose back to NCHW at the very end
    return y_cm.reshape(cout, n, oh, ow).transpose(1, 0, 2, 3)


# ------------------------- Parameter init -------------------------

def init_params(key, nz, ngf, nc):
    dims = [(nz, ngf * 8), (ngf * 8, ngf * 4), (ngf * 4, ngf * 2),
            (ngf * 2, ngf), (ngf, nc)]
    params = []
    keys = jax.random.split(key, 16)
    ki = 0
    for li, (cin, cout) in enumerate(dims):
        w = 0.02 * jax.random.normal(keys[ki], (cin, cout, 4, 4), jnp.float32)
        ki += 1
        if li < 4:  # layers with BatchNorm + ReLU
            g = 1.0 + 0.02 * jax.random.normal(keys[ki], (cout,), jnp.float32)
            ki += 1
            b = 0.02 * jax.random.normal(keys[ki], (cout,), jnp.float32)
            ki += 1
            params.append((w, g, b))
        else:
            params.append(w)
    return tuple(params)


if __name__ == "__main__":
    # Small shapes consistent with the module's forward: input is (N, nz, 1, 1)
    batch, nz, ngf, nc = 2, 16, 8, 3
    key = jax.random.PRNGKey(0)
    kx, kp = jax.random.split(key)
    z = jax.random.normal(kx, (batch, nz, 1, 1), jnp.float32)
    params = init_params(kp, nz, ngf, nc)

    fwd = jax.jit(generator_forward)
    out = fwd(z, params)
    out = jax.block_until_ready(out)

    assert out.shape == (batch, nc, 64, 64), out.shape
    assert out.dtype == jnp.float32
    assert bool(jnp.all(jnp.isfinite(out)))
    assert bool(jnp.all(jnp.abs(out) <= 1.0))  # tanh output range
    print("KERNEL_OK")
</pallas_src>

<mosaic_0001>
module attributes {stable_mosaic.version = 11 : i64} {
  func.func @_convmm_kernel(%arg0: i32, %arg1: memref<64x256xbf16, #tpu.memory_space<vmem>>, %arg2: memref<256x128xbf16, #tpu.memory_space<vmem>>, %arg3: memref<64x128xf32, #tpu.memory_space<vmem>>) attributes {dimension_semantics = [#tpu.dimension_semantics<parallel>], iteration_bounds = array<i64: 1>, scalar_prefetch = 0 : i64, scratch_operands = 0 : i64, tpu.core_type = #tpu.core_type<tc>, window_params = [{pipeline_mode = #tpu.pipeline_mode<synchronous>, transform_indices = @transform_0, window_bounds = array<i64: 64, 256>}, {transform_indices = @transform_1, window_bounds = array<i64: 256, 128>}, {transform_indices = @transform_2, window_bounds = array<i64: 64, 128>}]} {
    %c0 = arith.constant 0 : index
    %c0_0 = arith.constant 0 : index
    %0 = vector.load %arg1[%c0, %c0_0] : memref<64x256xbf16, #tpu.memory_space<vmem>>, vector<64x256xbf16>
    %c0_1 = arith.constant 0 : index
    %c0_2 = arith.constant 0 : index
    %1 = vector.load %arg2[%c0_1, %c0_2] : memref<256x128xbf16, #tpu.memory_space<vmem>>, vector<256x128xbf16>
    %cst = arith.constant dense<0.000000e+00> : vector<64x128xf32>
    %2 = tpu.matmul %0, %1, %cst {dimension_numbers = #tpu.dot_dimension_numbers<[1], [0], [0], [1], [0, 0, 1, 1], [], []>} : vector<64x256xbf16>, vector<256x128xbf16>, vector<64x128xf32> -> vector<64x128xf32>
    %c0_3 = arith.constant 0 : index
    %c0_4 = arith.constant 0 : index
    %3 = vector.load %arg3[%c0_3, %c0_4] : memref<64x128xf32, #tpu.memory_space<vmem>>, vector<64x128xf32>
    tpu.vector_store %arg3[%c0_3, %c0_4], %2 {strides = array<i32>} : memref<64x128xf32, #tpu.memory_space<vmem>>, vector<64x128xf32>,
    return
  }
  func.func @transform_0(%arg0: i32) -> (i32, i32) {
    %c0_i32 = arith.constant 0 : i32
    %c0_i32_0 = arith.constant 0 : i32
    %c0_i32_1 = arith.constant 0 : i32
    return %c0_i32, %c0_i32_0 : i32, i32
  }
  func.func @transform_1(%arg0: i32) -> (i32, i32) {
    %c0_i32 = arith.constant 0 : i32
    %c0_i32_0 = arith.constant 0 : i32
    return %c0_i32, %arg0 : i32, i32
  }
  func.func @transform_2(%arg0: i32) -> (i32, i32) {
    %c0_i32 = arith.constant 0 : i32
    %c0_i32_0 = arith.constant 0 : i32
    return %c0_i32, %arg0 : i32, i32
  }
}

module attributes {stable_mosaic.version = 11 : i64} {
  func.func @_bn_relu_kernel(%arg0: i32, %arg1: memref<8x32xf32, #tpu.memory_space<vmem>>, %arg2: memref<8x1xf32, #tpu.memory_space<vmem>>, %arg3: memref<8x1xf32, #tpu.memory_space<vmem>>, %arg4: memref<8x32xf32, #tpu.memory_space<vmem>>) attributes {dimension_semantics = [#tpu.dimension_semantics<parallel>], iteration_bounds = array<i64: 8>, scalar_prefetch = 0 : i64, scratch_operands = 0 : i64, tpu.core_type = #tpu.core_type<tc>, window_params = [{transform_indices = @transform_0, window_bounds = array<i64: 8, 32>}, {transform_indices = @transform_1, window_bounds = array<i64: 8, 1>}, {transform_indices = @transform_2, window_bounds = array<i64: 8, 1>}, {transform_indices = @transform_3, window_bounds = array<i64: 8, 32>}]} {
    %c0 = arith.constant 0 : index
    %c0_0 = arith.constant 0 : index
    %0 = vector.load %arg1[%c0, %c0_0] : memref<8x32xf32, #tpu.memory_space<vmem>>, vector<8x32xf32>
    %cst = arith.constant dense<0.000000e+00> : vector<8xf32>
    %1 = vector.multi_reduction <add>, %0, %cst [1] : vector<8x32xf32> to vector<8xf32>
    %2 = vector.shape_cast %1 : vector<8xf32> to vector<8x1xf32>
    %cst_1 = arith.constant 3.200000e+01 : f32
    %3 = vector.broadcast %cst_1 : f32 to vector<8x1xf32>
    %4 = arith.divf %2, %3 : vector<8x1xf32>
    %5 = vector.broadcast %4 : vector<8x1xf32> to vector<8x32xf32>
    %6 = arith.subf %0, %5 : vector<8x32xf32>
    %7 = arith.mulf %6, %6 : vector<8x32xf32>
    %cst_2 = arith.constant dense<0.000000e+00> : vector<8xf32>
    %8 = vector.multi_reduction <add>, %7, %cst_2 [1] : vector<8x32xf32> to vector<8xf32>
    %9 = vector.shape_cast %8 : vector<8xf32> to vector<8x1xf32>
    %cst_3 = arith.constant 3.200000e+01 : f32
    %10 = vector.broadcast %cst_3 : f32 to vector<8x1xf32>
    %11 = arith.divf %9, %10 : vector<8x1xf32>
    %12 = vector.broadcast %4 : vector<8x1xf32> to vector<8x32xf32>
    %13 = arith.subf %0, %12 : vector<8x32xf32>
    %cst_4 = arith.constant 9.99999974E-6 : f32
    %14 = vector.broadcast %cst_4 : f32 to vector<8x1xf32>
    %15 = arith.addf %11, %14 : vector<8x1xf32>
    %16 = math.rsqrt %15 : vector<8x1xf32>
    %17 = vector.broadcast %16 : vector<8x1xf32> to vector<8x32xf32>
    %18 = arith.mulf %13, %17 : vector<8x32xf32>
    %c0_5 = arith.constant 0 : index
    %c0_6 = arith.constant 0 : index
    %19 = vector.load %arg2[%c0_5, %c0_6] : memref<8x1xf32, #tpu.memory_space<vmem>>, vector<8x1xf32>
    %20 = vector.broadcast %19 : vector<8x1xf32> to vector<8x32xf32>
    %21 = arith.mulf %20, %18 : vector<8x32xf32>
    %c0_7 = arith.constant 0 : index
    %c0_8 = arith.constant 0 : index
    %22 = vector.load %arg3[%c0_7, %c0_8] : memref<8x1xf32, #tpu.memory_space<vmem>>, vector<8x1xf32>
    %23 = vector.broadcast %22 : vector<8x1xf32> to vector<8x32xf32>
    %24 = arith.addf %21, %23 : vector<8x32xf32>
    %cst_9 = arith.constant 0.000000e+00 : f32
    %25 = vector.broadcast %cst_9 : f32 to vector<8x32xf32>
    %26 = arith.maximumf %24, %25 : vector<8x32xf32>
    %c0_10 = arith.constant 0 : index
    %c0_11 = arith.constant 0 : index
    %27 = vector.load %arg4[%c0_10, %c0_11] : memref<8x32xf32, #tpu.memory_space<vmem>>, vector<8x32xf32>
    tpu.vector_store %arg4[%c0_10, %c0_11], %26 {strides = array<i32>} : memref<8x32xf32, #tpu.memory_space<vmem>>, vector<8x32xf32>,
    return
  }
  func.func @transform_0(%arg0: i32) -> (i32, i32) {
    %c0_i32 = arith.constant 0 : i32
    %c0_i32_0 = arith.constant 0 : i32
    return %arg0, %c0_i32 : i32, i32
  }
  func.func @transform_1(%arg0: i32) -> (i32, i32) {
    %c0_i32 = arith.constant 0 : i32
    %c0_i32_0 = arith.constant 0 : i32
    return %arg0, %c0_i32 : i32, i32
  }
  func.func @transform_2(%arg0: i32) -> (i32, i32) {
    %c0_i32 = arith.constant 0 : i32
    %c0_i32_0 = arith.constant 0 : i32
    return %arg0, %c0_i32 : i32, i32
  }
  func.func @transform_3(%arg0: i32) -> (i32, i32) {
    %c0_i32 = arith.constant 0 : i32
    %c0_i32_0 = arith.constant 0 : i32
    return %arg0, %c0_i32 : i32, i32
  }
}

module attributes {stable_mosaic.version = 11 : i64} {
  func.func @_convmm_kernel(%arg0: i32, %arg1: memref<32x1024xbf16, #tpu.memory_space<vmem>>, %arg2: memref<1024x128xbf16, #tpu.memory_space<vmem>>, %arg3: memref<32x128xf32, #tpu.memory_space<vmem>>) attributes {dimension_semantics = [#tpu.dimension_semantics<parallel>], iteration_bounds = array<i64: 1>, scalar_prefetch = 0 : i64, scratch_operands = 0 : i64, tpu.core_type = #tpu.core_type<tc>, window_params = [{pipeline_mode = #tpu.pipeline_mode<synchronous>, transform_indices = @transform_0, window_bounds = array<i64: 32, 1024>}, {transform_indices = @transform_1, window_bounds = array<i64: 1024, 128>}, {transform_indices = @transform_2, window_bounds = array<i64: 32, 128>}]} {
    %c0 = arith.constant 0 : index
    %c0_0 = arith.constant 0 : index
    %0 = vector.load %arg1[%c0, %c0_0] : memref<32x1024xbf16, #tpu.memory_space<vmem>>, vector<32x1024xbf16>
    %c0_1 = arith.constant 0 : index
    %c0_2 = arith.constant 0 : index
    %1 = vector.load %arg2[%c0_1, %c0_2] : memref<1024x128xbf16, #tpu.memory_space<vmem>>, vector<1024x128xbf16>
    %cst = arith.constant dense<0.000000e+00> : vector<32x128xf32>
    %2 = tpu.matmul %0, %1, %cst {dimension_numbers = #tpu.dot_dimension_numbers<[1], [0], [0], [1], [0, 0, 1, 1], [], []>} : vector<32x1024xbf16>, vector<1024x128xbf16>, vector<32x128xf32> -> vector<32x128xf32>
    %c0_3 = arith.constant 0 : index
    %c0_4 = arith.constant 0 : index
    %3 = vector.load %arg3[%c0_3, %c0_4] : memref<32x128xf32, #tpu.memory_space<vmem>>, vector<32x128xf32>
    tpu.vector_store %arg3[%c0_3, %c0_4], %2 {strides = array<i32>} : memref<32x128xf32, #tpu.memory_space<vmem>>, vector<32x128xf32>,
    return
  }
  func.func @transform_0(%arg0: i32) -> (i32, i32) {
    %c0_i32 = arith.constant 0 : i32
    %c0_i32_0 = arith.constant 0 : i32
    %c0_i32_1 = arith.constant 0 : i32
    return %c0_i32, %c0_i32_0 : i32, i32
  }
  func.func @transform_1(%arg0: i32) -> (i32, i32) {
    %c0_i32 = arith.constant 0 : i32
    %c0_i32_0 = arith.constant 0 : i32
    return %c0_i32, %arg0 : i32, i32
  }
  func.func @transform_2(%arg0: i32) -> (i32, i32) {
    %c0_i32 = arith.constant 0 : i32
    %c0_i32_0 = arith.constant 0 : i32
    return %c0_i32, %arg0 : i32, i32
  }
}

module attributes {stable_mosaic.version = 11 : i64} {
  func.func @_bn_relu_kernel(%arg0: i32, %arg1: memref<8x128xf32, #tpu.memory_space<vmem>>, %arg2: memref<8x1xf32, #tpu.memory_space<vmem>>, %arg3: memref<8x1xf32, #tpu.memory_space<vmem>>, %arg4: memref<8x128xf32, #tpu.memory_space<vmem>>) attributes {dimension_semantics = [#tpu.dimension_semantics<parallel>], iteration_bounds = array<i64: 4>, scalar_prefetch = 0 : i64, scratch_operands = 0 : i64, tpu.core_type = #tpu.core_type<tc>, window_params = [{transform_indices = @transform_0, window_bounds = array<i64: 8, 128>}, {transform_indices = @transform_1, window_bounds = array<i64: 8, 1>}, {transform_indices = @transform_2, window_bounds = array<i64: 8, 1>}, {transform_indices = @transform_3, window_bounds = array<i64: 8, 128>}]} {
    %c0 = arith.constant 0 : index
    %c0_0 = arith.constant 0 : index
    %0 = vector.load %arg1[%c0, %c0_0] : memref<8x128xf32, #tpu.memory_space<vmem>>, vector<8x128xf32>
    %cst = arith.constant dense<0.000000e+00> : vector<8xf32>
    %1 = vector.multi_reduction <add>, %0, %cst [1] : vector<8x128xf32> to vector<8xf32>
    %2 = vector.shape_cast %1 : vector<8xf32> to vector<8x1xf32>
    %cst_1 = arith.constant 1.280000e+02 : f32
    %3 = vector.broadcast %cst_1 : f32 to vector<8x1xf32>
    %4 = arith.divf %2, %3 : vector<8x1xf32>
    %5 = vector.broadcast %4 : vector<8x1xf32> to vector<8x128xf32>
    %6 = arith.subf %0, %5 : vector<8x128xf32>
    %7 = arith.mulf %6, %6 : vector<8x128xf32>
    %cst_2 = arith.constant dense<0.000000e+00> : vector<8xf32>
    %8 = vector.multi_reduction <add>, %7, %cst_2 [1] : vector<8x128xf32> to vector<8xf32>
    %9 = vector.shape_cast %8 : vector<8xf32> to vector<8x1xf32>
    %cst_3 = arith.constant 1.280000e+02 : f32
    %10 = vector.broadcast %cst_3 : f32 to vector<8x1xf32>
    %11 = arith.divf %9, %10 : vector<8x1xf32>
    %12 = vector.broadcast %4 : vector<8x1xf32> to vector<8x128xf32>
    %13 = arith.subf %0, %12 : vector<8x128xf32>
    %cst_4 = arith.constant 9.99999974E-6 : f32
    %14 = vector.broadcast %cst_4 : f32 to vector<8x1xf32>
    %15 = arith.addf %11, %14 : vector<8x1xf32>
    %16 = math.rsqrt %15 : vector<8x1xf32>
    %17 = vector.broadcast %16 : vector<8x1xf32> to vector<8x128xf32>
    %18 = arith.mulf %13, %17 : vector<8x128xf32>
    %c0_5 = arith.constant 0 : index
    %c0_6 = arith.constant 0 : index
    %19 = vector.load %arg2[%c0_5, %c0_6] : memref<8x1xf32, #tpu.memory_space<vmem>>, vector<8x1xf32>
    %20 = vector.broadcast %19 : vector<8x1xf32> to vector<8x128xf32>
    %21 = arith.mulf %20, %18 : vector<8x128xf32>
    %c0_7 = arith.constant 0 : index
    %c0_8 = arith.constant 0 : index
    %22 = vector.load %arg3[%c0_7, %c0_8] : memref<8x1xf32, #tpu.memory_space<vmem>>, vector<8x1xf32>
    %23 = vector.broadcast %22 : vector<8x1xf32> to vector<8x128xf32>
    %24 = arith.addf %21, %23 : vector<8x128xf32>
    %cst_9 = arith.constant 0.000000e+00 : f32
    %25 = vector.broadcast %cst_9 : f32 to vector<8x128xf32>
    %26 = arith.maximumf %24, %25 : vector<8x128xf32>
    %c0_10 = arith.constant 0 : index
    %c0_11 = arith.constant 0 : index
    %27 = vector.load %arg4[%c0_10, %c0_11] : memref<8x128xf32, #tpu.memory_space<vmem>>, vector<8x128xf32>
    tpu.vector_store %arg4[%c0_10, %c0_11], %26 {strides = array<i32>} : memref<8x128xf32, #tpu.memory_space<vmem>>, vector<8x128xf32>,
    return
  }
  func.func @transform_0(%arg0: i32) -> (i32, i32) {
    %c0_i32 = arith.constant 0 : i32
    %c0_i32_0 = arith.constant 0 : i32
    return %arg0, %c0_i32 : i32, i32
  }
  func.func @transform_1(%arg0: i32) -> (i32, i32) {
    %c0_i32 = arith.constant 0 : i32
    %c0_i32_0 = arith.constant 0 : i32
    return %arg0, %c0_i32 : i32, i32
  }
  func.func @transform_2(%arg0: i32) -> (i32, i32) {
    %c0_i32 = arith.constant 0 : i32
    %c0_i32_0 = arith.constant 0 : i32
    return %arg0, %c0_i32 : i32, i32
  }
  func.func @transform_3(%arg0: i32) -> (i32, i32) {
    %c0_i32 = arith.constant 0 : i32
    %c0_i32_0 = arith.constant 0 : i32
    return %arg0, %c0_i32 : i32, i32
  }
}

module attributes {stable_mosaic.version = 11 : i64} {
  func.func @_convmm_kernel(%arg0: i32, %arg1: memref<16x512xbf16, #tpu.memory_space<vmem>>, %arg2: memref<512x512xbf16, #tpu.memory_space<vmem>>, %arg3: memref<16x512xf32, #tpu.memory_space<vmem>>) attributes {dimension_semantics = [#tpu.dimension_semantics<parallel>], iteration_bounds = array<i64: 1>, scalar_prefetch = 0 : i64, scratch_operands = 0 : i64, tpu.core_type = #tpu.core_type<tc>, window_params = [{pipeline_mode = #tpu.pipeline_mode<synchronous>, transform_indices = @transform_0, window_bounds = array<i64: 16, 512>}, {transform_indices = @transform_1, window_bounds = array<i64: 512, 512>}, {transform_indices = @transform_2, window_bounds = array<i64: 16, 512>}]} {
    %c0 = arith.constant 0 : index
    %c0_0 = arith.constant 0 : index
    %0 = vector.load %arg1[%c0, %c0_0] : memref<16x512xbf16, #tpu.memory_space<vmem>>, vector<16x512xbf16>
    %c0_1 = arith.constant 0 : index
    %c0_2 = arith.constant 0 : index
    %1 = vector.load %arg2[%c0_1, %c0_2] : memref<512x512xbf16, #tpu.memory_space<vmem>>, vector<512x512xbf16>
    %cst = arith.constant dense<0.000000e+00> : vector<16x512xf32>
    %2 = tpu.matmul %0, %1, %cst {dimension_numbers = #tpu.dot_dimension_numbers<[1], [0], [0], [1], [0, 0, 1, 1], [], []>} : vector<16x512xbf16>, vector<512x512xbf16>, vector<16x512xf32> -> vector<16x512xf32>
    %c0_3 = arith.constant 0 : index
    %c0_4 = arith.constant 0 : index
    %3 = vector.load %arg3[%c0_3, %c0_4] : memref<16x512xf32, #tpu.memory_space<vmem>>, vector<16x512xf32>
    tpu.vector_store %arg3[%c0_3, %c0_4], %2 {strides = array<i32>} : memref<16x512xf32, #tpu.memory_space<vmem>>, vector<16x512xf32>,
    return
  }
  func.func @transform_0(%arg0: i32) -> (i32, i32) {
    %c0_i32 = arith.constant 0 : i32
    %c0_i32_0 = arith.constant 0 : i32
    %c0_i32_1 = arith.constant 0 : i32
    return %c0_i32, %c0_i32_0 : i32, i32
  }
  func.func @transform_1(%arg0: i32) -> (i32, i32) {
    %c0_i32 = arith.constant 0 : i32
    %c0_i32_0 = arith.constant 0 : i32
    return %c0_i32, %arg0 : i32, i32
  }
  func.func @transform_2(%arg0: i32) -> (i32, i32) {
    %c0_i32 = arith.constant 0 : i32
    %c0_i32_0 = arith.constant 0 : i32
    return %c0_i32, %arg0 : i32, i32
  }
}

module attributes {stable_mosaic.version = 11 : i64} {
  func.func @_bn_relu_kernel(%arg0: i32, %arg1: memref<8x512xf32, #tpu.memory_space<vmem>>, %arg2: memref<8x1xf32, #tpu.memory_space<vmem>>, %arg3: memref<8x1xf32, #tpu.memory_space<vmem>>, %arg4: memref<8x512xf32, #tpu.memory_space<vmem>>) attributes {dimension_semantics = [#tpu.dimension_semantics<parallel>], iteration_bounds = array<i64: 2>, scalar_prefetch = 0 : i64, scratch_operands = 0 : i64, tpu.core_type = #tpu.core_type<tc>, window_params = [{transform_indices = @transform_0, window_bounds = array<i64: 8, 512>}, {transform_indices = @transform_1, window_bounds = array<i64: 8, 1>}, {transform_indices = @transform_2, window_bounds = array<i64: 8, 1>}, {transform_indices = @transform_3, window_bounds = array<i64: 8, 512>}]} {
    %c0 = arith.constant 0 : index
    %c0_0 = arith.constant 0 : index
    %0 = vector.load %arg1[%c0, %c0_0] : memref<8x512xf32, #tpu.memory_space<vmem>>, vector<8x512xf32>
    %cst = arith.constant dense<0.000000e+00> : vector<8xf32>
    %1 = vector.multi_reduction <add>, %0, %cst [1] : vector<8x512xf32> to vector<8xf32>
    %2 = vector.shape_cast %1 : vector<8xf32> to vector<8x1xf32>
    %cst_1 = arith.constant 5.120000e+02 : f32
    %3 = vector.broadcast %cst_1 : f32 to vector<8x1xf32>
    %4 = arith.divf %2, %3 : vector<8x1xf32>
    %5 = vector.broadcast %4 : vector<8x1xf32> to vector<8x512xf32>
    %6 = arith.subf %0, %5 : vector<8x512xf32>
    %7 = arith.mulf %6, %6 : vector<8x512xf32>
    %cst_2 = arith.constant dense<0.000000e+00> : vector<8xf32>
    %8 = vector.multi_reduction <add>, %7, %cst_2 [1] : vector<8x512xf32> to vector<8xf32>
    %9 = vector.shape_cast %8 : vector<8xf32> to vector<8x1xf32>
    %cst_3 = arith.constant 5.120000e+02 : f32
    %10 = vector.broadcast %cst_3 : f32 to vector<8x1xf32>
    %11 = arith.divf %9, %10 : vector<8x1xf32>
    %12 = vector.broadcast %4 : vector<8x1xf32> to vector<8x512xf32>
    %13 = arith.subf %0, %12 : vector<8x512xf32>
    %cst_4 = arith.constant 9.99999974E-6 : f32
    %14 = vector.broadcast %cst_4 : f32 to vector<8x1xf32>
    %15 = arith.addf %11, %14 : vector<8x1xf32>
    %16 = math.rsqrt %15 : vector<8x1xf32>
    %17 = vector.broadcast %16 : vector<8x1xf32> to vector<8x512xf32>
    %18 = arith.mulf %13, %17 : vector<8x512xf32>
    %c0_5 = arith.constant 0 : index
    %c0_6 = arith.constant 0 : index
    %19 = vector.load %arg2[%c0_5, %c0_6] : memref<8x1xf32, #tpu.memory_space<vmem>>, vector<8x1xf32>
    %20 = vector.broadcast %19 : vector<8x1xf32> to vector<8x512xf32>
    %21 = arith.mulf %20, %18 : vector<8x512xf32>
    %c0_7 = arith.constant 0 : index
    %c0_8 = arith.constant 0 : index
    %22 = vector.load %arg3[%c0_7, %c0_8] : memref<8x1xf32, #tpu.memory_space<vmem>>, vector<8x1xf32>
    %23 = vector.broadcast %22 : vector<8x1xf32> to vector<8x512xf32>
    %24 = arith.addf %21, %23 : vector<8x512xf32>
    %cst_9 = arith.constant 0.000000e+00 : f32
    %25 = vector.broadcast %cst_9 : f32 to vector<8x512xf32>
    %26 = arith.maximumf %24, %25 : vector<8x512xf32>
    %c0_10 = arith.constant 0 : index
    %c0_11 = arith.constant 0 : index
    %27 = vector.load %arg4[%c0_10, %c0_11] : memref<8x512xf32, #tpu.memory_space<vmem>>, vector<8x512xf32>
    tpu.vector_store %arg4[%c0_10, %c0_11], %26 {strides = array<i32>} : memref<8x512xf32, #tpu.memory_space<vmem>>, vector<8x512xf32>,
    return
  }
  func.func @transform_0(%arg0: i32) -> (i32, i32) {
    %c0_i32 = arith.constant 0 : i32
    %c0_i32_0 = arith.constant 0 : i32
    return %arg0, %c0_i32 : i32, i32
  }
  func.func @transform_1(%arg0: i32) -> (i32, i32) {
    %c0_i32 = arith.constant 0 : i32
    %c0_i32_0 = arith.constant 0 : i32
    return %arg0, %c0_i32 : i32, i32
  }
  func.func @transform_2(%arg0: i32) -> (i32, i32) {
    %c0_i32 = arith.constant 0 : i32
    %c0_i32_0 = arith.constant 0 : i32
    return %arg0, %c0_i32 : i32, i32
  }
  func.func @transform_3(%arg0: i32) -> (i32, i32) {
    %c0_i32 = arith.constant 0 : i32
    %c0_i32_0 = arith.constant 0 : i32
    return %arg0, %c0_i32 : i32, i32
  }
}

module attributes {stable_mosaic.version = 11 : i64} {
  func.func @_bn_relu_kernel(%arg0: i32, %arg1: memref<8x2048xf32, #tpu.memory_space<vmem>>, %arg2: memref<8x1xf32, #tpu.memory_space<vmem>>, %arg3: memref<8x1xf32, #tpu.memory_space<vmem>>, %arg4: memref<8x2048xf32, #tpu.memory_space<vmem>>) attributes {dimension_semantics = [#tpu.dimension_semantics<parallel>], iteration_bounds = array<i64: 1>, scalar_prefetch = 0 : i64, scratch_operands = 0 : i64, tpu.core_type = #tpu.core_type<tc>, window_params = [{transform_indices = @transform_0, window_bounds = array<i64: 8, 2048>}, {transform_indices = @transform_1, window_bounds = array<i64: 8, 1>}, {transform_indices = @transform_2, window_bounds = array<i64: 8, 1>}, {transform_indices = @transform_3, window_bounds = array<i64: 8, 2048>}]} {
    %c0 = arith.constant 0 : index
    %c0_0 = arith.constant 0 : index
    %0 = vector.load %arg1[%c0, %c0_0] : memref<8x2048xf32, #tpu.memory_space<vmem>>, vector<8x2048xf32>
    %cst = arith.constant dense<0.000000e+00> : vector<8xf32>
    %1 = vector.multi_reduction <add>, %0, %cst [1] : vector<8x2048xf32> to vector<8xf32>
    %2 = vector.shape_cast %1 : vector<8xf32> to vector<8x1xf32>
    %cst_1 = arith.constant 2.048000e+03 : f32
    %3 = vector.broadcast %cst_1 : f32 to vector<8x1xf32>
    %4 = arith.divf %2, %3 : vector<8x1xf32>
    %5 = vector.broadcast %4 : vector<8x1xf32> to vector<8x2048xf32>
    %6 = arith.subf %0, %5 : vector<8x2048xf32>
    %7 = arith.mulf %6, %6 : vector<8x2048xf32>
    %cst_2 = arith.constant dense<0.000000e+00> : vector<8xf32>
    %8 = vector.multi_reduction <add>, %7, %cst_2 [1] : vector<8x2048xf32> to vector<8xf32>
    %9 = vector.shape_cast %8 : vector<8xf32> to vector<8x1xf32>
    %cst_3 = arith.constant 2.048000e+03 : f32
    %10 = vector.broadcast %cst_3 : f32 to vector<8x1xf32>
    %11 = arith.divf %9, %10 : vector<8x1xf32>
    %12 = vector.broadcast %4 : vector<8x1xf32> to vector<8x2048xf32>
    %13 = arith.subf %0, %12 : vector<8x2048xf32>
    %cst_4 = arith.constant 9.99999974E-6 : f32
    %14 = vector.broadcast %cst_4 : f32 to vector<8x1xf32>
    %15 = arith.addf %11, %14 : vector<8x1xf32>
    %16 = math.rsqrt %15 : vector<8x1xf32>
    %17 = vector.broadcast %16 : vector<8x1xf32> to vector<8x2048xf32>
    %18 = arith.mulf %13, %17 : vector<8x2048xf32>
    %c0_5 = arith.constant 0 : index
    %c0_6 = arith.constant 0 : index
    %19 = vector.load %arg2[%c0_5, %c0_6] : memref<8x1xf32, #tpu.memory_space<vmem>>, vector<8x1xf32>
    %20 = vector.broadcast %19 : vector<8x1xf32> to vector<8x2048xf32>
    %21 = arith.mulf %20, %18 : vector<8x2048xf32>
    %c0_7 = arith.constant 0 : index
    %c0_8 = arith.constant 0 : index
    %22 = vector.load %arg3[%c0_7, %c0_8] : memref<8x1xf32, #tpu.memory_space<vmem>>, vector<8x1xf32>
    %23 = vector.broadcast %22 : vector<8x1xf32> to vector<8x2048xf32>
    %24 = arith.addf %21, %23 : vector<8x2048xf32>
    %cst_9 = arith.constant 0.000000e+00 : f32
    %25 = vector.broadcast %cst_9 : f32 to vector<8x2048xf32>
    %26 = arith.maximumf %24, %25 : vector<8x2048xf32>
    %c0_10 = arith.constant 0 : index
    %c0_11 = arith.constant 0 : index
    %27 = vector.load %arg4[%c0_10, %c0_11] : memref<8x2048xf32, #tpu.memory_space<vmem>>, vector<8x2048xf32>
    tpu.vector_store %arg4[%c0_10, %c0_11], %26 {strides = array<i32>} : memref<8x2048xf32, #tpu.memory_space<vmem>>, vector<8x2048xf32>,
    return
  }
  func.func @transform_0(%arg0: i32) -> (i32, i32) {
    %c0_i32 = arith.constant 0 : i32
    %c0_i32_0 = arith.constant 0 : i32
    return %arg0, %c0_i32 : i32, i32
  }
  func.func @transform_1(%arg0: i32) -> (i32, i32) {
    %c0_i32 = arith.constant 0 : i32
    %c0_i32_0 = arith.constant 0 : i32
    return %arg0, %c0_i32 : i32, i32
  }
  func.func @transform_2(%arg0: i32) -> (i32, i32) {
    %c0_i32 = arith.constant 0 : i32
    %c0_i32_0 = arith.constant 0 : i32
    return %arg0, %c0_i32 : i32, i32
  }
  func.func @transform_3(%arg0: i32) -> (i32, i32) {
    %c0_i32 = arith.constant 0 : i32
    %c0_i32_0 = arith.constant 0 : i32
    return %arg0, %c0_i32 : i32, i32
  }
}

module attributes {stable_mosaic.version = 11 : i64} {
  func.func @_convmm_kernel(%arg0: i32, %arg1: memref<8x256xbf16, #tpu.memory_space<vmem>>, %arg2: memref<256x2048xbf16, #tpu.memory_space<vmem>>, %arg3: memref<8x2048xf32, #tpu.memory_space<vmem>>) attributes {dimension_semantics = [#tpu.dimension_semantics<parallel>], iteration_bounds = array<i64: 1>, scalar_prefetch = 0 : i64, scratch_operands = 0 : i64, tpu.core_type = #tpu.core_type<tc>, window_params = [{pipeline_mode = #tpu.pipeline_mode<synchronous>, transform_indices = @transform_0, window_bounds = array<i64: 8, 256>}, {transform_indices = @transform_1, window_bounds = array<i64: 256, 2048>}, {transform_indices = @transform_2, window_bounds = array<i64: 8, 2048>}]} {
    %c0 = arith.constant 0 : index
    %c0_0 = arith.constant 0 : index
    %0 = vector.load %arg1[%c0, %c0_0] : memref<8x256xbf16, #tpu.memory_space<vmem>>, vector<8x256xbf16>
    %c0_1 = arith.constant 0 : index
    %c0_2 = arith.constant 0 : index
    %1 = vector.load %arg2[%c0_1, %c0_2] : memref<256x2048xbf16, #tpu.memory_space<vmem>>, vector<256x2048xbf16>
    %cst = arith.constant dense<0.000000e+00> : vector<8x2048xf32>
    %2 = tpu.matmul %0, %1, %cst {dimension_numbers = #tpu.dot_dimension_numbers<[1], [0], [0], [1], [0, 0, 1, 1], [], []>} : vector<8x256xbf16>, vector<256x2048xbf16>, vector<8x2048xf32> -> vector<8x2048xf32>
    %c0_3 = arith.constant 0 : index
    %c0_4 = arith.constant 0 : index
    %3 = vector.load %arg3[%c0_3, %c0_4] : memref<8x2048xf32, #tpu.memory_space<vmem>>, vector<8x2048xf32>
    tpu.vector_store %arg3[%c0_3, %c0_4], %2 {strides = array<i32>} : memref<8x2048xf32, #tpu.memory_space<vmem>>, vector<8x2048xf32>,
    return
  }
  func.func @transform_0(%arg0: i32) -> (i32, i32) {
    %c0_i32 = arith.constant 0 : i32
    %c0_i32_0 = arith.constant 0 : i32
    %c0_i32_1 = arith.constant 0 : i32
    return %c0_i32, %c0_i32_0 : i32, i32
  }
  func.func @transform_1(%arg0: i32) -> (i32, i32) {
    %c0_i32 = arith.constant 0 : i32
    %c0_i32_0 = arith.constant 0 : i32
    return %c0_i32, %arg0 : i32, i32
  }
  func.func @transform_2(%arg0: i32) -> (i32, i32) {
    %c0_i32 = arith.constant 0 : i32
    %c0_i32_0 = arith.constant 0 : i32
    return %c0_i32, %arg0 : i32, i32
  }
}

module attributes {stable_mosaic.version = 11 : i64} {
  func.func @_convmm_tanh_kernel(%arg0: i32, %arg1: memref<8x128xbf16, #tpu.memory_space<vmem>>, %arg2: memref<128x2048xbf16, #tpu.memory_space<vmem>>, %arg3: memref<8x2048xf32, #tpu.memory_space<vmem>>) attributes {dimension_semantics = [#tpu.dimension_semantics<parallel>], iteration_bounds = array<i64: 4>, scalar_prefetch = 0 : i64, scratch_operands = 0 : i64, tpu.core_type = #tpu.core_type<tc>, window_params = [{pipeline_mode = #tpu.pipeline_mode<synchronous>, transform_indices = @transform_0, window_bounds = array<i64: 8, 128>}, {transform_indices = @transform_1, window_bounds = array<i64: 128, 2048>}, {transform_indices = @transform_2, window_bounds = array<i64: 8, 2048>}]} {
    %c0 = arith.constant 0 : index
    %c0_0 = arith.constant 0 : index
    %0 = vector.load %arg1[%c0, %c0_0] : memref<8x128xbf16, #tpu.memory_space<vmem>>, vector<8x128xbf16>
    %c0_1 = arith.constant 0 : index
    %c0_2 = arith.constant 0 : index
    %1 = vector.load %arg2[%c0_1, %c0_2] : memref<128x2048xbf16, #tpu.memory_space<vmem>>, vector<128x2048xbf16>
    %cst = arith.constant dense<0.000000e+00> : vector<8x2048xf32>
    %2 = tpu.matmul %0, %1, %cst {dimension_numbers = #tpu.dot_dimension_numbers<[1], [0], [0], [1], [0, 0, 1, 1], [], []>} : vector<8x128xbf16>, vector<128x2048xbf16>, vector<8x2048xf32> -> vector<8x2048xf32>
    %3 = math.tanh %2 : vector<8x2048xf32>
    %c0_3 = arith.constant 0 : index
    %c0_4 = arith.constant 0 : index
    %4 = vector.load %arg3[%c0_3, %c0_4] : memref<8x2048xf32, #tpu.memory_space<vmem>>, vector<8x2048xf32>
    tpu.vector_store %arg3[%c0_3, %c0_4], %3 {strides = array<i32>} : memref<8x2048xf32, #tpu.memory_space<vmem>>, vector<8x2048xf32>,
    return
  }
  func.func @transform_0(%arg0: i32) -> (i32, i32) {
    %c0_i32 = arith.constant 0 : i32
    %c0_i32_0 = arith.constant 0 : i32
    %c0_i32_1 = arith.constant 0 : i32
    return %c0_i32, %c0_i32_0 : i32, i32
  }
  func.func @transform_1(%arg0: i32) -> (i32, i32) {
    %c0_i32 = arith.constant 0 : i32
    %c0_i32_0 = arith.constant 0 : i32
    return %c0_i32, %arg0 : i32, i32
  }
  func.func @transform_2(%arg0: i32) -> (i32, i32) {
    %c0_i32 = arith.constant 0 : i32
    %c0_i32_0 = arith.constant 0 : i32
    return %c0_i32, %arg0 : i32, i32
  }
}

</mosaic_0001>

<llo_original>
// kernel: generator_forward.10
$region0: #{generator_forward.10}
  #allocation0 [shape = 'u32[]', space=smem, size = 0x4, offset = 0x4, fixed_abs, tag = 'smem constant byte address 0x4 - core index']
  #allocation1 [shape = 'u32[72,128]{1,0:T(1,128)}', space=vmem, size = 0x9000, scoped, tag = 'internal scratch']
  %s0 = inlined_call_operand.vmem [shape: f32[64,32], index: 0, kind: input, shape index: {}]
  %s1 = inlined_call_operand.vmem [shape: f32[64,1], index: 1, kind: input, shape index: {}]
  %s2 = inlined_call_operand.vmem [shape: f32[64,1], index: 2, kind: input, shape index: {}]
  %s3 = inlined_call_operand.vmem [shape: f32[64,32], index: 3, kind: output, shape index: {}]
  %s4 = sld [smem:[#allocation0]]
  $region45: #{generator_forward.10} parent=0
    _
  %s6 = ssub.s32 1, %s4
  %s7 = scalar_select 0, %s6, %s4
  loop: start=0, step=1, limit=10
  $region2: #{generator_forward.10} parent=0 // loop_pre_header
    _
  $region3: #{generator_forward.10} parent=0 // loop_header
    %s9 = sphi 0, %s13
    %p10 = scmp.ge.s32.totalorder %s9, 10
    %s19 = sphi 0, %s21
    %s22 = sphi 0, %s19
    %s23 = sphi 0, %s22
    %s39 = sphi 0, %s23
    %s45 = sphi 0, %s47
    %s48 = sphi 0, %s45
    %s49 = sphi 0, %s48
    %s65 = sphi 0, %s49
    %s71 = sphi 0, %s73
    %s74 = sphi 0, %s71
    %s75 = sphi 0, %s74
    %s91 = sphi 0, %s75
    %s97 = sphi 0, %s99
    %s100 = sphi 0, %s97
    %s101 = sphi 0, %s100
    %s117 = sphi 0, %s101
  $region4: #{generator_forward.10} parent=0 // loop_header_branch
    %12 = sbr.rel (%p10) target = $region8
  $region5: #{generator_forward.10} parent=0 // loop_body
    %s14 = ssub.s32 %s9, 1
    %s15 = ssub.s32 %s9, 2
    %s16 = sadd.s32 %s9, 1
    %s17 = ssub.s32 %s9, %s16
    %p18 = scmp.eq.s32.totalorder %s17, 0
    %s20 = sadd.s32 %s19, 1
    %s21 = scalar_select %p18, %s19, %s20
    %p24 = pneg %p18
    %p25 = scmp.eq.s32.totalorder %s9, 7
    %p26 = por %p24, %p25
    %p27 = scmp.ne.s32.totalorder %s19, %s22
    %p28 = scmp.eq.s32.totalorder %s9, 0
    %p29 = por %p27, %p28
    %p30 = scmp.ne.s32.totalorder %s19, %s22
    %p31 = scmp.eq.s32.totalorder %s14, 7
    %p32 = por %p30, %p31
    %p33 = scmp.ne.s32.totalorder %s22, %s23
    %p34 = scmp.eq.s32.totalorder %s14, 0
    %p35 = por %p33, %p34
    %p36 = scmp.ne.s32.totalorder %s22, %s23
    %p37 = scmp.eq.s32.totalorder %s15, 7
    %p38 = por %p36, %p37
    %p40 = scmp.ne.s32.totalorder %s23, %s39
    %p41 = scmp.eq.s32.totalorder %s15, 0
    %p42 = por %p40, %p41
    %s43 = ssub.s32 %s9, %s16
    %p44 = scmp.eq.s32.totalorder %s43, 0
    %s46 = sadd.s32 %s45, 1
    %s47 = scalar_select %p44, %s45, %s46
    %p50 = pneg %p44
    %p51 = scmp.eq.s32.totalorder %s9, 7
    %p52 = por %p50, %p51
    %p53 = scmp.ne.s32.totalorder %s45, %s48
    %p54 = scmp.eq.s32.totalorder %s9, 0
    %p55 = por %p53, %p54
    %p56 = scmp.ne.s32.totalorder %s45, %s48
    %p57 = scmp.eq.s32.totalorder %s14, 7
    %p58 = por %p56, %p57
    %p59 = scmp.ne.s32.totalorder %s48, %s49
    %p60 = scmp.eq.s32.totalorder %s14, 0
    %p61 = por %p59, %p60
    %p62 = scmp.ne.s32.totalorder %s48, %s49
    %p63 = scmp.eq.s32.totalorder %s15, 7
    %p64 = por %p62, %p63
    %p66 = scmp.ne.s32.totalorder %s49, %s65
    %p67 = scmp.eq.s32.totalorder %s15, 0
    %p68 = por %p66, %p67
    %s69 = ssub.s32 %s9, %s16
    %p70 = scmp.eq.s32.totalorder %s69, 0
    %s72 = sadd.s32 %s71, 1
    %s73 = scalar_select %p70, %s71, %s72
    %p76 = pneg %p70
    %p77 = scmp.eq.s32.totalorder %s9, 7
    %p78 = por %p76, %p77
    %p79 = scmp.ne.s32.totalorder %s71, %s74
    %p80 = scmp.eq.s32.totalorder %s9, 0
    %p81 = por %p79, %p80
    %p82 = scmp.ne.s32.totalorder %s71, %s74
    %p83 = scmp.eq.s32.totalorder %s14, 7
    %p84 = por %p82, %p83
    %p85 = scmp.ne.s32.totalorder %s74, %s75
    %p86 = scmp.eq.s32.totalorder %s14, 0
    %p87 = por %p85, %p86
    %p88 = scmp.ne.s32.totalorder %s74, %s75
    %p89 = scmp.eq.s32.totalorder %s15, 7
    %p90 = por %p88, %p89
    %p92 = scmp.ne.s32.totalorder %s75, %s91
    %p93 = scmp.eq.s32.totalorder %s15, 0
    %p94 = por %p92, %p93
    %s95 = ssub.s32 %s9, %s16
    %p96 = scmp.eq.s32.totalorder %s95, 0
    %s98 = sadd.s32 %s97, 1
    %s99 = scalar_select %p96, %s97, %s98
    %p102 = pneg %p96
    %p103 = scmp.eq.s32.totalorder %s9, 7
    %p104 = por %p102, %p103
    %p105 = scmp.ne.s32.totalorder %s97, %s100
    %p106 = scmp.eq.s32.totalorder %s9, 0
    %p107 = por %p105, %p106
    %p108 = scmp.ne.s32.totalorder %s97, %s100
    %p109 = scmp.eq.s32.totalorder %s14, 7
    %p110 = por %p108, %p109
    %p111 = scmp.ne.s32.totalorder %s100, %s101
    %p112 = scmp.eq.s32.totalorder %s14, 0
    %p113 = por %p111, %p112
    %p114 = scmp.ne.s32.totalorder %s100, %s101
    %p115 = scmp.eq.s32.totalorder %s15, 7
    %p116 = por %p114, %p115
    %p118 = scmp.ne.s32.totalorder %s101, %s117
    %p119 = scmp.eq.s32.totalorder %s15, 0
    %p120 = por %p118, %p119
    %p121 = scmp.le.s32.totalorder 1, %s9
    %p122 = scmp.lt.s32.totalorder %s9, 9
    %p123 = pnand %p121, %p122
    %p124 = pneg %p123
    // Predicated region
    $region9: #{generator_forward.10} parent=5 // pred_check
      _
    $region10: #{generator_forward.10} parent=5 // pred_check_branch
      %126 = sbr.rel (%p123) target = $region12
    $region11: #{generator_forward.10} parent=5 // pred_region
      %s127 = ssub.s32 %s9, 1
    $region12: #{generator_forward.10} parent=5 // pred_fallthru
      _
    %p128 = scmp.lt.s32.totalorder %s9, 8
    // Predicated region
    $region13: #{generator_forward.10} parent=5 // pred_check
      %p129 = pneg %p128
    $region14: #{generator_forward.10} parent=5 // pred_check_branch
      %131 = sbr.rel (%p129) target = $region16
    $region15: #{generator_forward.10} parent=5 // pred_region
      // Predicated region
      $region17: #{generator_forward.10} parent=15 // pred_check
        %p132 = pneg %p29
      $region18: #{generator_forward.10} parent=15 // pred_check_branch
        %134 = sbr.rel (%p132) target = $region20
      $region19: #{generator_forward.10} parent=15 // pred_region
        %p135 = scmp.lt.s32.totalorder %s9, 7
        %s136 = scalar_select %p135, %s9, 7
        %s137 = smul.addr %s136, 8
        %s138 = scalar_lea.vmem %s0, %s137
      $region20: #{generator_forward.10} parent=15 // pred_fallthru
        _
      // Predicated region
      $region21: #{generator_forward.10} parent=15 // pred_check
        %p139 = pneg %p55
      $region22: #{generator_forward.10} parent=15 // pred_check_branch
        %141 = sbr.rel (%p139) target = $region24
      $region23: #{generator_forward.10} parent=15 // pred_region
        %p142 = scmp.lt.s32.totalorder %s9, 7
        %s143 = scalar_select %p142, %s9, 7
        %s144 = smul.addr %s143, 8
        %s145 = scalar_lea.vmem %s1, %s144
      $region24: #{generator_forward.10} parent=15 // pred_fallthru
        _
      // Predicated region
      $region25: #{generator_forward.10} parent=15 // pred_check
        %p146 = pneg %p81
      $region26: #{generator_forward.10} parent=15 // pred_check_branch
        %148 = sbr.rel (%p146) target = $region28
      $region27: #{generator_forward.10} parent=15 // pred_region
        %p149 = scmp.lt.s32.totalorder %s9, 7
        %s150 = scalar_select %p149, %s9, 7
        %s151 = smul.addr %s150, 8
        %s152 = scalar_lea.vmem %s2, %s151
      $region28: #{generator_forward.10} parent=15 // pred_fallthru
        _
    $region16: #{generator_forward.10} parent=5 // pred_fallthru
      _
    %p153 = scmp.le.s32.totalorder 1, %s9
    %p154 = scmp.lt.s32.totalorder %s9, 9
    %p155 = pnand %p153, %p154
    %p156 = pneg %p155
    // Predicated region
    $region29: #{generator_forward.10} parent=5 // pred_check
      _
    $region30: #{generator_forward.10} parent=5 // pred_check_branch
      %158 = sbr.rel (%p155) target = $region32
    $region31: #{generator_forward.10} parent=5 // pred_region
      %s159 = ssub.s32 %s9, 1
      %p160 = scmp.lt.s32.totalorder %s14, 7
      %s161 = scalar_select %p160, %s14, 7
      %s162 = smul.addr %s161, 8
      %s163 = scalar_lea.vmem %s0, %s162
      %p164 = pneg %p35
      %p165 = pneg %p32
      %p166 = scmp.lt.s32.totalorder %s14, 7
      %s167 = scalar_select %p166, %s14, 7
      %s168 = smul.addr %s167, 8
      %s169 = scalar_lea.vmem %s1, %s168
      %p170 = pneg %p61
      %p171 = pneg %p58
      %p172 = scmp.lt.s32.totalorder %s14, 7
      %s173 = scalar_select %p172, %s14, 7
      %s174 = smul.addr %s173, 8
      %s175 = scalar_lea.vmem %s2, %s174
      %p176 = pneg %p87
      %p177 = pneg %p84
      %p178 = pneg %p113
      %p179 = pneg %p110
      %p180 = scmp.lt.s32.totalorder %s14, 7
      %s181 = scalar_select %p180, %s14, 7
      %s182 = smul.addr %s181, 8
      %s183 = scalar_lea.vmem %s3, %s182
      %p184 = scmp.lt.s32.totalorder %s14, 7
      %s185 = scalar_select %p184, %s14, 7
      %s186 = smul.addr %s185, 8
      %s187 = scalar_lea.vmem %s0, %s186
      %p188 = scmp.lt.s32.totalorder %s14, 7
      %s189 = scalar_select %p188, %s14, 7
      %s190 = smul.addr %s189, 8
      %s191 = scalar_lea.vmem %s1, %s190
      %p192 = scmp.lt.s32.totalorder %s14, 7
      %s193 = scalar_select %p192, %s14, 7
      %s194 = smul.addr %s193, 8
      %s195 = scalar_lea.vmem %s2, %s194
      %p196 = scmp.lt.s32.totalorder %s14, 7
      %s197 = scalar_select %p196, %s14, 7
      %s198 = smul.addr %s197, 8
      %s199 = scalar_lea.vmem %s3, %s198
      %v200 = vld [vmem:[%s187] sm:$0xff]
      %vm201 = vcmask 261120
      %v202 = vsel %vm201, %v200, 0.0
      %203 = vadd.xlane.f32.xlu0 %v202
      %v204 = vpop.xlane.xlu0 %203
      %v205 = vrcp.pop 32.0
      %v206 = vmul.f32 32.0, %v205
      %v207 = vsub.f32 1.0, %v206
      %v208 = vmul.f32 %v205, %v207
      %v209 = vadd.f32 %v205, %v208
      %vm210 = vweird.f32 %v205
      %v211 = vsel %vm210, %v205, %v209
      %v212 = vmul.f32 %v204, %v211
      %v213 = vsub.f32 %v200, %v212
      %v214 = vmul.f32 %v213, %v213
      %v215 = vsel %vm201, %v214, 0.0
      %216 = vadd.xlane.f32.xlu0 %v215
      %v217 = vpop.xlane.xlu0 %216
      %v218 = vmul.f32 %v217, %v211
      %v219 = vadd.f32 %v218, 1e-05
      %v220 = vrsqrt.pop %v219
      %v221 = vmul.f32 %v220, %v219
      %v222 = vmul.f32 %v221, %v220
      %v223 = vmul.f32 0.5, %v222
      %v224 = vsub.f32 1.5, %v223
      %v225 = vmul.f32 %v220, %v224
      %vm226 = vweird.f32 %v219
      %vm227 = vweird.f32 %v220
      %vm228 = vmor %vm226, %vm227
      %v229 = vsel %vm228, %v220, %v225
      %v230 = vmul.f32 %v213, %v229
      %v231 = vld [vmem:[%s191] sm:$0xff]
      %233 = vset.pattern.permute.xlu0 0
      %234 = vperm.xlu0 %233, %v231
      %v235 = vpop.permute.xlu0 %234
      %v237 = vmul.f32 %v235, %v230
      %v238 = vld [vmem:[%s195] sm:$0xff]
      %240 = vset.pattern.permute.xlu0 0
      %241 = vperm.xlu0 %240, %v238
      %v242 = vpop.permute.xlu0 %241
      %v244 = vadd.f32 %v237, %v242
      %v245 = vmax.f32 %v244, 0.0
      %246 = vst.msk [vmem:[%s199] sm:$0xff] %vm201, %v245
      %p247 = scmp.lt.s32.totalorder %s14, 7
      %s248 = scalar_select %p247, %s14, 7
      %s249 = smul.addr %s248, 8
      %s250 = scalar_lea.vmem %s3, %s249
      // Predicated region
      $region33: #{generator_forward.10} parent=31 // pred_check
        %p251 = pneg %p110
      $region34: #{generator_forward.10} parent=31 // pred_check_branch
        %253 = sbr.rel (%p251) target = $region36
      $region35: #{generator_forward.10} parent=31 // pred_region
        _
      $region36: #{generator_forward.10} parent=31 // pred_fallthru
        _
    $region32: #{generator_forward.10} parent=5 // pred_fallthru
      _
    %p254 = scmp.le.s32.totalorder 2, %s9
    // Predicated region
    $region37: #{generator_forward.10} parent=5 // pred_check
      %p255 = pneg %p254
    $region38: #{generator_forward.10} parent=5 // pred_check_branch
      %257 = sbr.rel (%p255) target = $region40
    $region39: #{generator_forward.10} parent=5 // pred_region
      %s258 = ssub.s32 %s9, 2
      // Predicated region
      $region41: #{generator_forward.10} parent=39 // pred_check
        %p259 = pneg %p116
      $region42: #{generator_forward.10} parent=39 // pred_check_branch
        %261 = sbr.rel (%p259) target = $region44
      $region43: #{generator_forward.10} parent=39 // pred_region
        %p262 = scmp.lt.s32.totalorder %s15, 7
        %s263 = scalar_select %p262, %s15, 7
        %s264 = smul.addr %s263, 8
        %s265 = scalar_lea.vmem %s3, %s264
      $region44: #{generator_forward.10} parent=39 // pred_fallthru
        _
    $region40: #{generator_forward.10} parent=5 // pred_fallthru
      _
  $region6: #{generator_forward.10} parent=0 // loop_footer
    %s13 = sadd.s32 1, %s9
  $region7: #{generator_forward.10} parent=0 // loop_footer_branch
    %8 = sbr.rel target = $region3
  $region8: #{generator_forward.10} parent=0 // loop_exit
    _

// kernel: generator_forward.9
$region0: #{generator_forward.9}
  #allocation0 [shape = 'u32[]', space=smem, size = 0x4, offset = 0x4, fixed_abs, tag = 'smem constant byte address 0x4 - core index']
  #allocation1 [shape = 'u32[72,128]{1,0:T(1,128)}', space=vmem, size = 0x9000, scoped, tag = 'internal scratch']
  %s0 = inlined_call_operand.vmem [shape: bf16[64,256], index: 0, kind: input, shape index: {}]
  %s1 = inlined_call_operand.vmem [shape: bf16[256,128], index: 1, kind: input, shape index: {}]
  %s2 = inlined_call_operand.vmem [shape: f32[64,128], index: 2, kind: output, shape index: {}]
  %s3 = sld [smem:[#allocation0]]
  $region18: #{generator_forward.9} parent=0
    _
  %s5 = ssub.s32 1, %s3
  %s6 = scalar_select 0, %s5, %s3
  // Predicated region
  $region2: #{generator_forward.9} parent=0 // pred_check
    _
  $region3: #{generator_forward.9} parent=0 // pred_check_branch
    %8 = sbr.rel (0) target = $region5
  $region4: #{generator_forward.9} parent=0 // pred_region
    _
  $region5: #{generator_forward.9} parent=0 // pred_fallthru
    _
  // Predicated region
  $region6: #{generator_forward.9} parent=0 // pred_check
    _
  $region7: #{generator_forward.9} parent=0 // pred_check_branch
    %10 = sbr.rel (0) target = $region9
  $region8: #{generator_forward.9} parent=0 // pred_region
    _
  $region9: #{generator_forward.9} parent=0 // pred_fallthru
    _
  %v11 = vld [vmem:[%s0] sm:$0xff]
  %v12 = vld [vmem:[%s0 + $0x8] sm:$0xff]
  %v13 = vld [vmem:[%s0 + $0x10] sm:$0xff]
  %v14 = vld [vmem:[%s0 + $0x18] sm:$0xff]
  %v15 = vld [vmem:[%s0 + $0x20] sm:$0xff]
  %v16 = vld [vmem:[%s0 + $0x28] sm:$0xff]
  %v17 = vld [vmem:[%s0 + $0x30] sm:$0xff]
  %v18 = vld [vmem:[%s0 + $0x38] sm:$0xff]
  %v19 = vld [vmem:[%s1] sm:$0xf]
  %v20 = vld [vmem:[%s1 + $0x4] sm:$0xf]
  %v21 = vld [vmem:[%s1 + $0x8] sm:$0xf]
  %v22 = vld [vmem:[%s1 + $0xc] sm:$0xf]
  %v23 = vld [vmem:[%s1 + $0x10] sm:$0xf]
  %v24 = vld [vmem:[%s1 + $0x14] sm:$0xf]
  %v25 = vld [vmem:[%s1 + $0x18] sm:$0xf]
  %v26 = vld [vmem:[%s1 + $0x1c] sm:$0xf]
  %v27 = vld [vmem:[%s1 + $0x20] sm:$0xf]
  %v28 = vld [vmem:[%s1 + $0x24] sm:$0xf]
  %v29 = vld [vmem:[%s1 + $0x28] sm:$0xf]
  %v30 = vld [vmem:[%s1 + $0x2c] sm:$0xf]
  %v31 = vld [vmem:[%s1 + $0x30] sm:$0xf]
  %v32 = vld [vmem:[%s1 + $0x34] sm:$0xf]
  %v33 = vld [vmem:[%s1 + $0x38] sm:$0xf]
  %v34 = vld [vmem:[%s1 + $0x3c] sm:$0xf]
  %v35 = vld [vmem:[%s1 + $0x40] sm:$0xf]
  %v36 = vld [vmem:[%s1 + $0x44] sm:$0xf]
  %v37 = vld [vmem:[%s1 + $0x48] sm:$0xf]
  %v38 = vld [vmem:[%s1 + $0x4c] sm:$0xf]
  %v39 = vld [vmem:[%s1 + $0x50] sm:$0xf]
  %v40 = vld [vmem:[%s1 + $0x54] sm:$0xf]
  %v41 = vld [vmem:[%s1 + $0x58] sm:$0xf]
  %v42 = vld [vmem:[%s1 + $0x5c] sm:$0xf]
  %v43 = vld [vmem:[%s1 + $0x60] sm:$0xf]
  %v44 = vld [vmem:[%s1 + $0x64] sm:$0xf]
  %v45 = vld [vmem:[%s1 + $0x68] sm:$0xf]
  %v46 = vld [vmem:[%s1 + $0x6c] sm:$0xf]
  %v47 = vld [vmem:[%s1 + $0x70] sm:$0xf]
  %v48 = vld [vmem:[%s1 + $0x74] sm:$0xf]
  %v49 = vld [vmem:[%s1 + $0x78] sm:$0xf]
  %v50 = vld [vmem:[%s1 + $0x7c] sm:$0xf]
  %v59 = vunpack.c.l.b16 %v11
  %v60 = vunpack.c.h.b16 %v11
  %v61 = vunpack.c.l.b16 %v12
  %v62 = vunpack.c.h.b16 %v12
  %v63 = vunpack.c.l.b16 %v13
  %v64 = vunpack.c.h.b16 %v13
  %v65 = vunpack.c.l.b16 %v14
  %v66 = vunpack.c.h.b16 %v14
  %v67 = vunpack.c.l.b16 %v15
  %v68 = vunpack.c.h.b16 %v15
  %v69 = vunpack.c.l.b16 %v16
  %v70 = vunpack.c.h.b16 %v16
  %v71 = vunpack.c.l.b16 %v17
  %v72 = vunpack.c.h.b16 %v17
  %v73 = vunpack.c.l.b16 %v18
  %v74 = vunpack.c.h.b16 %v18
  %v75 = vpack.c.b16 %v61, %v59
  %v76 = vpack.c.b16 %v62, %v60
  %v77 = vpack.c.b16 %v65, %v63
  %v78 = vpack.c.b16 %v66, %v64
  %v79 = vpack.c.b16 %v69, %v67
  %v80 = vpack.c.b16 %v70, %v68
  %v81 = vpack.c.b16 %v73, %v71
  %v82 = vpack.c.b16 %v74, %v72
  %v123 = vunpack.c.l.b16 %v19
  %v124 = vunpack.c.l.b16 %v20
  %v125 = vunpack.c.l.b16 %v21
  %v126 = vunpack.c.l.b16 %v22
  %v127 = vunpack.c.l.b16 %v23
  %v128 = vunpack.c.l.b16 %v24
  %v129 = vunpack.c.l.b16 %v25
  %v130 = vunpack.c.l.b16 %v26
  %v131 = vunpack.c.l.b16 %v27
  %v132 = vunpack.c.l.b16 %v28
  %v133 = vunpack.c.l.b16 %v29
  %v134 = vunpack.c.l.b16 %v30
  %v135 = vunpack.c.l.b16 %v31
  %v136 = vunpack.c.l.b16 %v32
  %v137 = vunpack.c.l.b16 %v33
  %v138 = vunpack.c.l.b16 %v34
  %v139 = vunpack.c.l.b16 %v35
  %v140 = vunpack.c.l.b16 %v36
  %v141 = vunpack.c.l.b16 %v37
  %v142 = vunpack.c.l.b16 %v38
  %v143 = vunpack.c.l.b16 %v39
  %v144 = vunpack.c.l.b16 %v40
  %v145 = vunpack.c.l.b16 %v41
  %v146 = vunpack.c.l.b16 %v42
  %v147 = vunpack.c.l.b16 %v43
  %v148 = vunpack.c.l.b16 %v44
  %v149 = vunpack.c.l.b16 %v45
  %v150 = vunpack.c.l.b16 %v46
  %v151 = vunpack.c.l.b16 %v47
  %v152 = vunpack.c.l.b16 %v48
  %v153 = vunpack.c.l.b16 %v49
  %v154 = vunpack.c.l.b16 %v50
  %v155 = vpack.c.b16 %v124, %v123
  %v156 = vpack.c.b16 %v126, %v125
  %v157 = vpack.c.b16 %v128, %v127
  %v158 = vpack.c.b16 %v130, %v129
  %v159 = vpack.c.b16 %v132, %v131
  %v160 = vpack.c.b16 %v134, %v133
  %v161 = vpack.c.b16 %v136, %v135
  %v162 = vpack.c.b16 %v138, %v137
  %v163 = vpack.c.b16 %v140, %v139
  %v164 = vpack.c.b16 %v142, %v141
  %v165 = vpack.c.b16 %v144, %v143
  %v166 = vpack.c.b16 %v146, %v145
  %v167 = vpack.c.b16 %v148, %v147
  %v168 = vpack.c.b16 %v150, %v149
  %v169 = vpack.c.b16 %v152, %v151
  %v170 = vpack.c.b16 %v154, %v153
  %187 = vmatpush.bf16.msra.mxu0 %v162
  %188 = vmatpush.bf16.msra.mxu0 %v161
  %189 = vmatpush.bf16.msra.mxu0 %v160
  %190 = vmatpush.bf16.msra.mxu0 %v159
  %191 = vmatpush.bf16.msra.mxu0 %v158
  %192 = vmatpush.bf16.msra.mxu0 %v157
  %193 = vmatpush.bf16.msra.mxu0 %v156
  %194 = vmatpush.bf16.msra.mxu0 %v155
  %195 = vmatmul.bf16.gmra.mxu0 %v75
  %v196 = vpop.f32.mrf.mxu0
  %v197 = vadd.f32 0.0, %v196
  %v198 = vpop.f32.mrf.mxu0
  %v199 = vadd.f32 0.0, %v198
  %200 = vmatmul.bf16.gmra.mxu0 %v77
  %v201 = vpop.f32.mrf.mxu0
  %v202 = vadd.f32 0.0, %v201
  %v203 = vpop.f32.mrf.mxu0
  %v204 = vadd.f32 0.0, %v203
  %205 = vmatmul.bf16.gmra.mxu0 %v79
  %v206 = vpop.f32.mrf.mxu0
  %v207 = vadd.f32 0.0, %v206
  %v208 = vpop.f32.mrf.mxu0
  %v209 = vadd.f32 0.0, %v208
  %210 = vmatmul.bf16.gmra.mxu0 %v81
  %v211 = vpop.f32.mrf.mxu0
  %v212 = vadd.f32 0.0, %v211
  %v213 = vpop.f32.mrf.mxu0
  %v214 = vadd.f32 0.0, %v213
  %215 = vdwg.mxu0
  %216 = vmatpush.bf16.msra.mxu0 %v170
  %217 = vmatpush.bf16.msra.mxu0 %v169
  %218 = vmatpush.bf16.msra.mxu0 %v168
  %219 = vmatpush.bf16.msra.mxu0 %v167
  %220 = vmatpush.bf16.msra.mxu0 %v166
  %221 = vmatpush.bf16.msra.mxu0 %v165
  %222 = vmatpush.bf16.msra.mxu0 %v164
  %223 = vmatpush.bf16.msra.mxu0 %v163
  %224 = vmatmul.bf16.gmra.mxu0 %v76
  %v225 = vpop.f32.mrf.mxu0
  %v226 = vadd.f32 %v197, %v225
  %v227 = vpop.f32.mrf.mxu0
  %v228 = vadd.f32 %v199, %v227
  %229 = vmatmul.bf16.gmra.mxu0 %v78
  %v230 = vpop.f32.mrf.mxu0
  %v231 = vadd.f32 %v202, %v230
  %v232 = vpop.f32.mrf.mxu0
  %v233 = vadd.f32 %v204, %v232
  %234 = vmatmul.bf16.gmra.mxu0 %v80
  %v235 = vpop.f32.mrf.mxu0
  %v236 = vadd.f32 %v207, %v235
  %v237 = vpop.f32.mrf.mxu0
  %v238 = vadd.f32 %v209, %v237
  %239 = vmatmul.bf16.gmra.mxu0 %v82
  %v240 = vpop.f32.mrf.mxu0
  %v241 = vadd.f32 %v212, %v240
  %v242 = vpop.f32.mrf.mxu0
  %v243 = vadd.f32 %v214, %v242
  %244 = vdwg.mxu0
  %245 = vst [vmem:[%s2] sm:$0xff] %v226
  %246 = vst [vmem:[%s2 + $0x8] sm:$0xff] %v228
  %247 = vst [vmem:[%s2 + $0x10] sm:$0xff] %v231
  %248 = vst [vmem:[%s2 + $0x18] sm:$0xff] %v233
  %249 = vst [vmem:[%s2 + $0x20] sm:$0xff] %v236
  %250 = vst [vmem:[%s2 + $0x28] sm:$0xff] %v238
  %251 = vst [vmem:[%s2 + $0x30] sm:$0xff] %v241
  %252 = vst [vmem:[%s2 + $0x38] sm:$0xff] %v243
  // Predicated region
  $region10: #{generator_forward.9} parent=0 // pred_check
    _
  $region11: #{generator_forward.9} parent=0 // pred_check_branch
    %254 = sbr.rel (0) target = $region13
  $region12: #{generator_forward.9} parent=0 // pred_region
    _
  $region13: #{generator_forward.9} parent=0 // pred_fallthru
    _
  // Predicated region
  $region14: #{generator_forward.9} parent=0 // pred_check
    _
  $region15: #{generator_forward.9} parent=0 // pred_check_branch
    %256 = sbr.rel (0) target = $region17
  $region16: #{generator_forward.9} parent=0 // pred_region
    _
  $region17: #{generator_forward.9} parent=0 // pred_fallthru
    _

// kernel: generator_forward.11
$region0: #{generator_forward.11}
  #allocation0 [shape = 'u32[]', space=smem, size = 0x4, offset = 0x4, fixed_abs, tag = 'smem constant byte address 0x4 - core index']
  #allocation1 [shape = 'u32[72,128]{1,0:T(1,128)}', space=vmem, size = 0x9000, scoped, tag = 'internal scratch']
  %s0 = inlined_call_operand.vmem [shape: bf16[32,1024], index: 0, kind: input, shape index: {}]
  %s1 = inlined_call_operand.vmem [shape: bf16[1024,128], index: 1, kind: input, shape index: {}]
  %s2 = inlined_call_operand.vmem [shape: f32[32,128], index: 2, kind: output, shape index: {}]
  %s3 = sld [smem:[#allocation0]]
  $region18: #{generator_forward.11} parent=0
    _
  %s5 = ssub.s32 1, %s3
  %s6 = scalar_select 0, %s5, %s3
  // Predicated region
  $region2: #{generator_forward.11} parent=0 // pred_check
    _
  $region3: #{generator_forward.11} parent=0 // pred_check_branch
    %8 = sbr.rel (0) target = $region5
  $region4: #{generator_forward.11} parent=0 // pred_region
    _
  $region5: #{generator_forward.11} parent=0 // pred_fallthru
    _
  // Predicated region
  $region6: #{generator_forward.11} parent=0 // pred_check
    _
  $region7: #{generator_forward.11} parent=0 // pred_check_branch
    %10 = sbr.rel (0) target = $region9
  $region8: #{generator_forward.11} parent=0 // pred_region
    _
  $region9: #{generator_forward.11} parent=0 // pred_fallthru
    _
  %v11 = vld [vmem:[%s0] sm:$0xff]
  %v12 = vld [vmem:[%s0 + $0x8] sm:$0xff]
  %v13 = vld [vmem:[%s0 + $0x10] sm:$0xff]
  %v14 = vld [vmem:[%s0 + $0x18] sm:$0xff]
  %v15 = vld [vmem:[%s0 + $0x20] sm:$0xff]
  %v16 = vld [vmem:[%s0 + $0x28] sm:$0xff]
  %v17 = vld [vmem:[%s0 + $0x30] sm:$0xff]
  %v18 = vld [vmem:[%s0 + $0x38] sm:$0xff]
  %v19 = vld [vmem:[%s0 + $0x40] sm:$0xff]
  %v20 = vld [vmem:[%s0 + $0x48] sm:$0xff]
  %v21 = vld [vmem:[%s0 + $0x50] sm:$0xff]
  %v22 = vld [vmem:[%s0 + $0x58] sm:$0xff]
  %v23 = vld [vmem:[%s0 + $0x60] sm:$0xff]
  %v24 = vld [vmem:[%s0 + $0x68] sm:$0xff]
  %v25 = vld [vmem:[%s0 + $0x70] sm:$0xff]
  %v26 = vld [vmem:[%s0 + $0x78] sm:$0xff]
  %v27 = vld [vmem:[%s1] sm:$0xf]
  %v28 = vld [vmem:[%s1 + $0x4] sm:$0xf]
  %v29 = vld [vmem:[%s1 + $0x8] sm:$0xf]
  %v30 = vld [vmem:[%s1 + $0xc] sm:$0xf]
  %v31 = vld [vmem:[%s1 + $0x10] sm:$0xf]
  %v32 = vld [vmem:[%s1 + $0x14] sm:$0xf]
  %v33 = vld [vmem:[%s1 + $0x18] sm:$0xf]
  %v34 = vld [vmem:[%s1 + $0x1c] sm:$0xf]
  %v35 = vld [vmem:[%s1 + $0x20] sm:$0xf]
  %v36 = vld [vmem:[%s1 + $0x24] sm:$0xf]
  %v37 = vld [vmem:[%s1 + $0x28] sm:$0xf]
  %v38 = vld [vmem:[%s1 + $0x2c] sm:$0xf]
  %v39 = vld [vmem:[%s1 + $0x30] sm:$0xf]
  %v40 = vld [vmem:[%s1 + $0x34] sm:$0xf]
  %v41 = vld [vmem:[%s1 + $0x38] sm:$0xf]
  %v42 = vld [vmem:[%s1 + $0x3c] sm:$0xf]
  %v43 = vld [vmem:[%s1 + $0x40] sm:$0xf]
  %v44 = vld [vmem:[%s1 + $0x44] sm:$0xf]
  %v45 = vld [vmem:[%s1 + $0x48] sm:$0xf]
  %v46 = vld [vmem:[%s1 + $0x4c] sm:$0xf]
  %v47 = vld [vmem:[%s1 + $0x50] sm:$0xf]
  %v48 = vld [vmem:[%s1 + $0x54] sm:$0xf]
  %v49 = vld [vmem:[%s1 + $0x58] sm:$0xf]
  %v50 = vld [vmem:[%s1 + $0x5c] sm:$0xf]
  %v51 = vld [vmem:[%s1 + $0x60] sm:$0xf]
  %v52 = vld [vmem:[%s1 + $0x64] sm:$0xf]
  %v53 = vld [vmem:[%s1 + $0x68] sm:$0xf]
  %v54 = vld [vmem:[%s1 + $0x6c] sm:$0xf]
  %v55 = vld [vmem:[%s1 + $0x70] sm:$0xf]
  %v56 = vld [vmem:[%s1 + $0x74] sm:$0xf]
  %v57 = vld [vmem:[%s1 + $0x78] sm:$0xf]
  %v58 = vld [vmem:[%s1 + $0x7c] sm:$0xf]
  %v59 = vld [vmem:[%s1 + $0x80] sm:$0xf]
  %v60 = vld [vmem:[%s1 + $0x84] sm:$0xf]
  %v61 = vld [vmem:[%s1 + $0x88] sm:$0xf]
  %v62 = vld [vmem:[%s1 + $0x8c] sm:$0xf]
  %v63 = vld [vmem:[%s1 + $0x90] sm:$0xf]
  %v64 = vld [vmem:[%s1 + $0x94] sm:$0xf]
  %v65 = vld [vmem:[%s1 + $0x98] sm:$0xf]
  %v66 = vld [vmem:[%s1 + $0x9c] sm:$0xf]
  %v67 = vld [vmem:[%s1 + $0xa0] sm:$0xf]
  %v68 = vld [vmem:[%s1 + $0xa4] sm:$0xf]
  %v69 = vld [vmem:[%s1 + $0xa8] sm:$0xf]
  %v70 = vld [vmem:[%s1 + $0xac] sm:$0xf]
  %v71 = vld [vmem:[%s1 + $0xb0] sm:$0xf]
  %v72 = vld [vmem:[%s1 + $0xb4] sm:$0xf]
  %v73 = vld [vmem:[%s1 + $0xb8] sm:$0xf]
  %v74 = vld [vmem:[%s1 + $0xbc] sm:$0xf]
  %v75 = vld [vmem:[%s1 + $0xc0] sm:$0xf]
  %v76 = vld [vmem:[%s1 + $0xc4] sm:$0xf]
  %v77 = vld [vmem:[%s1 + $0xc8] sm:$0xf]
  %v78 = vld [vmem:[%s1 + $0xcc] sm:$0xf]
  %v79 = vld [vmem:[%s1 + $0xd0] sm:$0xf]
  %v80 = vld [vmem:[%s1 + $0xd4] sm:$0xf]
  %v81 = vld [vmem:[%s1 + $0xd8] sm:$0xf]
  %v82 = vld [vmem:[%s1 + $0xdc] sm:$0xf]
  %v83 = vld [vmem:[%s1 + $0xe0] sm:$0xf]
  %v84 = vld [vmem:[%s1 + $0xe4] sm:$0xf]
  %v85 = vld [vmem:[%s1 + $0xe8] sm:$0xf]
  %v86 = vld [vmem:[%s1 + $0xec] sm:$0xf]
  %v87 = vld [vmem:[%s1 + $0xf0] sm:$0xf]
  %v88 = vld [vmem:[%s1 + $0xf4] sm:$0xf]
  %v89 = vld [vmem:[%s1 + $0xf8] sm:$0xf]
  %v90 = vld [vmem:[%s1 + $0xfc] sm:$0xf]
  %v91 = vld [vmem:[%s1 + $0x100] sm:$0xf]
  %v92 = vld [vmem:[%s1 + $0x104] sm:$0xf]
  %v93 = vld [vmem:[%s1 + $0x108] sm:$0xf]
  %v94 = vld [vmem:[%s1 + $0x10c] sm:$0xf]
  %v95 = vld [vmem:[%s1 + $0x110] sm:$0xf]
  %v96 = vld [vmem:[%s1 + $0x114] sm:$0xf]
  %v97 = vld [vmem:[%s1 + $0x118] sm:$0xf]
  %v98 = vld [vmem:[%s1 + $0x11c] sm:$0xf]
  %v99 = vld [vmem:[%s1 + $0x120] sm:$0xf]
  %v100 = vld [vmem:[%s1 + $0x124] sm:$0xf]
  %v101 = vld [vmem:[%s1 + $0x128] sm:$0xf]
  %v102 = vld [vmem:[%s1 + $0x12c] sm:$0xf]
  %v103 = vld [vmem:[%s1 + $0x130] sm:$0xf]
  %v104 = vld [vmem:[%s1 + $0x134] sm:$0xf]
  %v105 = vld [vmem:[%s1 + $0x138] sm:$0xf]
  %v106 = vld [vmem:[%s1 + $0x13c] sm:$0xf]
  %v107 = vld [vmem:[%s1 + $0x140] sm:$0xf]
  %v108 = vld [vmem:[%s1 + $0x144] sm:$0xf]
  %v109 = vld [vmem:[%s1 + $0x148] sm:$0xf]
  %v110 = vld [vmem:[%s1 + $0x14c] sm:$0xf]
  %v111 = vld [vmem:[%s1 + $0x150] sm:$0xf]
  %v112 = vld [vmem:[%s1 + $0x154] sm:$0xf]
  %v113 = vld [vmem:[%s1 + $0x158] sm:$0xf]
  %v114 = vld [vmem:[%s1 + $0x15c] sm:$0xf]
  %v115 = vld [vmem:[%s1 + $0x160] sm:$0xf]
  %v116 = vld [vmem:[%s1 + $0x164] sm:$0xf]
  %v117 = vld [vmem:[%s1 + $0x168] sm:$0xf]
  %v118 = vld [vmem:[%s1 + $0x16c] sm:$0xf]
  %v119 = vld [vmem:[%s1 + $0x170] sm:$0xf]
  %v120 = vld [vmem:[%s1 + $0x174] sm:$0xf]
  %v121 = vld [vmem:[%s1 + $0x178] sm:$0xf]
  %v122 = vld [vmem:[%s1 + $0x17c] sm:$0xf]
  %v123 = vld [vmem:[%s1 + $0x180] sm:$0xf]
  %v124 = vld [vmem:[%s1 + $0x184] sm:$0xf]
  %v125 = vld [vmem:[%s1 + $0x188] sm:$0xf]
  %v126 = vld [vmem:[%s1 + $0x18c] sm:$0xf]
  %v127 = vld [vmem:[%s1 + $0x190] sm:$0xf]
  %v128 = vld [vmem:[%s1 + $0x194] sm:$0xf]
  %v129 = vld [vmem:[%s1 + $0x198] sm:$0xf]
  %v130 = vld [vmem:[%s1 + $0x19c] sm:$0xf]
  %v131 = vld [vmem:[%s1 + $0x1a0] sm:$0xf]
  %v132 = vld [vmem:[%s1 + $0x1a4] sm:$0xf]
  %v133 = vld [vmem:[%s1 + $0x1a8] sm:$0xf]
  %v134 = vld [vmem:[%s1 + $0x1ac] sm:$0xf]
  %v135 = vld [vmem:[%s1 + $0x1b0] sm:$0xf]
  %v136 = vld [vmem:[%s1 + $0x1b4] sm:$0xf]
  %v137 = vld [vmem:[%s1 + $0x1b8] sm:$0xf]
  %v138 = vld [vmem:[%s1 + $0x1bc] sm:$0xf]
  %v139 = vld [vmem:[%s1 + $0x1c0] sm:$0xf]
  %v140 = vld [vmem:[%s1 + $0x1c4] sm:$0xf]
  %v141 = vld [vmem:[%s1 + $0x1c8] sm:$0xf]
  %v142 = vld [vmem:[%s1 + $0x1cc] sm:$0xf]
  %v143 = vld [vmem:[%s1 + $0x1d0] sm:$0xf]
  %v144 = vld [vmem:[%s1 + $0x1d4] sm:$0xf]
  %v145 = vld [vmem:[%s1 + $0x1d8] sm:$0xf]
  %v146 = vld [vmem:[%s1 + $0x1dc] sm:$0xf]
  %v147 = vld [vmem:[%s1 + $0x1e0] sm:$0xf]
  %v148 = vld [vmem:[%s1 + $0x1e4] sm:$0xf]
  %v149 = vld [vmem:[%s1 + $0x1e8] sm:$0xf]
  %v150 = vld [vmem:[%s1 + $0x1ec] sm:$0xf]
  %v151 = vld [vmem:[%s1 + $0x1f0] sm:$0xf]
  %v152 = vld [vmem:[%s1 + $0x1f4] sm:$0xf]
  %v153 = vld [vmem:[%s1 + $0x1f8] sm:$0xf]
  %v154 = vld [vmem:[%s1 + $0x1fc] sm:$0xf]
  %v171 = vunpack.c.l.b16 %v11
  %v172 = vunpack.c.h.b16 %v11
  %v173 = vunpack.c.l.b16 %v12
  %v174 = vunpack.c.h.b16 %v12
  %v175 = vunpack.c.l.b16 %v13
  %v176 = vunpack.c.h.b16 %v13
  %v177 = vunpack.c.l.b16 %v14
  %v178 = vunpack.c.h.b16 %v14
  %v179 = vunpack.c.l.b16 %v15
  %v180 = vunpack.c.h.b16 %v15
  %v181 = vunpack.c.l.b16 %v16
  %v182 = vunpack.c.h.b16 %v16
  %v183 = vunpack.c.l.b16 %v17
  %v184 = vunpack.c.h.b16 %v17
  %v185 = vunpack.c.l.b16 %v18
  %v186 = vunpack.c.h.b16 %v18
  %v187 = vunpack.c.l.b16 %v19
  %v188 = vunpack.c.h.b16 %v19
  %v189 = vunpack.c.l.b16 %v20
  %v190 = vunpack.c.h.b16 %v20
  %v191 = vunpack.c.l.b16 %v21
  %v192 = vunpack.c.h.b16 %v21
  %v193 = vunpack.c.l.b16 %v22
  %v194 = vunpack.c.h.b16 %v22
  %v195 = vunpack.c.l.b16 %v23
  %v196 = vunpack.c.h.b16 %v23
  %v197 = vunpack.c.l.b16 %v24
  %v198 = vunpack.c.h.b16 %v24
  %v199 = vunpack.c.l.b16 %v25
  %v200 = vunpack.c.h.b16 %v25
  %v201 = vunpack.c.l.b16 %v26
  %v202 = vunpack.c.h.b16 %v26
  %v203 = vpack.c.b16 %v179, %v171
  %v204 = vpack.c.b16 %v180, %v172
  %v205 = vpack.c.b16 %v181, %v173
  %v206 = vpack.c.b16 %v182, %v174
  %v207 = vpack.c.b16 %v183, %v175
  %v208 = vpack.c.b16 %v184, %v176
  %v209 = vpack.c.b16 %v185, %v177
  %v210 = vpack.c.b16 %v186, %v178
  %v211 = vpack.c.b16 %v195, %v187
  %v212 = vpack.c.b16 %v196, %v188
  %v213 = vpack.c.b16 %v197, %v189
  %v214 = vpack.c.b16 %v198, %v190
  %v215 = vpack.c.b16 %v199, %v191
  %v216 = vpack.c.b16 %v200, %v192
  %v217 = vpack.c.b16 %v201, %v193
  %v218 = vpack.c.b16 %v202, %v194
  %v363 = vunpack.c.l.b16 %v27
  %v364 = vunpack.c.l.b16 %v28
  %v365 = vunpack.c.l.b16 %v29
  %v366 = vunpack.c.l.b16 %v30
  %v367 = vunpack.c.l.b16 %v31
  %v368 = vunpack.c.l.b16 %v32
  %v369 = vunpack.c.l.b16 %v33
  %v370 = vunpack.c.l.b16 %v34
  %v371 = vunpack.c.l.b16 %v35
  %v372 = vunpack.c.l.b16 %v36
  %v373 = vunpack.c.l.b16 %v37
  %v374 = vunpack.c.l.b16 %v38
  %v375 = vunpack.c.l.b16 %v39
  %v376 = vunpack.c.l.b16 %v40
  %v377 = vunpack.c.l.b16 %v41
  %v378 = vunpack.c.l.b16 %v42
  %v379 = vunpack.c.l.b16 %v43
  %v380 = vunpack.c.l.b16 %v44
  %v381 = vunpack.c.l.b16 %v45
  %v382 = vunpack.c.l.b16 %v46
  %v383 = vunpack.c.l.b16 %v47
  %v384 = vunpack.c.l.b16 %v48
  %v385 = vunpack.c.l.b16 %v49
  %v386 = vunpack.c.l.b16 %v50
  %v387 = vunpack.c.l.b16 %v51
  %v388 = vunpack.c.l.b16 %v52
  %v389 = vunpack.c.l.b16 %v53
  %v390 = vunpack.c.l.b16 %v54
  %v391 = vunpack.c.l.b16 %v55
  %v392 = vunpack.c.l.b16 %v56
  %v393 = vunpack.c.l.b16 %v57
  %v394 = vunpack.c.l.b16 %v58
  %v395 = vunpack.c.l.b16 %v59
  %v396 = vunpack.c.l.b16 %v60
  %v397 = vunpack.c.l.b16 %v61
  %v398 = vunpack.c.l.b16 %v62
  %v399 = vunpack.c.l.b16 %v63
  %v400 = vunpack.c.l.b16 %v64
  %v401 = vunpack.c.l.b16 %v65
  %v402 = vunpack.c.l.b16 %v66
  %v403 = vunpack.c.l.b16 %v67
  %v404 = vunpack.c.l.b16 %v68
  %v405 = vunpack.c.l.b16 %v69
  %v406 = vunpack.c.l.b16 %v70
  %v407 = vunpack.c.l.b16 %v71
  %v408 = vunpack.c.l.b16 %v72
  %v409 = vunpack.c.l.b16 %v73
  %v410 = vunpack.c.l.b16 %v74
  %v411 = vunpack.c.l.b16 %v75
  %v412 = vunpack.c.l.b16 %v76
  %v413 = vunpack.c.l.b16 %v77
  %v414 = vunpack.c.l.b16 %v78
  %v415 = vunpack.c.l.b16 %v79
  %v416 = vunpack.c.l.b16 %v80
  %v417 = vunpack.c.l.b16 %v81
  %v418 = vunpack.c.l.b16 %v82
  %v419 = vunpack.c.l.b16 %v83
  %v420 = vunpack.c.l.b16 %v84
  %v421 = vunpack.c.l.b16 %v85
  %v422 = vunpack.c.l.b16 %v86
  %v423 = vunpack.c.l.b16 %v87
  %v424 = vunpack.c.l.b16 %v88
  %v425 = vunpack.c.l.b16 %v89
  %v426 = vunpack.c.l.b16 %v90
  %v427 = vunpack.c.l.b16 %v91
  %v428 = vunpack.c.l.b16 %v92
  %v429 = vunpack.c.l.b16 %v93
  %v430 = vunpack.c.l.b16 %v94
  %v431 = vunpack.c.l.b16 %v95
  %v432 = vunpack.c.l.b16 %v96
  %v433 = vunpack.c.l.b16 %v97
  %v434 = vunpack.c.l.b16 %v98
  %v435 = vunpack.c.l.b16 %v99
  %v436 = vunpack.c.l.b16 %v100
  %v437 = vunpack.c.l.b16 %v101
  %v438 = vunpack.c.l.b16 %v102
  %v439 = vunpack.c.l.b16 %v103
  %v440 = vunpack.c.l.b16 %v104
  %v441 = vunpack.c.l.b16 %v105
  %v442 = vunpack.c.l.b16 %v106
  %v443 = vunpack.c.l.b16 %v107
  %v444 = vunpack.c.l.b16 %v108
  %v445 = vunpack.c.l.b16 %v109
  %v446 = vunpack.c.l.b16 %v110
  %v447 = vunpack.c.l.b16 %v111
  %v448 = vunpack.c.l.b16 %v112
  %v449 = vunpack.c.l.b16 %v113
  %v450 = vunpack.c.l.b16 %v114
  %v451 = vunpack.c.l.b16 %v115
  %v452 = vunpack.c.l.b16 %v116
  %v453 = vunpack.c.l.b16 %v117
  %v454 = vunpack.c.l.b16 %v118
  %v455 = vunpack.c.l.b16 %v119
  %v456 = vunpack.c.l.b16 %v120
  %v457 = vunpack.c.l.b16 %v121
  %v458 = vunpack.c.l.b16 %v122
  %v459 = vunpack.c.l.b16 %v123
  %v460 = vunpack.c.l.b16 %v124
  %v461 = vunpack.c.l.b16 %v125
  %v462 = vunpack.c.l.b16 %v126
  %v463 = vunpack.c.l.b16 %v127
  %v464 = vunpack.c.l.b16 %v128
  %v465 = vunpack.c.l.b16 %v129
  %v466 = vunpack.c.l.b16 %v130
  %v467 = vunpack.c.l.b16 %v131
  %v468 = vunpack.c.l.b16 %v132
  %v469 = vunpack.c.l.b16 %v133
  %v470 = vunpack.c.l.b16 %v134
  %v471 = vunpack.c.l.b16 %v135
  %v472 = vunpack.c.l.b16 %v136
  %v473 = vunpack.c.l.b16 %v137
  %v474 = vunpack.c.l.b16 %v138
  %v475 = vunpack.c.l.b16 %v139
  %v476 = vunpack.c.l.b16 %v140
  %v477 = vunpack.c.l.b16 %v141
  %v478 = vunpack.c.l.b16 %v142
  %v479 = vunpack.c.l.b16 %v143
  %v480 = vunpack.c.l.b16 %v144
  %v481 = vunpack.c.l.b16 %v145
  %v482 = vunpack.c.l.b16 %v146
  %v483 = vunpack.c.l.b16 %v147
  %v484 = vunpack.c.l.b16 %v148
  %v485 = vunpack.c.l.b16 %v149
  %v486 = vunpack.c.l.b16 %v150
  %v487 = vunpack.c.l.b16 %v151
  %v488 = vunpack.c.l.b16 %v152
  %v489 = vunpack.c.l.b16 %v153
  %v490 = vunpack.c.l.b16 %v154
  %v491 = vpack.c.b16 %v364, %v363
  %v492 = vpack.c.b16 %v366, %v365
  %v493 = vpack.c.b16 %v368, %v367
  %v494 = vpack.c.b16 %v370, %v369
  %v495 = vpack.c.b16 %v372, %v371
  %v496 = vpack.c.b16 %v374, %v373
  %v497 = vpack.c.b16 %v376, %v375
  %v498 = vpack.c.b16 %v378, %v377
  %v499 = vpack.c.b16 %v380, %v379
  %v500 = vpack.c.b16 %v382, %v381
  %v501 = vpack.c.b16 %v384, %v383
  %v502 = vpack.c.b16 %v386, %v385
  %v503 = vpack.c.b16 %v388, %v387
  %v504 = vpack.c.b16 %v390, %v389
  %v505 = vpack.c.b16 %v392, %v391
  %v506 = vpack.c.b16 %v394, %v393
  %v507 = vpack.c.b16 %v396, %v395
  %v508 = vpack.c.b16 %v398, %v397
  %v509 = vpack.c.b16 %v400, %v399
  %v510 = vpack.c.b16 %v402, %v401
  %v511 = vpack.c.b16 %v404, %v403
  %v512 = vpack.c.b16 %v406, %v405
  %v513 = vpack.c.b16 %v408, %v407
  %v514 = vpack.c.b16 %v410, %v409
  %v515 = vpack.c.b16 %v412, %v411
  %v516 = vpack.c.b16 %v414, %v413
  %v517 = vpack.c.b16 %v416, %v415
  %v518 = vpack.c.b16 %v418, %v417
  %v519 = vpack.c.b16 %v420, %v419
  %v520 = vpack.c.b16 %v422, %v421
  %v521 = vpack.c.b16 %v424, %v423
  %v522 = vpack.c.b16 %v426, %v425
  %v523 = vpack.c.b16 %v428, %v427
  %v524 = vpack.c.b16 %v430, %v429
  %v525 = vpack.c.b16 %v432, %v431
  %v526 = vpack.c.b16 %v434, %v433
  %v527 = vpack.c.b16 %v436, %v435
  %v528 = vpack.c.b16 %v438, %v437
  %v529 = vpack.c.b16 %v440, %v439
  %v530 = vpack.c.b16 %v442, %v441
  %v531 = vpack.c.b16 %v444, %v443
  %v532 = vpack.c.b16 %v446, %v445
  %v533 = vpack.c.b16 %v448, %v447
  %v534 = vpack.c.b16 %v450, %v449
  %v535 = vpack.c.b16 %v452, %v451
  %v536 = vpack.c.b16 %v454, %v453
  %v537 = vpack.c.b16 %v456, %v455
  %v538 = vpack.c.b16 %v458, %v457
  %v539 = vpack.c.b16 %v460, %v459
  %v540 = vpack.c.b16 %v462, %v461
  %v541 = vpack.c.b16 %v464, %v463
  %v542 = vpack.c.b16 %v466, %v465
  %v543 = vpack.c.b16 %v468, %v467
  %v544 = vpack.c.b16 %v470, %v469
  %v545 = vpack.c.b16 %v472, %v471
  %v546 = vpack.c.b16 %v474, %v473
  %v547 = vpack.c.b16 %v476, %v475
  %v548 = vpack.c.b16 %v478, %v477
  %v549 = vpack.c.b16 %v480, %v479
  %v550 = vpack.c.b16 %v482, %v481
  %v551 = vpack.c.b16 %v484, %v483
  %v552 = vpack.c.b16 %v486, %v485
  %v553 = vpack.c.b16 %v488, %v487
  %v554 = vpack.c.b16 %v490, %v489
  %619 = vmatpush.bf16.msra.mxu0 %v498
  %620 = vmatpush.bf16.msra.mxu0 %v497
  %621 = vmatpush.bf16.msra.mxu0 %v496
  %622 = vmatpush.bf16.msra.mxu0 %v495
  %623 = vmatpush.bf16.msra.mxu0 %v494
  %624 = vmatpush.bf16.msra.mxu0 %v493
  %625 = vmatpush.bf16.msra.mxu0 %v492
  %626 = vmatpush.bf16.msra.mxu0 %v491
  %627 = vmatmul.bf16.gmra.mxu0 %v203
  %v628 = vpop.f32.mrf.mxu0
  %v629 = vadd.f32 0.0, %v628
  %v630 = vpop.f32.mrf.mxu0
  %v631 = vadd.f32 0.0, %v630
  %632 = vmatmul.bf16.gmra.mxu0 %v211
  %v633 = vpop.f32.mrf.mxu0
  %v634 = vadd.f32 0.0, %v633
  %v635 = vpop.f32.mrf.mxu0
  %v636 = vadd.f32 0.0, %v635
  %637 = vdwg.mxu0
  %638 = vmatpush.bf16.msra.mxu0 %v506
  %639 = vmatpush.bf16.msra.mxu0 %v505
  %640 = vmatpush.bf16.msra.mxu0 %v504
  %641 = vmatpush.bf16.msra.mxu0 %v503
  %642 = vmatpush.bf16.msra.mxu0 %v502
  %643 = vmatpush.bf16.msra.mxu0 %v501
  %644 = vmatpush.bf16.msra.mxu0 %v500
  %645 = vmatpush.bf16.msra.mxu0 %v499
  %646 = vmatmul.bf16.gmra.mxu0 %v204
  %v647 = vpop.f32.mrf.mxu0
  %v648 = vadd.f32 %v629, %v647
  %v649 = vpop.f32.mrf.mxu0
  %v650 = vadd.f32 %v631, %v649
  %651 = vmatmul.bf16.gmra.mxu0 %v212
  %v652 = vpop.f32.mrf.mxu0
  %v653 = vadd.f32 %v634, %v652
  %v654 = vpop.f32.mrf.mxu0
  %v655 = vadd.f32 %v636, %v654
  %656 = vdwg.mxu0
  %657 = vmatpush.bf16.msra.mxu0 %v514
  %658 = vmatpush.bf16.msra.mxu0 %v513
  %659 = vmatpush.bf16.msra.mxu0 %v512
  %660 = vmatpush.bf16.msra.mxu0 %v511
  %661 = vmatpush.bf16.msra.mxu0 %v510
  %662 = vmatpush.bf16.msra.mxu0 %v509
  %663 = vmatpush.bf16.msra.mxu0 %v508
  %664 = vmatpush.bf16.msra.mxu0 %v507
  %665 = vmatmul.bf16.gmra.mxu0 %v205
  %v666 = vpop.f32.mrf.mxu0
  %v667 = vadd.f32 %v648, %v666
  %v668 = vpop.f32.mrf.mxu0
  %v669 = vadd.f32 %v650, %v668
  %670 = vmatmul.bf16.gmra.mxu0 %v213
  %v671 = vpop.f32.mrf.mxu0
  %v672 = vadd.f32 %v653, %v671
  %v673 = vpop.f32.mrf.mxu0
  %v674 = vadd.f32 %v655, %v673
  %675 = vdwg.mxu0
  %676 = vmatpush.bf16.msra.mxu0 %v522
  %677 = vmatpush.bf16.msra.mxu0 %v521
  %678 = vmatpush.bf16.msra.mxu0 %v520
  %679 = vmatpush.bf16.msra.mxu0 %v519
  %680 = vmatpush.bf16.msra.mxu0 %v518
  %681 = vmatpush.bf16.msra.mxu0 %v517
  %682 = vmatpush.bf16.msra.mxu0 %v516
  %683 = vmatpush.bf16.msra.mxu0 %v515
  %684 = vmatmul.bf16.gmra.mxu0 %v206
  %v685 = vpop.f32.mrf.mxu0
  %v686 = vadd.f32 %v667, %v685
  %v687 = vpop.f32.mrf.mxu0
  %v688 = vadd.f32 %v669, %v687
  %689 = vmatmul.bf16.gmra.mxu0 %v214
  %v690 = vpop.f32.mrf.mxu0
  %v691 = vadd.f32 %v672, %v690
  %v692 = vpop.f32.mrf.mxu0
  %v693 = vadd.f32 %v674, %v692
  %694 = vdwg.mxu0
  %695 = vmatpush.bf16.msra.mxu0 %v530
  %696 = vmatpush.bf16.msra.mxu0 %v529
  %697 = vmatpush.bf16.msra.mxu0 %v528
  %698 = vmatpush.bf16.msra.mxu0 %v527
  %699 = vmatpush.bf16.msra.mxu0 %v526
  %700 = vmatpush.bf16.msra.mxu0 %v525
  %701 = vmatpush.bf16.msra.mxu0 %v524
  %702 = vmatpush.bf16.msra.mxu0 %v523
  %703 = vmatmul.bf16.gmra.mxu0 %v207
  %v704 = vpop.f32.mrf.mxu0
  %v705 = vadd.f32 %v686, %v704
  %v706 = vpop.f32.mrf.mxu0
  %v707 = vadd.f32 %v688, %v706
  %708 = vmatmul.bf16.gmra.mxu0 %v215
  %v709 = vpop.f32.mrf.mxu0
  %v710 = vadd.f32 %v691, %v709
  %v711 = vpop.f32.mrf.mxu0
  %v712 = vadd.f32 %v693, %v711
  %713 = vdwg.mxu0
  %714 = vmatpush.bf16.msra.mxu0 %v538
  %715 = vmatpush.bf16.msra.mxu0 %v537
  %716 = vmatpush.bf16.msra.mxu0 %v536
  %717 = vmatpush.bf16.msra.mxu0 %v535
  %718 = vmatpush.bf16.msra.mxu0 %v534
  %719 = vmatpush.bf16.msra.mxu0 %v533
  %720 = vmatpush.bf16.msra.mxu0 %v532
  %721 = vmatpush.bf16.msra.mxu0 %v531
  %722 = vmatmul.bf16.gmra.mxu0 %v208
  %v723 = vpop.f32.mrf.mxu0
  %v724 = vadd.f32 %v705, %v723
  %v725 = vpop.f32.mrf.mxu0
  %v726 = vadd.f32 %v707, %v725
  %727 = vmatmul.bf16.gmra.mxu0 %v216
  %v728 = vpop.f32.mrf.mxu0
  %v729 = vadd.f32 %v710, %v728
  %v730 = vpop.f32.mrf.mxu0
  %v731 = vadd.f32 %v712, %v730
  %732 = vdwg.mxu0
  %733 = vmatpush.bf16.msra.mxu0 %v546
  %734 = vmatpush.bf16.msra.mxu0 %v545
  %735 = vmatpush.bf16.msra.mxu0 %v544
  %736 = vmatpush.bf16.msra.mxu0 %v543
  %737 = vmatpush.bf16.msra.mxu0 %v542
  %738 = vmatpush.bf16.msra.mxu0 %v541
  %739 = vmatpush.bf16.msra.mxu0 %v540
  %740 = vmatpush.bf16.msra.mxu0 %v539
  %741 = vmatmul.bf16.gmra.mxu0 %v209
  %v742 = vpop.f32.mrf.mxu0
  %v743 = vadd.f32 %v724, %v742
  %v744 = vpop.f32.mrf.mxu0
  %v745 = vadd.f32 %v726, %v744
  %746 = vmatmul.bf16.gmra.mxu0 %v217
  %v747 = vpop.f32.mrf.mxu0
  %v748 = vadd.f32 %v729, %v747
  %v749 = vpop.f32.mrf.mxu0
  %v750 = vadd.f32 %v731, %v749
  %751 = vdwg.mxu0
  %752 = vmatpush.bf16.msra.mxu0 %v554
  %753 = vmatpush.bf16.msra.mxu0 %v553
  %754 = vmatpush.bf16.msra.mxu0 %v552
  %755 = vmatpush.bf16.msra.mxu0 %v551
  %756 = vmatpush.bf16.msra.mxu0 %v550
  %757 = vmatpush.bf16.msra.mxu0 %v549
  %758 = vmatpush.bf16.msra.mxu0 %v548
  %759 = vmatpush.bf16.msra.mxu0 %v547
  %760 = vmatmul.bf16.gmra.mxu0 %v210
  %v761 = vpop.f32.mrf.mxu0
  %v762 = vadd.f32 %v743, %v761
  %v763 = vpop.f32.mrf.mxu0
  %v764 = vadd.f32 %v745, %v763
  %765 = vmatmul.bf16.gmra.mxu0 %v218
  %v766 = vpop.f32.mrf.mxu0
  %v767 = vadd.f32 %v748, %v766
  %v768 = vpop.f32.mrf.mxu0
  %v769 = vadd.f32 %v750, %v768
  %770 = vdwg.mxu0
  %771 = vst [vmem:[%s2] sm:$0xff] %v762
  %772 = vst [vmem:[%s2 + $0x8] sm:$0xff] %v764
  %773 = vst [vmem:[%s2 + $0x10] sm:$0xff] %v767
  %774 = vst [vmem:[%s2 + $0x18] sm:$0xff] %v769
  // Predicated region
  $region10: #{generator_forward.11} parent=0 // pred_check
    _
  $region11: #{generator_forward.11} parent=0 // pred_check_branch
    %776 = sbr.rel (0) target = $region13
  $region12: #{generator_forward.11} parent=0 // pred_region
    _
  $region13: #{generator_forward.11} parent=0 // pred_fallthru
    _
  // Predicated region
  $region14: #{generator_forward.11} parent=0 // pred_check
    _
  $region15: #{generator_forward.11} parent=0 // pred_check_branch
    %778 = sbr.rel (0) target = $region17
  $region16: #{generator_forward.11} parent=0 // pred_region
    _
  $region17: #{generator_forward.11} parent=0 // pred_fallthru
    _

// kernel: generator_forward.12
$region0: #{generator_forward.12}
  #allocation0 [shape = 'u32[]', space=smem, size = 0x4, offset = 0x4, fixed_abs, tag = 'smem constant byte address 0x4 - core index']
  #allocation1 [shape = 'u32[72,128]{1,0:T(1,128)}', space=vmem, size = 0x9000, scoped, tag = 'internal scratch']
  %s0 = inlined_call_operand.vmem [shape: f32[32,128], index: 0, kind: input, shape index: {}]
  %s1 = inlined_call_operand.vmem [shape: f32[32,1], index: 1, kind: input, shape index: {}]
  %s2 = inlined_call_operand.vmem [shape: f32[32,1], index: 2, kind: input, shape index: {}]
  %s3 = inlined_call_operand.vmem [shape: f32[32,128], index: 3, kind: output, shape index: {}]
  %s4 = sld [smem:[#allocation0]]
  $region45: #{generator_forward.12} parent=0
    _
  %s6 = ssub.s32 1, %s4
  %s7 = scalar_select 0, %s6, %s4
  loop: start=0, step=1, limit=6
  $region2: #{generator_forward.12} parent=0 // loop_pre_header
    _
  $region3: #{generator_forward.12} parent=0 // loop_header
    %s9 = sphi 0, %s13
    %p10 = scmp.ge.s32.totalorder %s9, 6
    %s19 = sphi 0, %s21
    %s22 = sphi 0, %s19
    %s23 = sphi 0, %s22
    %s39 = sphi 0, %s23
    %s45 = sphi 0, %s47
    %s48 = sphi 0, %s45
    %s49 = sphi 0, %s48
    %s65 = sphi 0, %s49
    %s71 = sphi 0, %s73
    %s74 = sphi 0, %s71
    %s75 = sphi 0, %s74
    %s91 = sphi 0, %s75
    %s97 = sphi 0, %s99
    %s100 = sphi 0, %s97
    %s101 = sphi 0, %s100
    %s117 = sphi 0, %s101
  $region4: #{generator_forward.12} parent=0 // loop_header_branch
    %12 = sbr.rel (%p10) target = $region8
  $region5: #{generator_forward.12} parent=0 // loop_body
    %s14 = ssub.s32 %s9, 1
    %s15 = ssub.s32 %s9, 2
    %s16 = sadd.s32 %s9, 1
    %s17 = ssub.s32 %s9, %s16
    %p18 = scmp.eq.s32.totalorder %s17, 0
    %s20 = sadd.s32 %s19, 1
    %s21 = scalar_select %p18, %s19, %s20
    %p24 = pneg %p18
    %p25 = scmp.eq.s32.totalorder %s9, 3
    %p26 = por %p24, %p25
    %p27 = scmp.ne.s32.totalorder %s19, %s22
    %p28 = scmp.eq.s32.totalorder %s9, 0
    %p29 = por %p27, %p28
    %p30 = scmp.ne.s32.totalorder %s19, %s22
    %p31 = scmp.eq.s32.totalorder %s14, 3
    %p32 = por %p30, %p31
    %p33 = scmp.ne.s32.totalorder %s22, %s23
    %p34 = scmp.eq.s32.totalorder %s14, 0
    %p35 = por %p33, %p34
    %p36 = scmp.ne.s32.totalorder %s22, %s23
    %p37 = scmp.eq.s32.totalorder %s15, 3
    %p38 = por %p36, %p37
    %p40 = scmp.ne.s32.totalorder %s23, %s39
    %p41 = scmp.eq.s32.totalorder %s15, 0
    %p42 = por %p40, %p41
    %s43 = ssub.s32 %s9, %s16
    %p44 = scmp.eq.s32.totalorder %s43, 0
    %s46 = sadd.s32 %s45, 1
    %s47 = scalar_select %p44, %s45, %s46
    %p50 = pneg %p44
    %p51 = scmp.eq.s32.totalorder %s9, 3
    %p52 = por %p50, %p51
    %p53 = scmp.ne.s32.totalorder %s45, %s48
    %p54 = scmp.eq.s32.totalorder %s9, 0
    %p55 = por %p53, %p54
    %p56 = scmp.ne.s32.totalorder %s45, %s48
    %p57 = scmp.eq.s32.totalorder %s14, 3
    %p58 = por %p56, %p57
    %p59 = scmp.ne.s32.totalorder %s48, %s49
    %p60 = scmp.eq.s32.totalorder %s14, 0
    %p61 = por %p59, %p60
    %p62 = scmp.ne.s32.totalorder %s48, %s49
    %p63 = scmp.eq.s32.totalorder %s15, 3
    %p64 = por %p62, %p63
    %p66 = scmp.ne.s32.totalorder %s49, %s65
    %p67 = scmp.eq.s32.totalorder %s15, 0
    %p68 = por %p66, %p67
    %s69 = ssub.s32 %s9, %s16
    %p70 = scmp.eq.s32.totalorder %s69, 0
    %s72 = sadd.s32 %s71, 1
    %s73 = scalar_select %p70, %s71, %s72
    %p76 = pneg %p70
    %p77 = scmp.eq.s32.totalorder %s9, 3
    %p78 = por %p76, %p77
    %p79 = scmp.ne.s32.totalorder %s71, %s74
    %p80 = scmp.eq.s32.totalorder %s9, 0
    %p81 = por %p79, %p80
    %p82 = scmp.ne.s32.totalorder %s71, %s74
    %p83 = scmp.eq.s32.totalorder %s14, 3
    %p84 = por %p82, %p83
    %p85 = scmp.ne.s32.totalorder %s74, %s75
    %p86 = scmp.eq.s32.totalorder %s14, 0
    %p87 = por %p85, %p86
    %p88 = scmp.ne.s32.totalorder %s74, %s75
    %p89 = scmp.eq.s32.totalorder %s15, 3
    %p90 = por %p88, %p89
    %p92 = scmp.ne.s32.totalorder %s75, %s91
    %p93 = scmp.eq.s32.totalorder %s15, 0
    %p94 = por %p92, %p93
    %s95 = ssub.s32 %s9, %s16
    %p96 = scmp.eq.s32.totalorder %s95, 0
    %s98 = sadd.s32 %s97, 1
    %s99 = scalar_select %p96, %s97, %s98
    %p102 = pneg %p96
    %p103 = scmp.eq.s32.totalorder %s9, 3
    %p104 = por %p102, %p103
    %p105 = scmp.ne.s32.totalorder %s97, %s100
    %p106 = scmp.eq.s32.totalorder %s9, 0
    %p107 = por %p105, %p106
    %p108 = scmp.ne.s32.totalorder %s97, %s100
    %p109 = scmp.eq.s32.totalorder %s14, 3
    %p110 = por %p108, %p109
    %p111 = scmp.ne.s32.totalorder %s100, %s101
    %p112 = scmp.eq.s32.totalorder %s14, 0
    %p113 = por %p111, %p112
    %p114 = scmp.ne.s32.totalorder %s100, %s101
    %p115 = scmp.eq.s32.totalorder %s15, 3
    %p116 = por %p114, %p115
    %p118 = scmp.ne.s32.totalorder %s101, %s117
    %p119 = scmp.eq.s32.totalorder %s15, 0
    %p120 = por %p118, %p119
    %p121 = scmp.le.s32.totalorder 1, %s9
    %p122 = scmp.lt.s32.totalorder %s9, 5
    %p123 = pnand %p121, %p122
    %p124 = pneg %p123
    // Predicated region
    $region9: #{generator_forward.12} parent=5 // pred_check
      _
    $region10: #{generator_forward.12} parent=5 // pred_check_branch
      %126 = sbr.rel (%p123) target = $region12
    $region11: #{generator_forward.12} parent=5 // pred_region
      %s127 = ssub.s32 %s9, 1
    $region12: #{generator_forward.12} parent=5 // pred_fallthru
      _
    %p128 = scmp.lt.s32.totalorder %s9, 4
    // Predicated region
    $region13: #{generator_forward.12} parent=5 // pred_check
      %p129 = pneg %p128
    $region14: #{generator_forward.12} parent=5 // pred_check_branch
      %131 = sbr.rel (%p129) target = $region16
    $region15: #{generator_forward.12} parent=5 // pred_region
      // Predicated region
      $region17: #{generator_forward.12} parent=15 // pred_check
        %p132 = pneg %p29
      $region18: #{generator_forward.12} parent=15 // pred_check_branch
        %134 = sbr.rel (%p132) target = $region20
      $region19: #{generator_forward.12} parent=15 // pred_region
        %p135 = scmp.lt.s32.totalorder %s9, 3
        %s136 = scalar_select %p135, %s9, 3
        %s137 = smul.addr %s136, 8
        %s138 = scalar_lea.vmem %s0, %s137
      $region20: #{generator_forward.12} parent=15 // pred_fallthru
        _
      // Predicated region
      $region21: #{generator_forward.12} parent=15 // pred_check
        %p139 = pneg %p55
      $region22: #{generator_forward.12} parent=15 // pred_check_branch
        %141 = sbr.rel (%p139) target = $region24
      $region23: #{generator_forward.12} parent=15 // pred_region
        %p142 = scmp.lt.s32.totalorder %s9, 3
        %s143 = scalar_select %p142, %s9, 3
        %s144 = smul.addr %s143, 8
        %s145 = scalar_lea.vmem %s1, %s144
      $region24: #{generator_forward.12} parent=15 // pred_fallthru
        _
      // Predicated region
      $region25: #{generator_forward.12} parent=15 // pred_check
        %p146 = pneg %p81
      $region26: #{generator_forward.12} parent=15 // pred_check_branch
        %148 = sbr.rel (%p146) target = $region28
      $region27: #{generator_forward.12} parent=15 // pred_region
        %p149 = scmp.lt.s32.totalorder %s9, 3
        %s150 = scalar_select %p149, %s9, 3
        %s151 = smul.addr %s150, 8
        %s152 = scalar_lea.vmem %s2, %s151
      $region28: #{generator_forward.12} parent=15 // pred_fallthru
        _
    $region16: #{generator_forward.12} parent=5 // pred_fallthru
      _
    %p153 = scmp.le.s32.totalorder 1, %s9
    %p154 = scmp.lt.s32.totalorder %s9, 5
    %p155 = pnand %p153, %p154
    %p156 = pneg %p155
    // Predicated region
    $region29: #{generator_forward.12} parent=5 // pred_check
      _
    $region30: #{generator_forward.12} parent=5 // pred_check_branch
      %158 = sbr.rel (%p155) target = $region32
    $region31: #{generator_forward.12} parent=5 // pred_region
      %s159 = ssub.s32 %s9, 1
      %p160 = scmp.lt.s32.totalorder %s14, 3
      %s161 = scalar_select %p160, %s14, 3
      %s162 = smul.addr %s161, 8
      %s163 = scalar_lea.vmem %s0, %s162
      %p164 = pneg %p35
      %p165 = pneg %p32
      %p166 = scmp.lt.s32.totalorder %s14, 3
      %s167 = scalar_select %p166, %s14, 3
      %s168 = smul.addr %s167, 8
      %s169 = scalar_lea.vmem %s1, %s168
      %p170 = pneg %p61
      %p171 = pneg %p58
      %p172 = scmp.lt.s32.totalorder %s14, 3
      %s173 = scalar_select %p172, %s14, 3
      %s174 = smul.addr %s173, 8
      %s175 = scalar_lea.vmem %s2, %s174
      %p176 = pneg %p87
      %p177 = pneg %p84
      %p178 = pneg %p113
      %p179 = pneg %p110
      %p180 = scmp.lt.s32.totalorder %s14, 3
      %s181 = scalar_select %p180, %s14, 3
      %s182 = smul.addr %s181, 8
      %s183 = scalar_lea.vmem %s3, %s182
      %p184 = scmp.lt.s32.totalorder %s14, 3
      %s185 = scalar_select %p184, %s14, 3
      %s186 = smul.addr %s185, 8
      %s187 = scalar_lea.vmem %s0, %s186
      %p188 = scmp.lt.s32.totalorder %s14, 3
      %s189 = scalar_select %p188, %s14, 3
      %s190 = smul.addr %s189, 8
      %s191 = scalar_lea.vmem %s1, %s190
      %p192 = scmp.lt.s32.totalorder %s14, 3
      %s193 = scalar_select %p192, %s14, 3
      %s194 = smul.addr %s193, 8
      %s195 = scalar_lea.vmem %s2, %s194
      %p196 = scmp.lt.s32.totalorder %s14, 3
      %s197 = scalar_select %p196, %s14, 3
      %s198 = smul.addr %s197, 8
      %s199 = scalar_lea.vmem %s3, %s198
      %v200 = vld [vmem:[%s187] sm:$0xff]
      %201 = vadd.xlane.f32.xlu0 %v200
      %v202 = vpop.xlane.xlu0 %201
      %v203 = vrcp.pop 128.0
      %v204 = vmul.f32 128.0, %v203
      %v205 = vsub.f32 1.0, %v204
      %v206 = vmul.f32 %v203, %v205
      %v207 = vadd.f32 %v203, %v206
      %vm208 = vweird.f32 %v203
      %v209 = vsel %vm208, %v203, %v207
      %v210 = vmul.f32 %v202, %v209
      %v211 = vsub.f32 %v200, %v210
      %v212 = vmul.f32 %v211, %v211
      %213 = vadd.xlane.f32.xlu0 %v212
      %v214 = vpop.xlane.xlu0 %213
      %v215 = vmul.f32 %v214, %v209
      %v216 = vadd.f32 %v215, 1e-05
      %v217 = vrsqrt.pop %v216
      %v218 = vmul.f32 %v217, %v216
      %v219 = vmul.f32 %v218, %v217
      %v220 = vmul.f32 0.5, %v219
      %v221 = vsub.f32 1.5, %v220
      %v222 = vmul.f32 %v217, %v221
      %vm223 = vweird.f32 %v216
      %vm224 = vweird.f32 %v217
      %vm225 = vmor %vm223, %vm224
      %v226 = vsel %vm225, %v217, %v222
      %v227 = vmul.f32 %v211, %v226
      %v228 = vld [vmem:[%s191] sm:$0xff]
      %230 = vset.pattern.permute.xlu0 0
      %231 = vperm.xlu0 %230, %v228
      %v232 = vpop.permute.xlu0 %231
      %v234 = vmul.f32 %v232, %v227
      %v235 = vld [vmem:[%s195] sm:$0xff]
      %237 = vset.pattern.permute.xlu0 0
      %238 = vperm.xlu0 %237, %v235
      %v239 = vpop.permute.xlu0 %238
      %v241 = vadd.f32 %v234, %v239
      %v242 = vmax.f32 %v241, 0.0
      %243 = vst [vmem:[%s199] sm:$0xff] %v242
      %p244 = scmp.lt.s32.totalorder %s14, 3
      %s245 = scalar_select %p244, %s14, 3
      %s246 = smul.addr %s245, 8
      %s247 = scalar_lea.vmem %s3, %s246
      // Predicated region
      $region33: #{generator_forward.12} parent=31 // pred_check
        %p248 = pneg %p110
      $region34: #{generator_forward.12} parent=31 // pred_check_branch
        %250 = sbr.rel (%p248) target = $region36
      $region35: #{generator_forward.12} parent=31 // pred_region
        _
      $region36: #{generator_forward.12} parent=31 // pred_fallthru
        _
    $region32: #{generator_forward.12} parent=5 // pred_fallthru
      _
    %p251 = scmp.le.s32.totalorder 2, %s9
    // Predicated region
    $region37: #{generator_forward.12} parent=5 // pred_check
      %p252 = pneg %p251
    $region38: #{generator_forward.12} parent=5 // pred_check_branch
      %254 = sbr.rel (%p252) target = $region40
    $region39: #{generator_forward.12} parent=5 // pred_region
      %s255 = ssub.s32 %s9, 2
      // Predicated region
      $region41: #{generator_forward.12} parent=39 // pred_check
        %p256 = pneg %p116
      $region42: #{generator_forward.12} parent=39 // pred_check_branch
        %258 = sbr.rel (%p256) target = $region44
      $region43: #{generator_forward.12} parent=39 // pred_region
        %p259 = scmp.lt.s32.totalorder %s15, 3
        %s260 = scalar_select %p259, %s15, 3
        %s261 = smul.addr %s260, 8
        %s262 = scalar_lea.vmem %s3, %s261
      $region44: #{generator_forward.12} parent=39 // pred_fallthru
        _
    $region40: #{generator_forward.12} parent=5 // pred_fallthru
      _
  $region6: #{generator_forward.12} parent=0 // loop_footer
    %s13 = sadd.s32 1, %s9
  $region7: #{generator_forward.12} parent=0 // loop_footer_branch
    %8 = sbr.rel target = $region3
  $region8: #{generator_forward.12} parent=0 // loop_exit
    _

// kernel: generator_forward.13
$region0: #{generator_forward.13}
  #allocation0 [shape = 'u32[]', space=smem, size = 0x4, offset = 0x4, fixed_abs, tag = 'smem constant byte address 0x4 - core index']
  #allocation1 [shape = 'u32[72,128]{1,0:T(1,128)}', space=vmem, size = 0x9000, scoped, tag = 'internal scratch']
  %s0 = inlined_call_operand.vmem [shape: bf16[16,512], index: 0, kind: input, shape index: {}]
  %s1 = inlined_call_operand.vmem [shape: bf16[512,512], index: 1, kind: input, shape index: {}]
  %s2 = inlined_call_operand.vmem [shape: f32[16,512], index: 2, kind: output, shape index: {}]
  %s3 = sld [smem:[#allocation0]]
  $region18: #{generator_forward.13} parent=0
    _
  %s5 = ssub.s32 1, %s3
  %s6 = scalar_select 0, %s5, %s3
  // Predicated region
  $region2: #{generator_forward.13} parent=0 // pred_check
    _
  $region3: #{generator_forward.13} parent=0 // pred_check_branch
    %8 = sbr.rel (0) target = $region5
  $region4: #{generator_forward.13} parent=0 // pred_region
    _
  $region5: #{generator_forward.13} parent=0 // pred_fallthru
    _
  // Predicated region
  $region6: #{generator_forward.13} parent=0 // pred_check
    _
  $region7: #{generator_forward.13} parent=0 // pred_check_branch
    %10 = sbr.rel (0) target = $region9
  $region8: #{generator_forward.13} parent=0 // pred_region
    _
  $region9: #{generator_forward.13} parent=0 // pred_fallthru
    _
  %v11 = vld [vmem:[%s0] sm:$0xff]
  %v12 = vld [vmem:[%s0 + $0x8] sm:$0xff]
  %v13 = vld [vmem:[%s0 + $0x10] sm:$0xff]
  %v14 = vld [vmem:[%s0 + $0x18] sm:$0xff]
  %v15 = vld [vmem:[%s1] sm:$0xff]
  %v16 = vld [vmem:[%s1 + $0x8] sm:$0xff]
  %v17 = vld [vmem:[%s1 + $0x10] sm:$0xff]
  %v18 = vld [vmem:[%s1 + $0x18] sm:$0xff]
  %v19 = vld [vmem:[%s1 + $0x20] sm:$0xff]
  %v20 = vld [vmem:[%s1 + $0x28] sm:$0xff]
  %v21 = vld [vmem:[%s1 + $0x30] sm:$0xff]
  %v22 = vld [vmem:[%s1 + $0x38] sm:$0xff]
  %v23 = vld [vmem:[%s1 + $0x40] sm:$0xff]
  %v24 = vld [vmem:[%s1 + $0x48] sm:$0xff]
  %v25 = vld [vmem:[%s1 + $0x50] sm:$0xff]
  %v26 = vld [vmem:[%s1 + $0x58] sm:$0xff]
  %v27 = vld [vmem:[%s1 + $0x60] sm:$0xff]
  %v28 = vld [vmem:[%s1 + $0x68] sm:$0xff]
  %v29 = vld [vmem:[%s1 + $0x70] sm:$0xff]
  %v30 = vld [vmem:[%s1 + $0x78] sm:$0xff]
  %v31 = vld [vmem:[%s1 + $0x80] sm:$0xff]
  %v32 = vld [vmem:[%s1 + $0x88] sm:$0xff]
  %v33 = vld [vmem:[%s1 + $0x90] sm:$0xff]
  %v34 = vld [vmem:[%s1 + $0x98] sm:$0xff]
  %v35 = vld [vmem:[%s1 + $0xa0] sm:$0xff]
  %v36 = vld [vmem:[%s1 + $0xa8] sm:$0xff]
  %v37 = vld [vmem:[%s1 + $0xb0] sm:$0xff]
  %v38 = vld [vmem:[%s1 + $0xb8] sm:$0xff]
  %v39 = vld [vmem:[%s1 + $0xc0] sm:$0xff]
  %v40 = vld [vmem:[%s1 + $0xc8] sm:$0xff]
  %v41 = vld [vmem:[%s1 + $0xd0] sm:$0xff]
  %v42 = vld [vmem:[%s1 + $0xd8] sm:$0xff]
  %v43 = vld [vmem:[%s1 + $0xe0] sm:$0xff]
  %v44 = vld [vmem:[%s1 + $0xe8] sm:$0xff]
  %v45 = vld [vmem:[%s1 + $0xf0] sm:$0xff]
  %v46 = vld [vmem:[%s1 + $0xf8] sm:$0xff]
  %v47 = vld [vmem:[%s1 + $0x100] sm:$0xff]
  %v48 = vld [vmem:[%s1 + $0x108] sm:$0xff]
  %v49 = vld [vmem:[%s1 + $0x110] sm:$0xff]
  %v50 = vld [vmem:[%s1 + $0x118] sm:$0xff]
  %v51 = vld [vmem:[%s1 + $0x120] sm:$0xff]
  %v52 = vld [vmem:[%s1 + $0x128] sm:$0xff]
  %v53 = vld [vmem:[%s1 + $0x130] sm:$0xff]
  %v54 = vld [vmem:[%s1 + $0x138] sm:$0xff]
  %v55 = vld [vmem:[%s1 + $0x140] sm:$0xff]
  %v56 = vld [vmem:[%s1 + $0x148] sm:$0xff]
  %v57 = vld [vmem:[%s1 + $0x150] sm:$0xff]
  %v58 = vld [vmem:[%s1 + $0x158] sm:$0xff]
  %v59 = vld [vmem:[%s1 + $0x160] sm:$0xff]
  %v60 = vld [vmem:[%s1 + $0x168] sm:$0xff]
  %v61 = vld [vmem:[%s1 + $0x170] sm:$0xff]
  %v62 = vld [vmem:[%s1 + $0x178] sm:$0xff]
  %v63 = vld [vmem:[%s1 + $0x180] sm:$0xff]
  %v64 = vld [vmem:[%s1 + $0x188] sm:$0xff]
  %v65 = vld [vmem:[%s1 + $0x190] sm:$0xff]
  %v66 = vld [vmem:[%s1 + $0x198] sm:$0xff]
  %v67 = vld [vmem:[%s1 + $0x1a0] sm:$0xff]
  %v68 = vld [vmem:[%s1 + $0x1a8] sm:$0xff]
  %v69 = vld [vmem:[%s1 + $0x1b0] sm:$0xff]
  %v70 = vld [vmem:[%s1 + $0x1b8] sm:$0xff]
  %v71 = vld [vmem:[%s1 + $0x1c0] sm:$0xff]
  %v72 = vld [vmem:[%s1 + $0x1c8] sm:$0xff]
  %v73 = vld [vmem:[%s1 + $0x1d0] sm:$0xff]
  %v74 = vld [vmem:[%s1 + $0x1d8] sm:$0xff]
  %v75 = vld [vmem:[%s1 + $0x1e0] sm:$0xff]
  %v76 = vld [vmem:[%s1 + $0x1e8] sm:$0xff]
  %v77 = vld [vmem:[%s1 + $0x1f0] sm:$0xff]
  %v78 = vld [vmem:[%s1 + $0x1f8] sm:$0xff]
  %v79 = vld [vmem:[%s1 + $0x200] sm:$0xff]
  %v80 = vld [vmem:[%s1 + $0x208] sm:$0xff]
  %v81 = vld [vmem:[%s1 + $0x210] sm:$0xff]
  %v82 = vld [vmem:[%s1 + $0x218] sm:$0xff]
  %v83 = vld [vmem:[%s1 + $0x220] sm:$0xff]
  %v84 = vld [vmem:[%s1 + $0x228] sm:$0xff]
  %v85 = vld [vmem:[%s1 + $0x230] sm:$0xff]
  %v86 = vld [vmem:[%s1 + $0x238] sm:$0xff]
  %v87 = vld [vmem:[%s1 + $0x240] sm:$0xff]
  %v88 = vld [vmem:[%s1 + $0x248] sm:$0xff]
  %v89 = vld [vmem:[%s1 + $0x250] sm:$0xff]
  %v90 = vld [vmem:[%s1 + $0x258] sm:$0xff]
  %v91 = vld [vmem:[%s1 + $0x260] sm:$0xff]
  %v92 = vld [vmem:[%s1 + $0x268] sm:$0xff]
  %v93 = vld [vmem:[%s1 + $0x270] sm:$0xff]
  %v94 = vld [vmem:[%s1 + $0x278] sm:$0xff]
  %v95 = vld [vmem:[%s1 + $0x280] sm:$0xff]
  %v96 = vld [vmem:[%s1 + $0x288] sm:$0xff]
  %v97 = vld [vmem:[%s1 + $0x290] sm:$0xff]
  %v98 = vld [vmem:[%s1 + $0x298] sm:$0xff]
  %v99 = vld [vmem:[%s1 + $0x2a0] sm:$0xff]
  %v100 = vld [vmem:[%s1 + $0x2a8] sm:$0xff]
  %v101 = vld [vmem:[%s1 + $0x2b0] sm:$0xff]
  %v102 = vld [vmem:[%s1 + $0x2b8] sm:$0xff]
  %v103 = vld [vmem:[%s1 + $0x2c0] sm:$0xff]
  %v104 = vld [vmem:[%s1 + $0x2c8] sm:$0xff]
  %v105 = vld [vmem:[%s1 + $0x2d0] sm:$0xff]
  %v106 = vld [vmem:[%s1 + $0x2d8] sm:$0xff]
  %v107 = vld [vmem:[%s1 + $0x2e0] sm:$0xff]
  %v108 = vld [vmem:[%s1 + $0x2e8] sm:$0xff]
  %v109 = vld [vmem:[%s1 + $0x2f0] sm:$0xff]
  %v110 = vld [vmem:[%s1 + $0x2f8] sm:$0xff]
  %v111 = vld [vmem:[%s1 + $0x300] sm:$0xff]
  %v112 = vld [vmem:[%s1 + $0x308] sm:$0xff]
  %v113 = vld [vmem:[%s1 + $0x310] sm:$0xff]
  %v114 = vld [vmem:[%s1 + $0x318] sm:$0xff]
  %v115 = vld [vmem:[%s1 + $0x320] sm:$0xff]
  %v116 = vld [vmem:[%s1 + $0x328] sm:$0xff]
  %v117 = vld [vmem:[%s1 + $0x330] sm:$0xff]
  %v118 = vld [vmem:[%s1 + $0x338] sm:$0xff]
  %v119 = vld [vmem:[%s1 + $0x340] sm:$0xff]
  %v120 = vld [vmem:[%s1 + $0x348] sm:$0xff]
  %v121 = vld [vmem:[%s1 + $0x350] sm:$0xff]
  %v122 = vld [vmem:[%s1 + $0x358] sm:$0xff]
  %v123 = vld [vmem:[%s1 + $0x360] sm:$0xff]
  %v124 = vld [vmem:[%s1 + $0x368] sm:$0xff]
  %v125 = vld [vmem:[%s1 + $0x370] sm:$0xff]
  %v126 = vld [vmem:[%s1 + $0x378] sm:$0xff]
  %v127 = vld [vmem:[%s1 + $0x380] sm:$0xff]
  %v128 = vld [vmem:[%s1 + $0x388] sm:$0xff]
  %v129 = vld [vmem:[%s1 + $0x390] sm:$0xff]
  %v130 = vld [vmem:[%s1 + $0x398] sm:$0xff]
  %v131 = vld [vmem:[%s1 + $0x3a0] sm:$0xff]
  %v132 = vld [vmem:[%s1 + $0x3a8] sm:$0xff]
  %v133 = vld [vmem:[%s1 + $0x3b0] sm:$0xff]
  %v134 = vld [vmem:[%s1 + $0x3b8] sm:$0xff]
  %v135 = vld [vmem:[%s1 + $0x3c0] sm:$0xff]
  %v136 = vld [vmem:[%s1 + $0x3c8] sm:$0xff]
  %v137 = vld [vmem:[%s1 + $0x3d0] sm:$0xff]
  %v138 = vld [vmem:[%s1 + $0x3d8] sm:$0xff]
  %v139 = vld [vmem:[%s1 + $0x3e0] sm:$0xff]
  %v140 = vld [vmem:[%s1 + $0x3e8] sm:$0xff]
  %v141 = vld [vmem:[%s1 + $0x3f0] sm:$0xff]
  %v142 = vld [vmem:[%s1 + $0x3f8] sm:$0xff]
  %v147 = vunpack.c.l.b16 %v11
  %v148 = vunpack.c.h.b16 %v11
  %v149 = vunpack.c.l.b16 %v12
  %v150 = vunpack.c.h.b16 %v12
  %v151 = vunpack.c.l.b16 %v13
  %v152 = vunpack.c.h.b16 %v13
  %v153 = vunpack.c.l.b16 %v14
  %v154 = vunpack.c.h.b16 %v14
  %v155 = vpack.c.b16 %v151, %v147
  %v156 = vpack.c.b16 %v152, %v148
  %v157 = vpack.c.b16 %v153, %v149
  %v158 = vpack.c.b16 %v154, %v150
  %v291 = vunpack.c.l.b16 %v15
  %v292 = vunpack.c.h.b16 %v15
  %v293 = vunpack.c.l.b16 %v16
  %v294 = vunpack.c.h.b16 %v16
  %v295 = vunpack.c.l.b16 %v17
  %v296 = vunpack.c.h.b16 %v17
  %v297 = vunpack.c.l.b16 %v18
  %v298 = vunpack.c.h.b16 %v18
  %v299 = vunpack.c.l.b16 %v19
  %v300 = vunpack.c.h.b16 %v19
  %v301 = vunpack.c.l.b16 %v20
  %v302 = vunpack.c.h.b16 %v20
  %v303 = vunpack.c.l.b16 %v21
  %v304 = vunpack.c.h.b16 %v21
  %v305 = vunpack.c.l.b16 %v22
  %v306 = vunpack.c.h.b16 %v22
  %v307 = vunpack.c.l.b16 %v23
  %v308 = vunpack.c.h.b16 %v23
  %v309 = vunpack.c.l.b16 %v24
  %v310 = vunpack.c.h.b16 %v24
  %v311 = vunpack.c.l.b16 %v25
  %v312 = vunpack.c.h.b16 %v25
  %v313 = vunpack.c.l.b16 %v26
  %v314 = vunpack.c.h.b16 %v26
  %v315 = vunpack.c.l.b16 %v27
  %v316 = vunpack.c.h.b16 %v27
  %v317 = vunpack.c.l.b16 %v28
  %v318 = vunpack.c.h.b16 %v28
  %v319 = vunpack.c.l.b16 %v29
  %v320 = vunpack.c.h.b16 %v29
  %v321 = vunpack.c.l.b16 %v30
  %v322 = vunpack.c.h.b16 %v30
  %v323 = vunpack.c.l.b16 %v31
  %v324 = vunpack.c.h.b16 %v31
  %v325 = vunpack.c.l.b16 %v32
  %v326 = vunpack.c.h.b16 %v32
  %v327 = vunpack.c.l.b16 %v33
  %v328 = vunpack.c.h.b16 %v33
  %v329 = vunpack.c.l.b16 %v34
  %v330 = vunpack.c.h.b16 %v34
  %v331 = vunpack.c.l.b16 %v35
  %v332 = vunpack.c.h.b16 %v35
  %v333 = vunpack.c.l.b16 %v36
  %v334 = vunpack.c.h.b16 %v36
  %v335 = vunpack.c.l.b16 %v37
  %v336 = vunpack.c.h.b16 %v37
  %v337 = vunpack.c.l.b16 %v38
  %v338 = vunpack.c.h.b16 %v38
  %v339 = vunpack.c.l.b16 %v39
  %v340 = vunpack.c.h.b16 %v39
  %v341 = vunpack.c.l.b16 %v40
  %v342 = vunpack.c.h.b16 %v40
  %v343 = vunpack.c.l.b16 %v41
  %v344 = vunpack.c.h.b16 %v41
  %v345 = vunpack.c.l.b16 %v42
  %v346 = vunpack.c.h.b16 %v42
  %v347 = vunpack.c.l.b16 %v43
  %v348 = vunpack.c.h.b16 %v43
  %v349 = vunpack.c.l.b16 %v44
  %v350 = vunpack.c.h.b16 %v44
  %v351 = vunpack.c.l.b16 %v45
  %v352 = vunpack.c.h.b16 %v45
  %v353 = vunpack.c.l.b16 %v46
  %v354 = vunpack.c.h.b16 %v46
  %v355 = vunpack.c.l.b16 %v47
  %v356 = vunpack.c.h.b16 %v47
  %v357 = vunpack.c.l.b16 %v48
  %v358 = vunpack.c.h.b16 %v48
  %v359 = vunpack.c.l.b16 %v49
  %v360 = vunpack.c.h.b16 %v49
  %v361 = vunpack.c.l.b16 %v50
  %v362 = vunpack.c.h.b16 %v50
  %v363 = vunpack.c.l.b16 %v51
  %v364 = vunpack.c.h.b16 %v51
  %v365 = vunpack.c.l.b16 %v52
  %v366 = vunpack.c.h.b16 %v52
  %v367 = vunpack.c.l.b16 %v53
  %v368 = vunpack.c.h.b16 %v53
  %v369 = vunpack.c.l.b16 %v54
  %v370 = vunpack.c.h.b16 %v54
  %v371 = vunpack.c.l.b16 %v55
  %v372 = vunpack.c.h.b16 %v55
  %v373 = vunpack.c.l.b16 %v56
  %v374 = vunpack.c.h.b16 %v56
  %v375 = vunpack.c.l.b16 %v57
  %v376 = vunpack.c.h.b16 %v57
  %v377 = vunpack.c.l.b16 %v58
  %v378 = vunpack.c.h.b16 %v58
  %v379 = vunpack.c.l.b16 %v59
  %v380 = vunpack.c.h.b16 %v59
  %v381 = vunpack.c.l.b16 %v60
  %v382 = vunpack.c.h.b16 %v60
  %v383 = vunpack.c.l.b16 %v61
  %v384 = vunpack.c.h.b16 %v61
  %v385 = vunpack.c.l.b16 %v62
  %v386 = vunpack.c.h.b16 %v62
  %v387 = vunpack.c.l.b16 %v63
  %v388 = vunpack.c.h.b16 %v63
  %v389 = vunpack.c.l.b16 %v64
  %v390 = vunpack.c.h.b16 %v64
  %v391 = vunpack.c.l.b16 %v65
  %v392 = vunpack.c.h.b16 %v65
  %v393 = vunpack.c.l.b16 %v66
  %v394 = vunpack.c.h.b16 %v66
  %v395 = vunpack.c.l.b16 %v67
  %v396 = vunpack.c.h.b16 %v67
  %v397 = vunpack.c.l.b16 %v68
  %v398 = vunpack.c.h.b16 %v68
  %v399 = vunpack.c.l.b16 %v69
  %v400 = vunpack.c.h.b16 %v69
  %v401 = vunpack.c.l.b16 %v70
  %v402 = vunpack.c.h.b16 %v70
  %v403 = vunpack.c.l.b16 %v71
  %v404 = vunpack.c.h.b16 %v71
  %v405 = vunpack.c.l.b16 %v72
  %v406 = vunpack.c.h.b16 %v72
  %v407 = vunpack.c.l.b16 %v73
  %v408 = vunpack.c.h.b16 %v73
  %v409 = vunpack.c.l.b16 %v74
  %v410 = vunpack.c.h.b16 %v74
  %v411 = vunpack.c.l.b16 %v75
  %v412 = vunpack.c.h.b16 %v75
  %v413 = vunpack.c.l.b16 %v76
  %v414 = vunpack.c.h.b16 %v76
  %v415 = vunpack.c.l.b16 %v77
  %v416 = vunpack.c.h.b16 %v77
  %v417 = vunpack.c.l.b16 %v78
  %v418 = vunpack.c.h.b16 %v78
  %v419 = vunpack.c.l.b16 %v79
  %v420 = vunpack.c.h.b16 %v79
  %v421 = vunpack.c.l.b16 %v80
  %v422 = vunpack.c.h.b16 %v80
  %v423 = vunpack.c.l.b16 %v81
  %v424 = vunpack.c.h.b16 %v81
  %v425 = vunpack.c.l.b16 %v82
  %v426 = vunpack.c.h.b16 %v82
  %v427 = vunpack.c.l.b16 %v83
  %v428 = vunpack.c.h.b16 %v83
  %v429 = vunpack.c.l.b16 %v84
  %v430 = vunpack.c.h.b16 %v84
  %v431 = vunpack.c.l.b16 %v85
  %v432 = vunpack.c.h.b16 %v85
  %v433 = vunpack.c.l.b16 %v86
  %v434 = vunpack.c.h.b16 %v86
  %v435 = vunpack.c.l.b16 %v87
  %v436 = vunpack.c.h.b16 %v87
  %v437 = vunpack.c.l.b16 %v88
  %v438 = vunpack.c.h.b16 %v88
  %v439 = vunpack.c.l.b16 %v89
  %v440 = vunpack.c.h.b16 %v89
  %v441 = vunpack.c.l.b16 %v90
  %v442 = vunpack.c.h.b16 %v90
  %v443 = vunpack.c.l.b16 %v91
  %v444 = vunpack.c.h.b16 %v91
  %v445 = vunpack.c.l.b16 %v92
  %v446 = vunpack.c.h.b16 %v92
  %v447 = vunpack.c.l.b16 %v93
  %v448 = vunpack.c.h.b16 %v93
  %v449 = vunpack.c.l.b16 %v94
  %v450 = vunpack.c.h.b16 %v94
  %v451 = vunpack.c.l.b16 %v95
  %v452 = vunpack.c.h.b16 %v95
  %v453 = vunpack.c.l.b16 %v96
  %v454 = vunpack.c.h.b16 %v96
  %v455 = vunpack.c.l.b16 %v97
  %v456 = vunpack.c.h.b16 %v97
  %v457 = vunpack.c.l.b16 %v98
  %v458 = vunpack.c.h.b16 %v98
  %v459 = vunpack.c.l.b16 %v99
  %v460 = vunpack.c.h.b16 %v99
  %v461 = vunpack.c.l.b16 %v100
  %v462 = vunpack.c.h.b16 %v100
  %v463 = vunpack.c.l.b16 %v101
  %v464 = vunpack.c.h.b16 %v101
  %v465 = vunpack.c.l.b16 %v102
  %v466 = vunpack.c.h.b16 %v102
  %v467 = vunpack.c.l.b16 %v103
  %v468 = vunpack.c.h.b16 %v103
  %v469 = vunpack.c.l.b16 %v104
  %v470 = vunpack.c.h.b16 %v104
  %v471 = vunpack.c.l.b16 %v105
  %v472 = vunpack.c.h.b16 %v105
  %v473 = vunpack.c.l.b16 %v106
  %v474 = vunpack.c.h.b16 %v106
  %v475 = vunpack.c.l.b16 %v107
  %v476 = vunpack.c.h.b16 %v107
  %v477 = vunpack.c.l.b16 %v108
  %v478 = vunpack.c.h.b16 %v108
  %v479 = vunpack.c.l.b16 %v109
  %v480 = vunpack.c.h.b16 %v109
  %v481 = vunpack.c.l.b16 %v110
  %v482 = vunpack.c.h.b16 %v110
  %v483 = vunpack.c.l.b16 %v111
  %v484 = vunpack.c.h.b16 %v111
  %v485 = vunpack.c.l.b16 %v112
  %v486 = vunpack.c.h.b16 %v112
  %v487 = vunpack.c.l.b16 %v113
  %v488 = vunpack.c.h.b16 %v113
  %v489 = vunpack.c.l.b16 %v114
  %v490 = vunpack.c.h.b16 %v114
  %v491 = vunpack.c.l.b16 %v115
  %v492 = vunpack.c.h.b16 %v115
  %v493 = vunpack.c.l.b16 %v116
  %v494 = vunpack.c.h.b16 %v116
  %v495 = vunpack.c.l.b16 %v117
  %v496 = vunpack.c.h.b16 %v117
  %v497 = vunpack.c.l.b16 %v118
  %v498 = vunpack.c.h.b16 %v118
  %v499 = vunpack.c.l.b16 %v119
  %v500 = vunpack.c.h.b16 %v119
  %v501 = vunpack.c.l.b16 %v120
  %v502 = vunpack.c.h.b16 %v120
  %v503 = vunpack.c.l.b16 %v121
  %v504 = vunpack.c.h.b16 %v121
  %v505 = vunpack.c.l.b16 %v122
  %v506 = vunpack.c.h.b16 %v122
  %v507 = vunpack.c.l.b16 %v123
  %v508 = vunpack.c.h.b16 %v123
  %v509 = vunpack.c.l.b16 %v124
  %v510 = vunpack.c.h.b16 %v124
  %v511 = vunpack.c.l.b16 %v125
  %v512 = vunpack.c.h.b16 %v125
  %v513 = vunpack.c.l.b16 %v126
  %v514 = vunpack.c.h.b16 %v126
  %v515 = vunpack.c.l.b16 %v127
  %v516 = vunpack.c.h.b16 %v127
  %v517 = vunpack.c.l.b16 %v128
  %v518 = vunpack.c.h.b16 %v128
  %v519 = vunpack.c.l.b16 %v129
  %v520 = vunpack.c.h.b16 %v129
  %v521 = vunpack.c.l.b16 %v130
  %v522 = vunpack.c.h.b16 %v130
  %v523 = vunpack.c.l.b16 %v131
  %v524 = vunpack.c.h.b16 %v131
  %v525 = vunpack.c.l.b16 %v132
  %v526 = vunpack.c.h.b16 %v132
  %v527 = vunpack.c.l.b16 %v133
  %v528 = vunpack.c.h.b16 %v133
  %v529 = vunpack.c.l.b16 %v134
  %v530 = vunpack.c.h.b16 %v134
  %v531 = vunpack.c.l.b16 %v135
  %v532 = vunpack.c.h.b16 %v135
  %v533 = vunpack.c.l.b16 %v136
  %v534 = vunpack.c.h.b16 %v136
  %v535 = vunpack.c.l.b16 %v137
  %v536 = vunpack.c.h.b16 %v137
  %v537 = vunpack.c.l.b16 %v138
  %v538 = vunpack.c.h.b16 %v138
  %v539 = vunpack.c.l.b16 %v139
  %v540 = vunpack.c.h.b16 %v139
  %v541 = vunpack.c.l.b16 %v140
  %v542 = vunpack.c.h.b16 %v140
  %v543 = vunpack.c.l.b16 %v141
  %v544 = vunpack.c.h.b16 %v141
  %v545 = vunpack.c.l.b16 %v142
  %v546 = vunpack.c.h.b16 %v142
  %v547 = vpack.c.b16 %v295, %v291
  %v548 = vpack.c.b16 %v296, %v292
  %v549 = vpack.c.b16 %v297, %v293
  %v550 = vpack.c.b16 %v298, %v294
  %v551 = vpack.c.b16 %v303, %v299
  %v552 = vpack.c.b16 %v304, %v300
  %v553 = vpack.c.b16 %v305, %v301
  %v554 = vpack.c.b16 %v306, %v302
  %v555 = vpack.c.b16 %v311, %v307
  %v556 = vpack.c.b16 %v312, %v308
  %v557 = vpack.c.b16 %v313, %v309
  %v558 = vpack.c.b16 %v314, %v310
  %v559 = vpack.c.b16 %v319, %v315
  %v560 = vpack.c.b16 %v320, %v316
  %v561 = vpack.c.b16 %v321, %v317
  %v562 = vpack.c.b16 %v322, %v318
  %v563 = vpack.c.b16 %v327, %v323
  %v564 = vpack.c.b16 %v328, %v324
  %v565 = vpack.c.b16 %v329, %v325
  %v566 = vpack.c.b16 %v330, %v326
  %v567 = vpack.c.b16 %v335, %v331
  %v568 = vpack.c.b16 %v336, %v332
  %v569 = vpack.c.b16 %v337, %v333
  %v570 = vpack.c.b16 %v338, %v334
  %v571 = vpack.c.b16 %v343, %v339
  %v572 = vpack.c.b16 %v344, %v340
  %v573 = vpack.c.b16 %v345, %v341
  %v574 = vpack.c.b16 %v346, %v342
  %v575 = vpack.c.b16 %v351, %v347
  %v576 = vpack.c.b16 %v352, %v348
  %v577 = vpack.c.b16 %v353, %v349
  %v578 = vpack.c.b16 %v354, %v350
  %v579 = vpack.c.b16 %v359, %v355
  %v580 = vpack.c.b16 %v360, %v356
  %v581 = vpack.c.b16 %v361, %v357
  %v582 = vpack.c.b16 %v362, %v358
  %v583 = vpack.c.b16 %v367, %v363
  %v584 = vpack.c.b16 %v368, %v364
  %v585 = vpack.c.b16 %v369, %v365
  %v586 = vpack.c.b16 %v370, %v366
  %v587 = vpack.c.b16 %v375, %v371
  %v588 = vpack.c.b16 %v376, %v372
  %v589 = vpack.c.b16 %v377, %v373
  %v590 = vpack.c.b16 %v378, %v374
  %v591 = vpack.c.b16 %v383, %v379
  %v592 = vpack.c.b16 %v384, %v380
  %v593 = vpack.c.b16 %v385, %v381
  %v594 = vpack.c.b16 %v386, %v382
  %v595 = vpack.c.b16 %v391, %v387
  %v596 = vpack.c.b16 %v392, %v388
  %v597 = vpack.c.b16 %v393, %v389
  %v598 = vpack.c.b16 %v394, %v390
  %v599 = vpack.c.b16 %v399, %v395
  %v600 = vpack.c.b16 %v400, %v396
  %v601 = vpack.c.b16 %v401, %v397
  %v602 = vpack.c.b16 %v402, %v398
  %v603 = vpack.c.b16 %v407, %v403
  %v604 = vpack.c.b16 %v408, %v404
  %v605 = vpack.c.b16 %v409, %v405
  %v606 = vpack.c.b16 %v410, %v406
  %v607 = vpack.c.b16 %v415, %v411
  %v608 = vpack.c.b16 %v416, %v412
  %v609 = vpack.c.b16 %v417, %v413
  %v610 = vpack.c.b16 %v418, %v414
  %v611 = vpack.c.b16 %v423, %v419
  %v612 = vpack.c.b16 %v424, %v420
  %v613 = vpack.c.b16 %v425, %v421
  %v614 = vpack.c.b16 %v426, %v422
  %v615 = vpack.c.b16 %v431, %v427
  %v616 = vpack.c.b16 %v432, %v428
  %v617 = vpack.c.b16 %v433, %v429
  %v618 = vpack.c.b16 %v434, %v430
  %v619 = vpack.c.b16 %v439, %v435
  %v620 = vpack.c.b16 %v440, %v436
  %v621 = vpack.c.b16 %v441, %v437
  %v622 = vpack.c.b16 %v442, %v438
  %v623 = vpack.c.b16 %v447, %v443
  %v624 = vpack.c.b16 %v448, %v444
  %v625 = vpack.c.b16 %v449, %v445
  %v626 = vpack.c.b16 %v450, %v446
  %v627 = vpack.c.b16 %v455, %v451
  %v628 = vpack.c.b16 %v456, %v452
  %v629 = vpack.c.b16 %v457, %v453
  %v630 = vpack.c.b16 %v458, %v454
  %v631 = vpack.c.b16 %v463, %v459
  %v632 = vpack.c.b16 %v464, %v460
  %v633 = vpack.c.b16 %v465, %v461
  %v634 = vpack.c.b16 %v466, %v462
  %v635 = vpack.c.b16 %v471, %v467
  %v636 = vpack.c.b16 %v472, %v468
  %v637 = vpack.c.b16 %v473, %v469
  %v638 = vpack.c.b16 %v474, %v470
  %v639 = vpack.c.b16 %v479, %v475
  %v640 = vpack.c.b16 %v480, %v476
  %v641 = vpack.c.b16 %v481, %v477
  %v642 = vpack.c.b16 %v482, %v478
  %v643 = vpack.c.b16 %v487, %v483
  %v644 = vpack.c.b16 %v488, %v484
  %v645 = vpack.c.b16 %v489, %v485
  %v646 = vpack.c.b16 %v490, %v486
  %v647 = vpack.c.b16 %v495, %v491
  %v648 = vpack.c.b16 %v496, %v492
  %v649 = vpack.c.b16 %v497, %v493
  %v650 = vpack.c.b16 %v498, %v494
  %v651 = vpack.c.b16 %v503, %v499
  %v652 = vpack.c.b16 %v504, %v500
  %v653 = vpack.c.b16 %v505, %v501
  %v654 = vpack.c.b16 %v506, %v502
  %v655 = vpack.c.b16 %v511, %v507
  %v656 = vpack.c.b16 %v512, %v508
  %v657 = vpack.c.b16 %v513, %v509
  %v658 = vpack.c.b16 %v514, %v510
  %v659 = vpack.c.b16 %v519, %v515
  %v660 = vpack.c.b16 %v520, %v516
  %v661 = vpack.c.b16 %v521, %v517
  %v662 = vpack.c.b16 %v522, %v518
  %v663 = vpack.c.b16 %v527, %v523
  %v664 = vpack.c.b16 %v528, %v524
  %v665 = vpack.c.b16 %v529, %v525
  %v666 = vpack.c.b16 %v530, %v526
  %v667 = vpack.c.b16 %v535, %v531
  %v668 = vpack.c.b16 %v536, %v532
  %v669 = vpack.c.b16 %v537, %v533
  %v670 = vpack.c.b16 %v538, %v534
  %v671 = vpack.c.b16 %v543, %v539
  %v672 = vpack.c.b16 %v544, %v540
  %v673 = vpack.c.b16 %v545, %v541
  %v674 = vpack.c.b16 %v546, %v542
  %803 = vmatpush.bf16.msra.mxu0 %v575
  %804 = vmatpush.bf16.msra.mxu0 %v571
  %805 = vmatpush.bf16.msra.mxu0 %v567
  %806 = vmatpush.bf16.msra.mxu0 %v563
  %807 = vmatpush.bf16.msra.mxu0 %v559
  %808 = vmatpush.bf16.msra.mxu0 %v555
  %809 = vmatpush.bf16.msra.mxu0 %v551
  %810 = vmatpush.bf16.msra.mxu0 %v547
  %811 = vmatmul.bf16.gmra.mxu0 %v155
  %v812 = vpop.f32.mrf.mxu0
  %v813 = vadd.f32 0.0, %v812
  %v814 = vpop.f32.mrf.mxu0
  %v815 = vadd.f32 0.0, %v814
  %816 = vdwg.mxu0
  %817 = vmatpush.bf16.msra.mxu0 %v607
  %818 = vmatpush.bf16.msra.mxu0 %v603
  %819 = vmatpush.bf16.msra.mxu0 %v599
  %820 = vmatpush.bf16.msra.mxu0 %v595
  %821 = vmatpush.bf16.msra.mxu0 %v591
  %822 = vmatpush.bf16.msra.mxu0 %v587
  %823 = vmatpush.bf16.msra.mxu0 %v583
  %824 = vmatpush.bf16.msra.mxu0 %v579
  %825 = vmatmul.bf16.gmra.mxu0 %v156
  %v826 = vpop.f32.mrf.mxu0
  %v827 = vadd.f32 %v813, %v826
  %v828 = vpop.f32.mrf.mxu0
  %v829 = vadd.f32 %v815, %v828
  %830 = vdwg.mxu0
  %831 = vmatpush.bf16.msra.mxu0 %v639
  %832 = vmatpush.bf16.msra.mxu0 %v635
  %833 = vmatpush.bf16.msra.mxu0 %v631
  %834 = vmatpush.bf16.msra.mxu0 %v627
  %835 = vmatpush.bf16.msra.mxu0 %v623
  %836 = vmatpush.bf16.msra.mxu0 %v619
  %837 = vmatpush.bf16.msra.mxu0 %v615
  %838 = vmatpush.bf16.msra.mxu0 %v611
  %839 = vmatmul.bf16.gmra.mxu0 %v157
  %v840 = vpop.f32.mrf.mxu0
  %v841 = vadd.f32 %v827, %v840
  %v842 = vpop.f32.mrf.mxu0
  %v843 = vadd.f32 %v829, %v842
  %844 = vdwg.mxu0
  %845 = vmatpush.bf16.msra.mxu0 %v671
  %846 = vmatpush.bf16.msra.mxu0 %v667
  %847 = vmatpush.bf16.msra.mxu0 %v663
  %848 = vmatpush.bf16.msra.mxu0 %v659
  %849 = vmatpush.bf16.msra.mxu0 %v655
  %850 = vmatpush.bf16.msra.mxu0 %v651
  %851 = vmatpush.bf16.msra.mxu0 %v647
  %852 = vmatpush.bf16.msra.mxu0 %v643
  %853 = vmatmul.bf16.gmra.mxu0 %v158
  %v854 = vpop.f32.mrf.mxu0
  %v855 = vadd.f32 %v841, %v854
  %v856 = vpop.f32.mrf.mxu0
  %v857 = vadd.f32 %v843, %v856
  %858 = vdwg.mxu0
  %859 = vmatpush.bf16.msra.mxu0 %v576
  %860 = vmatpush.bf16.msra.mxu0 %v572
  %861 = vmatpush.bf16.msra.mxu0 %v568
  %862 = vmatpush.bf16.msra.mxu0 %v564
  %863 = vmatpush.bf16.msra.mxu0 %v560
  %864 = vmatpush.bf16.msra.mxu0 %v556
  %865 = vmatpush.bf16.msra.mxu0 %v552
  %866 = vmatpush.bf16.msra.mxu0 %v548
  %867 = vmatmul.bf16.gmra.mxu0 %v155
  %v868 = vpop.f32.mrf.mxu0
  %v869 = vadd.f32 0.0, %v868
  %v870 = vpop.f32.mrf.mxu0
  %v871 = vadd.f32 0.0, %v870
  %872 = vdwg.mxu0
  %873 = vmatpush.bf16.msra.mxu0 %v608
  %874 = vmatpush.bf16.msra.mxu0 %v604
  %875 = vmatpush.bf16.msra.mxu0 %v600
  %876 = vmatpush.bf16.msra.mxu0 %v596
  %877 = vmatpush.bf16.msra.mxu0 %v592
  %878 = vmatpush.bf16.msra.mxu0 %v588
  %879 = vmatpush.bf16.msra.mxu0 %v584
  %880 = vmatpush.bf16.msra.mxu0 %v580
  %881 = vmatmul.bf16.gmra.mxu0 %v156
  %v882 = vpop.f32.mrf.mxu0
  %v883 = vadd.f32 %v869, %v882
  %v884 = vpop.f32.mrf.mxu0
  %v885 = vadd.f32 %v871, %v884
  %886 = vdwg.mxu0
  %887 = vmatpush.bf16.msra.mxu0 %v640
  %888 = vmatpush.bf16.msra.mxu0 %v636
  %889 = vmatpush.bf16.msra.mxu0 %v632
  %890 = vmatpush.bf16.msra.mxu0 %v628
  %891 = vmatpush.bf16.msra.mxu0 %v624
  %892 = vmatpush.bf16.msra.mxu0 %v620
  %893 = vmatpush.bf16.msra.mxu0 %v616
  %894 = vmatpush.bf16.msra.mxu0 %v612
  %895 = vmatmul.bf16.gmra.mxu0 %v157
  %v896 = vpop.f32.mrf.mxu0
  %v897 = vadd.f32 %v883, %v896
  %v898 = vpop.f32.mrf.mxu0
  %v899 = vadd.f32 %v885, %v898
  %900 = vdwg.mxu0
  %901 = vmatpush.bf16.msra.mxu0 %v672
  %902 = vmatpush.bf16.msra.mxu0 %v668
  %903 = vmatpush.bf16.msra.mxu0 %v664
  %904 = vmatpush.bf16.msra.mxu0 %v660
  %905 = vmatpush.bf16.msra.mxu0 %v656
  %906 = vmatpush.bf16.msra.mxu0 %v652
  %907 = vmatpush.bf16.msra.mxu0 %v648
  %908 = vmatpush.bf16.msra.mxu0 %v644
  %909 = vmatmul.bf16.gmra.mxu0 %v158
  %v910 = vpop.f32.mrf.mxu0
  %v911 = vadd.f32 %v897, %v910
  %v912 = vpop.f32.mrf.mxu0
  %v913 = vadd.f32 %v899, %v912
  %914 = vdwg.mxu0
  %915 = vmatpush.bf16.msra.mxu0 %v577
  %916 = vmatpush.bf16.msra.mxu0 %v573
  %917 = vmatpush.bf16.msra.mxu0 %v569
  %918 = vmatpush.bf16.msra.mxu0 %v565
  %919 = vmatpush.bf16.msra.mxu0 %v561
  %920 = vmatpush.bf16.msra.mxu0 %v557
  %921 = vmatpush.bf16.msra.mxu0 %v553
  %922 = vmatpush.bf16.msra.mxu0 %v549
  %923 = vmatmul.bf16.gmra.mxu0 %v155
  %v924 = vpop.f32.mrf.mxu0
  %v925 = vadd.f32 0.0, %v924
  %v926 = vpop.f32.mrf.mxu0
  %v927 = vadd.f32 0.0, %v926
  %928 = vdwg.mxu0
  %929 = vmatpush.bf16.msra.mxu0 %v609
  %930 = vmatpush.bf16.msra.mxu0 %v605
  %931 = vmatpush.bf16.msra.mxu0 %v601
  %932 = vmatpush.bf16.msra.mxu0 %v597
  %933 = vmatpush.bf16.msra.mxu0 %v593
  %934 = vmatpush.bf16.msra.mxu0 %v589
  %935 = vmatpush.bf16.msra.mxu0 %v585
  %936 = vmatpush.bf16.msra.mxu0 %v581
  %937 = vmatmul.bf16.gmra.mxu0 %v156
  %v938 = vpop.f32.mrf.mxu0
  %v939 = vadd.f32 %v925, %v938
  %v940 = vpop.f32.mrf.mxu0
  %v941 = vadd.f32 %v927, %v940
  %942 = vdwg.mxu0
  %943 = vmatpush.bf16.msra.mxu0 %v641
  %944 = vmatpush.bf16.msra.mxu0 %v637
  %945 = vmatpush.bf16.msra.mxu0 %v633
  %946 = vmatpush.bf16.msra.mxu0 %v629
  %947 = vmatpush.bf16.msra.mxu0 %v625
  %948 = vmatpush.bf16.msra.mxu0 %v621
  %949 = vmatpush.bf16.msra.mxu0 %v617
  %950 = vmatpush.bf16.msra.mxu0 %v613
  %951 = vmatmul.bf16.gmra.mxu0 %v157
  %v952 = vpop.f32.mrf.mxu0
  %v953 = vadd.f32 %v939, %v952
  %v954 = vpop.f32.mrf.mxu0
  %v955 = vadd.f32 %v941, %v954
  %956 = vdwg.mxu0
  %957 = vmatpush.bf16.msra.mxu0 %v673
  %958 = vmatpush.bf16.msra.mxu0 %v669
  %959 = vmatpush.bf16.msra.mxu0 %v665
  %960 = vmatpush.bf16.msra.mxu0 %v661
  %961 = vmatpush.bf16.msra.mxu0 %v657
  %962 = vmatpush.bf16.msra.mxu0 %v653
  %963 = vmatpush.bf16.msra.mxu0 %v649
  %964 = vmatpush.bf16.msra.mxu0 %v645
  %965 = vmatmul.bf16.gmra.mxu0 %v158
  %v966 = vpop.f32.mrf.mxu0
  %v967 = vadd.f32 %v953, %v966
  %v968 = vpop.f32.mrf.mxu0
  %v969 = vadd.f32 %v955, %v968
  %970 = vdwg.mxu0
  %971 = vmatpush.bf16.msra.mxu0 %v578
  %972 = vmatpush.bf16.msra.mxu0 %v574
  %973 = vmatpush.bf16.msra.mxu0 %v570
  %974 = vmatpush.bf16.msra.mxu0 %v566
  %975 = vmatpush.bf16.msra.mxu0 %v562
  %976 = vmatpush.bf16.msra.mxu0 %v558
  %977 = vmatpush.bf16.msra.mxu0 %v554
  %978 = vmatpush.bf16.msra.mxu0 %v550
  %979 = vmatmul.bf16.gmra.mxu0 %v155
  %v980 = vpop.f32.mrf.mxu0
  %v981 = vadd.f32 0.0, %v980
  %v982 = vpop.f32.mrf.mxu0
  %v983 = vadd.f32 0.0, %v982
  %984 = vdwg.mxu0
  %985 = vmatpush.bf16.msra.mxu0 %v610
  %986 = vmatpush.bf16.msra.mxu0 %v606
  %987 = vmatpush.bf16.msra.mxu0 %v602
  %988 = vmatpush.bf16.msra.mxu0 %v598
  %989 = vmatpush.bf16.msra.mxu0 %v594
  %990 = vmatpush.bf16.msra.mxu0 %v590
  %991 = vmatpush.bf16.msra.mxu0 %v586
  %992 = vmatpush.bf16.msra.mxu0 %v582
  %993 = vmatmul.bf16.gmra.mxu0 %v156
  %v994 = vpop.f32.mrf.mxu0
  %v995 = vadd.f32 %v981, %v994
  %v996 = vpop.f32.mrf.mxu0
  %v997 = vadd.f32 %v983, %v996
  %998 = vdwg.mxu0
  %999 = vmatpush.bf16.msra.mxu0 %v642
  %1000 = vmatpush.bf16.msra.mxu0 %v638
  %1001 = vmatpush.bf16.msra.mxu0 %v634
  %1002 = vmatpush.bf16.msra.mxu0 %v630
  %1003 = vmatpush.bf16.msra.mxu0 %v626
  %1004 = vmatpush.bf16.msra.mxu0 %v622
  %1005 = vmatpush.bf16.msra.mxu0 %v618
  %1006 = vmatpush.bf16.msra.mxu0 %v614
  %1007 = vmatmul.bf16.gmra.mxu0 %v157
  %v1008 = vpop.f32.mrf.mxu0
  %v1009 = vadd.f32 %v995, %v1008
  %v1010 = vpop.f32.mrf.mxu0
  %v1011 = vadd.f32 %v997, %v1010
  %1012 = vdwg.mxu0
  %1013 = vmatpush.bf16.msra.mxu0 %v674
  %1014 = vmatpush.bf16.msra.mxu0 %v670
  %1015 = vmatpush.bf16.msra.mxu0 %v666
  %1016 = vmatpush.bf16.msra.mxu0 %v662
  %1017 = vmatpush.bf16.msra.mxu0 %v658
  %1018 = vmatpush.bf16.msra.mxu0 %v654
  %1019 = vmatpush.bf16.msra.mxu0 %v650
  %1020 = vmatpush.bf16.msra.mxu0 %v646
  %1021 = vmatmul.bf16.gmra.mxu0 %v158
  %v1022 = vpop.f32.mrf.mxu0
  %v1023 = vadd.f32 %v1009, %v1022
  %v1024 = vpop.f32.mrf.mxu0
  %v1025 = vadd.f32 %v1011, %v1024
  %1026 = vdwg.mxu0
  %1027 = vst [vmem:[%s2] sm:$0xff] %v855
  %1028 = vst [vmem:[%s2 + $0x8] sm:$0xff] %v911
  %1029 = vst [vmem:[%s2 + $0x10] sm:$0xff] %v967
  %1030 = vst [vmem:[%s2 + $0x18] sm:$0xff] %v1023
  %1031 = vst [vmem:[%s2 + $0x20] sm:$0xff] %v857
  %1032 = vst [vmem:[%s2 + $0x28] sm:$0xff] %v913
  %1033 = vst [vmem:[%s2 + $0x30] sm:$0xff] %v969
  %1034 = vst [vmem:[%s2 + $0x38] sm:$0xff] %v1025
  // Predicated region
  $region10: #{generator_forward.13} parent=0 // pred_check
    _
  $region11: #{generator_forward.13} parent=0 // pred_check_branch
    %1036 = sbr.rel (0) target = $region13
  $region12: #{generator_forward.13} parent=0 // pred_region
    _
  $region13: #{generator_forward.13} parent=0 // pred_fallthru
    _
  // Predicated region
  $region14: #{generator_forward.13} parent=0 // pred_check
    _
  $region15: #{generator_forward.13} parent=0 // pred_check_branch
    %1038 = sbr.rel (0) target = $region17
  $region16: #{generator_forward.13} parent=0 // pred_region
    _
  $region17: #{generator_forward.13} parent=0 // pred_fallthru
    _

// kernel: generator_forward.14
$region0: #{generator_forward.14}
  #allocation0 [shape = 'u32[]', space=smem, size = 0x4, offset = 0x4, fixed_abs, tag = 'smem constant byte address 0x4 - core index']
  #allocation1 [shape = 'u32[72,128]{1,0:T(1,128)}', space=vmem, size = 0x9000, scoped, tag = 'internal scratch']
  %s0 = inlined_call_operand.vmem [shape: f32[16,512], index: 0, kind: input, shape index: {}]
  %s1 = inlined_call_operand.vmem [shape: f32[16,1], index: 1, kind: input, shape index: {}]
  %s2 = inlined_call_operand.vmem [shape: f32[16,1], index: 2, kind: input, shape index: {}]
  %s3 = inlined_call_operand.vmem [shape: f32[16,512], index: 3, kind: output, shape index: {}]
  %s4 = sld [smem:[#allocation0]]
  $region45: #{generator_forward.14} parent=0
    _
  %s6 = ssub.s32 1, %s4
  %s7 = scalar_select 0, %s6, %s4
  loop: start=0, step=1, limit=4
  $region2: #{generator_forward.14} parent=0 // loop_pre_header
    _
  $region3: #{generator_forward.14} parent=0 // loop_header
    %s9 = sphi 0, %s13
    %p10 = scmp.ge.s32.totalorder %s9, 4
    %s19 = sphi 0, %s21
    %s22 = sphi 0, %s19
    %s23 = sphi 0, %s22
    %s39 = sphi 0, %s23
    %s45 = sphi 0, %s47
    %s48 = sphi 0, %s45
    %s49 = sphi 0, %s48
    %s65 = sphi 0, %s49
    %s71 = sphi 0, %s73
    %s74 = sphi 0, %s71
    %s75 = sphi 0, %s74
    %s91 = sphi 0, %s75
    %s97 = sphi 0, %s99
    %s100 = sphi 0, %s97
    %s101 = sphi 0, %s100
    %s117 = sphi 0, %s101
  $region4: #{generator_forward.14} parent=0 // loop_header_branch
    %12 = sbr.rel (%p10) target = $region8
  $region5: #{generator_forward.14} parent=0 // loop_body
    %s14 = ssub.s32 %s9, 1
    %s15 = ssub.s32 %s9, 2
    %s16 = sadd.s32 %s9, 1
    %s17 = ssub.s32 %s9, %s16
    %p18 = scmp.eq.s32.totalorder %s17, 0
    %s20 = sadd.s32 %s19, 1
    %s21 = scalar_select %p18, %s19, %s20
    %p24 = pneg %p18
    %p25 = scmp.eq.s32.totalorder %s9, 1
    %p26 = por %p24, %p25
    %p27 = scmp.ne.s32.totalorder %s19, %s22
    %p28 = scmp.eq.s32.totalorder %s9, 0
    %p29 = por %p27, %p28
    %p30 = scmp.ne.s32.totalorder %s19, %s22
    %p31 = scmp.eq.s32.totalorder %s14, 1
    %p32 = por %p30, %p31
    %p33 = scmp.ne.s32.totalorder %s22, %s23
    %p34 = scmp.eq.s32.totalorder %s14, 0
    %p35 = por %p33, %p34
    %p36 = scmp.ne.s32.totalorder %s22, %s23
    %p37 = scmp.eq.s32.totalorder %s15, 1
    %p38 = por %p36, %p37
    %p40 = scmp.ne.s32.totalorder %s23, %s39
    %p41 = scmp.eq.s32.totalorder %s15, 0
    %p42 = por %p40, %p41
    %s43 = ssub.s32 %s9, %s16
    %p44 = scmp.eq.s32.totalorder %s43, 0
    %s46 = sadd.s32 %s45, 1
    %s47 = scalar_select %p44, %s45, %s46
    %p50 = pneg %p44
    %p51 = scmp.eq.s32.totalorder %s9, 1
    %p52 = por %p50, %p51
    %p53 = scmp.ne.s32.totalorder %s45, %s48
    %p54 = scmp.eq.s32.totalorder %s9, 0
    %p55 = por %p53, %p54
    %p56 = scmp.ne.s32.totalorder %s45, %s48
    %p57 = scmp.eq.s32.totalorder %s14, 1
    %p58 = por %p56, %p57
    %p59 = scmp.ne.s32.totalorder %s48, %s49
    %p60 = scmp.eq.s32.totalorder %s14, 0
    %p61 = por %p59, %p60
    %p62 = scmp.ne.s32.totalorder %s48, %s49
    %p63 = scmp.eq.s32.totalorder %s15, 1
    %p64 = por %p62, %p63
    %p66 = scmp.ne.s32.totalorder %s49, %s65
    %p67 = scmp.eq.s32.totalorder %s15, 0
    %p68 = por %p66, %p67
    %s69 = ssub.s32 %s9, %s16
    %p70 = scmp.eq.s32.totalorder %s69, 0
    %s72 = sadd.s32 %s71, 1
    %s73 = scalar_select %p70, %s71, %s72
    %p76 = pneg %p70
    %p77 = scmp.eq.s32.totalorder %s9, 1
    %p78 = por %p76, %p77
    %p79 = scmp.ne.s32.totalorder %s71, %s74
    %p80 = scmp.eq.s32.totalorder %s9, 0
    %p81 = por %p79, %p80
    %p82 = scmp.ne.s32.totalorder %s71, %s74
    %p83 = scmp.eq.s32.totalorder %s14, 1
    %p84 = por %p82, %p83
    %p85 = scmp.ne.s32.totalorder %s74, %s75
    %p86 = scmp.eq.s32.totalorder %s14, 0
    %p87 = por %p85, %p86
    %p88 = scmp.ne.s32.totalorder %s74, %s75
    %p89 = scmp.eq.s32.totalorder %s15, 1
    %p90 = por %p88, %p89
    %p92 = scmp.ne.s32.totalorder %s75, %s91
    %p93 = scmp.eq.s32.totalorder %s15, 0
    %p94 = por %p92, %p93
    %s95 = ssub.s32 %s9, %s16
    %p96 = scmp.eq.s32.totalorder %s95, 0
    %s98 = sadd.s32 %s97, 1
    %s99 = scalar_select %p96, %s97, %s98
    %p102 = pneg %p96
    %p103 = scmp.eq.s32.totalorder %s9, 1
    %p104 = por %p102, %p103
    %p105 = scmp.ne.s32.totalorder %s97, %s100
    %p106 = scmp.eq.s32.totalorder %s9, 0
    %p107 = por %p105, %p106
    %p108 = scmp.ne.s32.totalorder %s97, %s100
    %p109 = scmp.eq.s32.totalorder %s14, 1
    %p110 = por %p108, %p109
    %p111 = scmp.ne.s32.totalorder %s100, %s101
    %p112 = scmp.eq.s32.totalorder %s14, 0
    %p113 = por %p111, %p112
    %p114 = scmp.ne.s32.totalorder %s100, %s101
    %p115 = scmp.eq.s32.totalorder %s15, 1
    %p116 = por %p114, %p115
    %p118 = scmp.ne.s32.totalorder %s101, %s117
    %p119 = scmp.eq.s32.totalorder %s15, 0
    %p120 = por %p118, %p119
    %p121 = scmp.le.s32.totalorder 1, %s9
    %p122 = scmp.lt.s32.totalorder %s9, 3
    %p123 = pnand %p121, %p122
    %p124 = pneg %p123
    // Predicated region
    $region9: #{generator_forward.14} parent=5 // pred_check
      _
    $region10: #{generator_forward.14} parent=5 // pred_check_branch
      %126 = sbr.rel (%p123) target = $region12
    $region11: #{generator_forward.14} parent=5 // pred_region
      %s127 = ssub.s32 %s9, 1
    $region12: #{generator_forward.14} parent=5 // pred_fallthru
      _
    %p128 = scmp.lt.s32.totalorder %s9, 2
    // Predicated region
    $region13: #{generator_forward.14} parent=5 // pred_check
      %p129 = pneg %p128
    $region14: #{generator_forward.14} parent=5 // pred_check_branch
      %131 = sbr.rel (%p129) target = $region16
    $region15: #{generator_forward.14} parent=5 // pred_region
      // Predicated region
      $region17: #{generator_forward.14} parent=15 // pred_check
        %p132 = pneg %p29
      $region18: #{generator_forward.14} parent=15 // pred_check_branch
        %134 = sbr.rel (%p132) target = $region20
      $region19: #{generator_forward.14} parent=15 // pred_region
        %p135 = scmp.lt.s32.totalorder %s9, 1
        %s136 = scalar_select %p135, %s9, 1
        %s137 = smul.addr %s136, 4
        %s138 = smul.addr %s137, 8
        %s139 = scalar_lea.vmem %s0, %s138
      $region20: #{generator_forward.14} parent=15 // pred_fallthru
        _
      // Predicated region
      $region21: #{generator_forward.14} parent=15 // pred_check
        %p140 = pneg %p55
      $region22: #{generator_forward.14} parent=15 // pred_check_branch
        %142 = sbr.rel (%p140) target = $region24
      $region23: #{generator_forward.14} parent=15 // pred_region
        %p143 = scmp.lt.s32.totalorder %s9, 1
        %s144 = scalar_select %p143, %s9, 1
        %s145 = smul.addr %s144, 8
        %s146 = scalar_lea.vmem %s1, %s145
      $region24: #{generator_forward.14} parent=15 // pred_fallthru
        _
      // Predicated region
      $region25: #{generator_forward.14} parent=15 // pred_check
        %p147 = pneg %p81
      $region26: #{generator_forward.14} parent=15 // pred_check_branch
        %149 = sbr.rel (%p147) target = $region28
      $region27: #{generator_forward.14} parent=15 // pred_region
        %p150 = scmp.lt.s32.totalorder %s9, 1
        %s151 = scalar_select %p150, %s9, 1
        %s152 = smul.addr %s151, 8
        %s153 = scalar_lea.vmem %s2, %s152
      $region28: #{generator_forward.14} parent=15 // pred_fallthru
        _
    $region16: #{generator_forward.14} parent=5 // pred_fallthru
      _
    %p154 = scmp.le.s32.totalorder 1, %s9
    %p155 = scmp.lt.s32.totalorder %s9, 3
    %p156 = pnand %p154, %p155
    %p157 = pneg %p156
    // Predicated region
    $region29: #{generator_forward.14} parent=5 // pred_check
      _
    $region30: #{generator_forward.14} parent=5 // pred_check_branch
      %159 = sbr.rel (%p156) target = $region32
    $region31: #{generator_forward.14} parent=5 // pred_region
      %s160 = ssub.s32 %s9, 1
      %p161 = scmp.lt.s32.totalorder %s14, 1
      %s162 = scalar_select %p161, %s14, 1
      %s163 = smul.addr %s162, 4
      %s164 = smul.addr %s163, 8
      %s165 = scalar_lea.vmem %s0, %s164
      %p166 = pneg %p35
      %p167 = pneg %p32
      %p168 = scmp.lt.s32.totalorder %s14, 1
      %s169 = scalar_select %p168, %s14, 1
      %s170 = smul.addr %s169, 8
      %s171 = scalar_lea.vmem %s1, %s170
      %p172 = pneg %p61
      %p173 = pneg %p58
      %p174 = scmp.lt.s32.totalorder %s14, 1
      %s175 = scalar_select %p174, %s14, 1
      %s176 = smul.addr %s175, 8
      %s177 = scalar_lea.vmem %s2, %s176
      %p178 = pneg %p87
      %p179 = pneg %p84
      %p180 = pneg %p113
      %p181 = pneg %p110
      %p182 = scmp.lt.s32.totalorder %s14, 1
      %s183 = scalar_select %p182, %s14, 1
      %s184 = smul.addr %s183, 4
      %s185 = smul.addr %s184, 8
      %s186 = scalar_lea.vmem %s3, %s185
      %p187 = scmp.lt.s32.totalorder %s14, 1
      %s188 = scalar_select %p187, %s14, 1
      %s189 = smul.addr %s188, 4
      %s190 = smul.addr %s189, 8
      %s191 = scalar_lea.vmem %s0, %s190
      %p192 = scmp.lt.s32.totalorder %s14, 1
      %s193 = scalar_select %p192, %s14, 1
      %s194 = smul.addr %s193, 8
      %s195 = scalar_lea.vmem %s1, %s194
      %p196 = scmp.lt.s32.totalorder %s14, 1
      %s197 = scalar_select %p196, %s14, 1
      %s198 = smul.addr %s197, 8
      %s199 = scalar_lea.vmem %s2, %s198
      %p200 = scmp.lt.s32.totalorder %s14, 1
      %s201 = scalar_select %p200, %s14, 1
      %s202 = smul.addr %s201, 4
      %s203 = smul.addr %s202, 8
      %s204 = scalar_lea.vmem %s3, %s203
      %v205 = vld [vmem:[%s191] sm:$0xff]
      %v206 = vld [vmem:[%s191 + $0x8] sm:$0xff]
      %v207 = vld [vmem:[%s191 + $0x10] sm:$0xff]
      %v208 = vld [vmem:[%s191 + $0x18] sm:$0xff]
      %v209 = vadd.f32 %v205, %v206
      %v210 = vadd.f32 %v209, %v207
      %v211 = vadd.f32 %v210, %v208
      %212 = vadd.xlane.f32.xlu0 %v211
      %v213 = vpop.xlane.xlu0 %212
      %v214 = vrcp.pop 512.0
      %v215 = vmul.f32 512.0, %v214
      %v216 = vsub.f32 1.0, %v215
      %v217 = vmul.f32 %v214, %v216
      %v218 = vadd.f32 %v214, %v217
      %vm219 = vweird.f32 %v214
      %v220 = vsel %vm219, %v214, %v218
      %v221 = vmul.f32 %v213, %v220
      %v222 = vsub.f32 %v205, %v221
      %v223 = vsub.f32 %v206, %v221
      %v224 = vsub.f32 %v207, %v221
      %v225 = vsub.f32 %v208, %v221
      %v226 = vmul.f32 %v222, %v222
      %v227 = vmul.f32 %v223, %v223
      %v228 = vmul.f32 %v224, %v224
      %v229 = vmul.f32 %v225, %v225
      %v230 = vadd.f32 %v226, %v227
      %v231 = vadd.f32 %v230, %v228
      %v232 = vadd.f32 %v231, %v229
      %233 = vadd.xlane.f32.xlu0 %v232
      %v234 = vpop.xlane.xlu0 %233
      %v235 = vmul.f32 %v234, %v220
      %v236 = vadd.f32 %v235, 1e-05
      %v237 = vrsqrt.pop %v236
      %v238 = vmul.f32 %v237, %v236
      %v239 = vmul.f32 %v238, %v237
      %v240 = vmul.f32 0.5, %v239
      %v241 = vsub.f32 1.5, %v240
      %v242 = vmul.f32 %v237, %v241
      %vm243 = vweird.f32 %v236
      %vm244 = vweird.f32 %v237
      %vm245 = vmor %vm243, %vm244
      %v246 = vsel %vm245, %v237, %v242
      %v247 = vmul.f32 %v222, %v246
      %v248 = vmul.f32 %v223, %v246
      %v249 = vmul.f32 %v224, %v246
      %v250 = vmul.f32 %v225, %v246
      %v251 = vld [vmem:[%s195] sm:$0xff]
      %253 = vset.pattern.permute.xlu0 0
      %254 = vperm.xlu0 %253, %v251
      %v255 = vpop.permute.xlu0 %254
      %v257 = vmul.f32 %v255, %v247
      %v258 = vmul.f32 %v255, %v248
      %v259 = vmul.f32 %v255, %v249
      %v260 = vmul.f32 %v255, %v250
      %v261 = vld [vmem:[%s199] sm:$0xff]
      %263 = vset.pattern.permute.xlu0 0
      %264 = vperm.xlu0 %263, %v261
      %v265 = vpop.permute.xlu0 %264
      %v267 = vadd.f32 %v257, %v265
      %v268 = vadd.f32 %v258, %v265
      %v269 = vadd.f32 %v259, %v265
      %v270 = vadd.f32 %v260, %v265
      %v271 = vmax.f32 %v267, 0.0
      %v272 = vmax.f32 %v268, 0.0
      %v273 = vmax.f32 %v269, 0.0
      %v274 = vmax.f32 %v270, 0.0
      %275 = vst [vmem:[%s204] sm:$0xff] %v271
      %276 = vst [vmem:[%s204 + $0x8] sm:$0xff] %v272
      %277 = vst [vmem:[%s204 + $0x10] sm:$0xff] %v273
      %278 = vst [vmem:[%s204 + $0x18] sm:$0xff] %v274
      %p279 = scmp.lt.s32.totalorder %s14, 1
      %s280 = scalar_select %p279, %s14, 1
      %s281 = smul.addr %s280, 4
      %s282 = smul.addr %s281, 8
      %s283 = scalar_lea.vmem %s3, %s282
      // Predicated region
      $region33: #{generator_forward.14} parent=31 // pred_check
        %p284 = pneg %p110
      $region34: #{generator_forward.14} parent=31 // pred_check_branch
        %286 = sbr.rel (%p284) target = $region36
      $region35: #{generator_forward.14} parent=31 // pred_region
        _
      $region36: #{generator_forward.14} parent=31 // pred_fallthru
        _
    $region32: #{generator_forward.14} parent=5 // pred_fallthru
      _
    %p287 = scmp.le.s32.totalorder 2, %s9
    // Predicated region
    $region37: #{generator_forward.14} parent=5 // pred_check
      %p288 = pneg %p287
    $region38: #{generator_forward.14} parent=5 // pred_check_branch
      %290 = sbr.rel (%p288) target = $region40
    $region39: #{generator_forward.14} parent=5 // pred_region
      %s291 = ssub.s32 %s9, 2
      // Predicated region
      $region41: #{generator_forward.14} parent=39 // pred_check
        %p292 = pneg %p116
      $region42: #{generator_forward.14} parent=39 // pred_check_branch
        %294 = sbr.rel (%p292) target = $region44
      $region43: #{generator_forward.14} parent=39 // pred_region
        %p295 = scmp.lt.s32.totalorder %s15, 1
        %s296 = scalar_select %p295, %s15, 1
        %s297 = smul.addr %s296, 4
        %s298 = smul.addr %s297, 8
        %s299 = scalar_lea.vmem %s3, %s298
      $region44: #{generator_forward.14} parent=39 // pred_fallthru
        _
    $region40: #{generator_forward.14} parent=5 // pred_fallthru
      _
  $region6: #{generator_forward.14} parent=0 // loop_footer
    %s13 = sadd.s32 1, %s9
  $region7: #{generator_forward.14} parent=0 // loop_footer_branch
    %8 = sbr.rel target = $region3
  $region8: #{generator_forward.14} parent=0 // loop_exit
    _

// kernel: generator_forward.16
$region0: #{generator_forward.16}
  #allocation0 [shape = 'u32[]', space=smem, size = 0x4, offset = 0x4, fixed_abs, tag = 'smem constant byte address 0x4 - core index']
  #allocation1 [shape = 'u32[72,128]{1,0:T(1,128)}', space=vmem, size = 0x9000, scoped, tag = 'internal scratch']
  %s0 = inlined_call_operand.vmem [shape: f32[8,2048], index: 0, kind: input, shape index: {}]
  %s1 = inlined_call_operand.vmem [shape: f32[8,1], index: 1, kind: input, shape index: {}]
  %s2 = inlined_call_operand.vmem [shape: f32[8,1], index: 2, kind: input, shape index: {}]
  %s3 = inlined_call_operand.vmem [shape: f32[8,2048], index: 3, kind: output, shape index: {}]
  %s4 = sld [smem:[#allocation0]]
  $region22: #{generator_forward.16} parent=0
    _
  %s6 = ssub.s32 1, %s4
  %s7 = scalar_select 0, %s6, %s4
  // Predicated region
  $region2: #{generator_forward.16} parent=0 // pred_check
    _
  $region3: #{generator_forward.16} parent=0 // pred_check_branch
    %9 = sbr.rel (0) target = $region5
  $region4: #{generator_forward.16} parent=0 // pred_region
    _
  $region5: #{generator_forward.16} parent=0 // pred_fallthru
    _
  // Predicated region
  $region6: #{generator_forward.16} parent=0 // pred_check
    _
  $region7: #{generator_forward.16} parent=0 // pred_check_branch
    %11 = sbr.rel (0) target = $region9
  $region8: #{generator_forward.16} parent=0 // pred_region
    _
  $region9: #{generator_forward.16} parent=0 // pred_fallthru
    _
  // Predicated region
  $region10: #{generator_forward.16} parent=0 // pred_check
    _
  $region11: #{generator_forward.16} parent=0 // pred_check_branch
    %13 = sbr.rel (0) target = $region13
  $region12: #{generator_forward.16} parent=0 // pred_region
    _
  $region13: #{generator_forward.16} parent=0 // pred_fallthru
    _
  %v14 = vld [vmem:[%s0] sm:$0xff]
  %v15 = vld [vmem:[%s0 + $0x8] sm:$0xff]
  %v16 = vld [vmem:[%s0 + $0x10] sm:$0xff]
  %v17 = vld [vmem:[%s0 + $0x18] sm:$0xff]
  %v18 = vld [vmem:[%s0 + $0x20] sm:$0xff]
  %v19 = vld [vmem:[%s0 + $0x28] sm:$0xff]
  %v20 = vld [vmem:[%s0 + $0x30] sm:$0xff]
  %v21 = vld [vmem:[%s0 + $0x38] sm:$0xff]
  %v22 = vld [vmem:[%s0 + $0x40] sm:$0xff]
  %v23 = vld [vmem:[%s0 + $0x48] sm:$0xff]
  %v24 = vld [vmem:[%s0 + $0x50] sm:$0xff]
  %v25 = vld [vmem:[%s0 + $0x58] sm:$0xff]
  %v26 = vld [vmem:[%s0 + $0x60] sm:$0xff]
  %v27 = vld [vmem:[%s0 + $0x68] sm:$0xff]
  %v28 = vld [vmem:[%s0 + $0x70] sm:$0xff]
  %v29 = vld [vmem:[%s0 + $0x78] sm:$0xff]
  %v30 = vadd.f32 %v14, %v15
  %v31 = vadd.f32 %v30, %v16
  %v32 = vadd.f32 %v31, %v17
  %v33 = vadd.f32 %v32, %v18
  %v34 = vadd.f32 %v33, %v19
  %v35 = vadd.f32 %v34, %v20
  %v36 = vadd.f32 %v35, %v21
  %v37 = vadd.f32 %v36, %v22
  %v38 = vadd.f32 %v37, %v23
  %v39 = vadd.f32 %v38, %v24
  %v40 = vadd.f32 %v39, %v25
  %v41 = vadd.f32 %v40, %v26
  %v42 = vadd.f32 %v41, %v27
  %v43 = vadd.f32 %v42, %v28
  %v44 = vadd.f32 %v43, %v29
  %45 = vadd.xlane.f32.xlu0 %v44
  %v46 = vpop.xlane.xlu0 %45
  %v47 = vrcp.pop 2048.0
  %v48 = vmul.f32 2048.0, %v47
  %v49 = vsub.f32 1.0, %v48
  %v50 = vmul.f32 %v47, %v49
  %v51 = vadd.f32 %v47, %v50
  %vm52 = vweird.f32 %v47
  %v53 = vsel %vm52, %v47, %v51
  %v54 = vmul.f32 %v46, %v53
  %v55 = vsub.f32 %v14, %v54
  %v56 = vsub.f32 %v15, %v54
  %v57 = vsub.f32 %v16, %v54
  %v58 = vsub.f32 %v17, %v54
  %v59 = vsub.f32 %v18, %v54
  %v60 = vsub.f32 %v19, %v54
  %v61 = vsub.f32 %v20, %v54
  %v62 = vsub.f32 %v21, %v54
  %v63 = vsub.f32 %v22, %v54
  %v64 = vsub.f32 %v23, %v54
  %v65 = vsub.f32 %v24, %v54
  %v66 = vsub.f32 %v25, %v54
  %v67 = vsub.f32 %v26, %v54
  %v68 = vsub.f32 %v27, %v54
  %v69 = vsub.f32 %v28, %v54
  %v70 = vsub.f32 %v29, %v54
  %v71 = vmul.f32 %v55, %v55
  %v72 = vmul.f32 %v56, %v56
  %v73 = vmul.f32 %v57, %v57
  %v74 = vmul.f32 %v58, %v58
  %v75 = vmul.f32 %v59, %v59
  %v76 = vmul.f32 %v60, %v60
  %v77 = vmul.f32 %v61, %v61
  %v78 = vmul.f32 %v62, %v62
  %v79 = vmul.f32 %v63, %v63
  %v80 = vmul.f32 %v64, %v64
  %v81 = vmul.f32 %v65, %v65
  %v82 = vmul.f32 %v66, %v66
  %v83 = vmul.f32 %v67, %v67
  %v84 = vmul.f32 %v68, %v68
  %v85 = vmul.f32 %v69, %v69
  %v86 = vmul.f32 %v70, %v70
  %v87 = vadd.f32 %v71, %v72
  %v88 = vadd.f32 %v87, %v73
  %v89 = vadd.f32 %v88, %v74
  %v90 = vadd.f32 %v89, %v75
  %v91 = vadd.f32 %v90, %v76
  %v92 = vadd.f32 %v91, %v77
  %v93 = vadd.f32 %v92, %v78
  %v94 = vadd.f32 %v93, %v79
  %v95 = vadd.f32 %v94, %v80
  %v96 = vadd.f32 %v95, %v81
  %v97 = vadd.f32 %v96, %v82
  %v98 = vadd.f32 %v97, %v83
  %v99 = vadd.f32 %v98, %v84
  %v100 = vadd.f32 %v99, %v85
  %v101 = vadd.f32 %v100, %v86
  %102 = vadd.xlane.f32.xlu0 %v101
  %v103 = vpop.xlane.xlu0 %102
  %v104 = vmul.f32 %v103, %v53
  %v105 = vadd.f32 %v104, 1e-05
  %v106 = vrsqrt.pop %v105
  %v107 = vmul.f32 %v106, %v105
  %v108 = vmul.f32 %v107, %v106
  %v109 = vmul.f32 0.5, %v108
  %v110 = vsub.f32 1.5, %v109
  %v111 = vmul.f32 %v106, %v110
  %vm112 = vweird.f32 %v105
  %vm113 = vweird.f32 %v106
  %vm114 = vmor %vm112, %vm113
  %v115 = vsel %vm114, %v106, %v111
  %v116 = vmul.f32 %v55, %v115
  %v117 = vmul.f32 %v56, %v115
  %v118 = vmul.f32 %v57, %v115
  %v119 = vmul.f32 %v58, %v115
  %v120 = vmul.f32 %v59, %v115
  %v121 = vmul.f32 %v60, %v115
  %v122 = vmul.f32 %v61, %v115
  %v123 = vmul.f32 %v62, %v115
  %v124 = vmul.f32 %v63, %v115
  %v125 = vmul.f32 %v64, %v115
  %v126 = vmul.f32 %v65, %v115
  %v127 = vmul.f32 %v66, %v115
  %v128 = vmul.f32 %v67, %v115
  %v129 = vmul.f32 %v68, %v115
  %v130 = vmul.f32 %v69, %v115
  %v131 = vmul.f32 %v70, %v115
  %v132 = vld [vmem:[%s1] sm:$0xff]
  %134 = vset.pattern.permute.xlu0 0
  %135 = vperm.xlu0 %134, %v132
  %v136 = vpop.permute.xlu0 %135
  %v138 = vmul.f32 %v136, %v116
  %v139 = vmul.f32 %v136, %v117
  %v140 = vmul.f32 %v136, %v118
  %v141 = vmul.f32 %v136, %v119
  %v142 = vmul.f32 %v136, %v120
  %v143 = vmul.f32 %v136, %v121
  %v144 = vmul.f32 %v136, %v122
  %v145 = vmul.f32 %v136, %v123
  %v146 = vmul.f32 %v136, %v124
  %v147 = vmul.f32 %v136, %v125
  %v148 = vmul.f32 %v136, %v126
  %v149 = vmul.f32 %v136, %v127
  %v150 = vmul.f32 %v136, %v128
  %v151 = vmul.f32 %v136, %v129
  %v152 = vmul.f32 %v136, %v130
  %v153 = vmul.f32 %v136, %v131
  %v154 = vld [vmem:[%s2] sm:$0xff]
  %156 = vset.pattern.permute.xlu0 0
  %157 = vperm.xlu0 %156, %v154
  %v158 = vpop.permute.xlu0 %157
  %v160 = vadd.f32 %v138, %v158
  %v161 = vadd.f32 %v139, %v158
  %v162 = vadd.f32 %v140, %v158
  %v163 = vadd.f32 %v141, %v158
  %v164 = vadd.f32 %v142, %v158
  %v165 = vadd.f32 %v143, %v158
  %v166 = vadd.f32 %v144, %v158
  %v167 = vadd.f32 %v145, %v158
  %v168 = vadd.f32 %v146, %v158
  %v169 = vadd.f32 %v147, %v158
  %v170 = vadd.f32 %v148, %v158
  %v171 = vadd.f32 %v149, %v158
  %v172 = vadd.f32 %v150, %v158
  %v173 = vadd.f32 %v151, %v158
  %v174 = vadd.f32 %v152, %v158
  %v175 = vadd.f32 %v153, %v158
  %v176 = vmax.f32 %v160, 0.0
  %v177 = vmax.f32 %v161, 0.0
  %v178 = vmax.f32 %v162, 0.0
  %v179 = vmax.f32 %v163, 0.0
  %v180 = vmax.f32 %v164, 0.0
  %v181 = vmax.f32 %v165, 0.0
  %v182 = vmax.f32 %v166, 0.0
  %v183 = vmax.f32 %v167, 0.0
  %v184 = vmax.f32 %v168, 0.0
  %v185 = vmax.f32 %v169, 0.0
  %v186 = vmax.f32 %v170, 0.0
  %v187 = vmax.f32 %v171, 0.0
  %v188 = vmax.f32 %v172, 0.0
  %v189 = vmax.f32 %v173, 0.0
  %v190 = vmax.f32 %v174, 0.0
  %v191 = vmax.f32 %v175, 0.0
  %192 = vst [vmem:[%s3] sm:$0xff] %v176
  %193 = vst [vmem:[%s3 + $0x8] sm:$0xff] %v177
  %194 = vst [vmem:[%s3 + $0x10] sm:$0xff] %v178
  %195 = vst [vmem:[%s3 + $0x18] sm:$0xff] %v179
  %196 = vst [vmem:[%s3 + $0x20] sm:$0xff] %v180
  %197 = vst [vmem:[%s3 + $0x28] sm:$0xff] %v181
  %198 = vst [vmem:[%s3 + $0x30] sm:$0xff] %v182
  %199 = vst [vmem:[%s3 + $0x38] sm:$0xff] %v183
  %200 = vst [vmem:[%s3 + $0x40] sm:$0xff] %v184
  %201 = vst [vmem:[%s3 + $0x48] sm:$0xff] %v185
  %202 = vst [vmem:[%s3 + $0x50] sm:$0xff] %v186
  %203 = vst [vmem:[%s3 + $0x58] sm:$0xff] %v187
  %204 = vst [vmem:[%s3 + $0x60] sm:$0xff] %v188
  %205 = vst [vmem:[%s3 + $0x68] sm:$0xff] %v189
  %206 = vst [vmem:[%s3 + $0x70] sm:$0xff] %v190
  %207 = vst [vmem:[%s3 + $0x78] sm:$0xff] %v191
  // Predicated region
  $region14: #{generator_forward.16} parent=0 // pred_check
    _
  $region15: #{generator_forward.16} parent=0 // pred_check_branch
    %209 = sbr.rel (0) target = $region17
  $region16: #{generator_forward.16} parent=0 // pred_region
    _
  $region17: #{generator_forward.16} parent=0 // pred_fallthru
    _
  // Predicated region
  $region18: #{generator_forward.16} parent=0 // pred_check
    _
  $region19: #{generator_forward.16} parent=0 // pred_check_branch
    %211 = sbr.rel (0) target = $region21
  $region20: #{generator_forward.16} parent=0 // pred_region
    _
  $region21: #{generator_forward.16} parent=0 // pred_fallthru
    _

// kernel: generator_forward.15
$region0: #{generator_forward.15}
  #allocation0 [shape = 'u32[]', space=smem, size = 0x4, offset = 0x4, fixed_abs, tag = 'smem constant byte address 0x4 - core index']
  #allocation1 [shape = 'u32[72,128]{1,0:T(1,128)}', space=vmem, size = 0x9000, scoped, tag = 'internal scratch']
  %s0 = inlined_call_operand.vmem [shape: bf16[8,256], index: 0, kind: input, shape index: {}]
  %s1 = inlined_call_operand.vmem [shape: bf16[256,2048], index: 1, kind: input, shape index: {}]
  %s2 = inlined_call_operand.vmem [shape: f32[8,2048], index: 2, kind: output, shape index: {}]
  %s3 = sld [smem:[#allocation0]]
  $region18: #{generator_forward.15} parent=0
    _
  %s5 = ssub.s32 1, %s3
  %s6 = scalar_select 0, %s5, %s3
  // Predicated region
  $region2: #{generator_forward.15} parent=0 // pred_check
    _
  $region3: #{generator_forward.15} parent=0 // pred_check_branch
    %8 = sbr.rel (0) target = $region5
  $region4: #{generator_forward.15} parent=0 // pred_region
    _
  $region5: #{generator_forward.15} parent=0 // pred_fallthru
    _
  // Predicated region
  $region6: #{generator_forward.15} parent=0 // pred_check
    _
  $region7: #{generator_forward.15} parent=0 // pred_check_branch
    %10 = sbr.rel (0) target = $region9
  $region8: #{generator_forward.15} parent=0 // pred_region
    _
  $region9: #{generator_forward.15} parent=0 // pred_fallthru
    _
  %v11 = vld [vmem:[%s0] sm:$0xff]
  %v12 = vld [vmem:[%s1] sm:$0xff]
  %v13 = vld [vmem:[%s1 + $0x8] sm:$0xff]
  %v14 = vld [vmem:[%s1 + $0x10] sm:$0xff]
  %v15 = vld [vmem:[%s1 + $0x18] sm:$0xff]
  %v16 = vld [vmem:[%s1 + $0x20] sm:$0xff]
  %v17 = vld [vmem:[%s1 + $0x28] sm:$0xff]
  %v18 = vld [vmem:[%s1 + $0x30] sm:$0xff]
  %v19 = vld [vmem:[%s1 + $0x38] sm:$0xff]
  %v20 = vld [vmem:[%s1 + $0x40] sm:$0xff]
  %v21 = vld [vmem:[%s1 + $0x48] sm:$0xff]
  %v22 = vld [vmem:[%s1 + $0x50] sm:$0xff]
  %v23 = vld [vmem:[%s1 + $0x58] sm:$0xff]
  %v24 = vld [vmem:[%s1 + $0x60] sm:$0xff]
  %v25 = vld [vmem:[%s1 + $0x68] sm:$0xff]
  %v26 = vld [vmem:[%s1 + $0x70] sm:$0xff]
  %v27 = vld [vmem:[%s1 + $0x78] sm:$0xff]
  %v28 = vld [vmem:[%s1 + $0x80] sm:$0xff]
  %v29 = vld [vmem:[%s1 + $0x88] sm:$0xff]
  %v30 = vld [vmem:[%s1 + $0x90] sm:$0xff]
  %v31 = vld [vmem:[%s1 + $0x98] sm:$0xff]
  %v32 = vld [vmem:[%s1 + $0xa0] sm:$0xff]
  %v33 = vld [vmem:[%s1 + $0xa8] sm:$0xff]
  %v34 = vld [vmem:[%s1 + $0xb0] sm:$0xff]
  %v35 = vld [vmem:[%s1 + $0xb8] sm:$0xff]
  %v36 = vld [vmem:[%s1 + $0xc0] sm:$0xff]
  %v37 = vld [vmem:[%s1 + $0xc8] sm:$0xff]
  %v38 = vld [vmem:[%s1 + $0xd0] sm:$0xff]
  %v39 = vld [vmem:[%s1 + $0xd8] sm:$0xff]
  %v40 = vld [vmem:[%s1 + $0xe0] sm:$0xff]
  %v41 = vld [vmem:[%s1 + $0xe8] sm:$0xff]
  %v42 = vld [vmem:[%s1 + $0xf0] sm:$0xff]
  %v43 = vld [vmem:[%s1 + $0xf8] sm:$0xff]
  %v44 = vld [vmem:[%s1 + $0x100] sm:$0xff]
  %v45 = vld [vmem:[%s1 + $0x108] sm:$0xff]
  %v46 = vld [vmem:[%s1 + $0x110] sm:$0xff]
  %v47 = vld [vmem:[%s1 + $0x118] sm:$0xff]
  %v48 = vld [vmem:[%s1 + $0x120] sm:$0xff]
  %v49 = vld [vmem:[%s1 + $0x128] sm:$0xff]
  %v50 = vld [vmem:[%s1 + $0x130] sm:$0xff]
  %v51 = vld [vmem:[%s1 + $0x138] sm:$0xff]
  %v52 = vld [vmem:[%s1 + $0x140] sm:$0xff]
  %v53 = vld [vmem:[%s1 + $0x148] sm:$0xff]
  %v54 = vld [vmem:[%s1 + $0x150] sm:$0xff]
  %v55 = vld [vmem:[%s1 + $0x158] sm:$0xff]
  %v56 = vld [vmem:[%s1 + $0x160] sm:$0xff]
  %v57 = vld [vmem:[%s1 + $0x168] sm:$0xff]
  %v58 = vld [vmem:[%s1 + $0x170] sm:$0xff]
  %v59 = vld [vmem:[%s1 + $0x178] sm:$0xff]
  %v60 = vld [vmem:[%s1 + $0x180] sm:$0xff]
  %v61 = vld [vmem:[%s1 + $0x188] sm:$0xff]
  %v62 = vld [vmem:[%s1 + $0x190] sm:$0xff]
  %v63 = vld [vmem:[%s1 + $0x198] sm:$0xff]
  %v64 = vld [vmem:[%s1 + $0x1a0] sm:$0xff]
  %v65 = vld [vmem:[%s1 + $0x1a8] sm:$0xff]
  %v66 = vld [vmem:[%s1 + $0x1b0] sm:$0xff]
  %v67 = vld [vmem:[%s1 + $0x1b8] sm:$0xff]
  %v68 = vld [vmem:[%s1 + $0x1c0] sm:$0xff]
  %v69 = vld [vmem:[%s1 + $0x1c8] sm:$0xff]
  %v70 = vld [vmem:[%s1 + $0x1d0] sm:$0xff]
  %v71 = vld [vmem:[%s1 + $0x1d8] sm:$0xff]
  %v72 = vld [vmem:[%s1 + $0x1e0] sm:$0xff]
  %v73 = vld [vmem:[%s1 + $0x1e8] sm:$0xff]
  %v74 = vld [vmem:[%s1 + $0x1f0] sm:$0xff]
  %v75 = vld [vmem:[%s1 + $0x1f8] sm:$0xff]
  %v76 = vld [vmem:[%s1 + $0x200] sm:$0xff]
  %v77 = vld [vmem:[%s1 + $0x208] sm:$0xff]
  %v78 = vld [vmem:[%s1 + $0x210] sm:$0xff]
  %v79 = vld [vmem:[%s1 + $0x218] sm:$0xff]
  %v80 = vld [vmem:[%s1 + $0x220] sm:$0xff]
  %v81 = vld [vmem:[%s1 + $0x228] sm:$0xff]
  %v82 = vld [vmem:[%s1 + $0x230] sm:$0xff]
  %v83 = vld [vmem:[%s1 + $0x238] sm:$0xff]
  %v84 = vld [vmem:[%s1 + $0x240] sm:$0xff]
  %v85 = vld [vmem:[%s1 + $0x248] sm:$0xff]
  %v86 = vld [vmem:[%s1 + $0x250] sm:$0xff]
  %v87 = vld [vmem:[%s1 + $0x258] sm:$0xff]
  %v88 = vld [vmem:[%s1 + $0x260] sm:$0xff]
  %v89 = vld [vmem:[%s1 + $0x268] sm:$0xff]
  %v90 = vld [vmem:[%s1 + $0x270] sm:$0xff]
  %v91 = vld [vmem:[%s1 + $0x278] sm:$0xff]
  %v92 = vld [vmem:[%s1 + $0x280] sm:$0xff]
  %v93 = vld [vmem:[%s1 + $0x288] sm:$0xff]
  %v94 = vld [vmem:[%s1 + $0x290] sm:$0xff]
  %v95 = vld [vmem:[%s1 + $0x298] sm:$0xff]
  %v96 = vld [vmem:[%s1 + $0x2a0] sm:$0xff]
  %v97 = vld [vmem:[%s1 + $0x2a8] sm:$0xff]
  %v98 = vld [vmem:[%s1 + $0x2b0] sm:$0xff]
  %v99 = vld [vmem:[%s1 + $0x2b8] sm:$0xff]
  %v100 = vld [vmem:[%s1 + $0x2c0] sm:$0xff]
  %v101 = vld [vmem:[%s1 + $0x2c8] sm:$0xff]
  %v102 = vld [vmem:[%s1 + $0x2d0] sm:$0xff]
  %v103 = vld [vmem:[%s1 + $0x2d8] sm:$0xff]
  %v104 = vld [vmem:[%s1 + $0x2e0] sm:$0xff]
  %v105 = vld [vmem:[%s1 + $0x2e8] sm:$0xff]
  %v106 = vld [vmem:[%s1 + $0x2f0] sm:$0xff]
  %v107 = vld [vmem:[%s1 + $0x2f8] sm:$0xff]
  %v108 = vld [vmem:[%s1 + $0x300] sm:$0xff]
  %v109 = vld [vmem:[%s1 + $0x308] sm:$0xff]
  %v110 = vld [vmem:[%s1 + $0x310] sm:$0xff]
  %v111 = vld [vmem:[%s1 + $0x318] sm:$0xff]
  %v112 = vld [vmem:[%s1 + $0x320] sm:$0xff]
  %v113 = vld [vmem:[%s1 + $0x328] sm:$0xff]
  %v114 = vld [vmem:[%s1 + $0x330] sm:$0xff]
  %v115 = vld [vmem:[%s1 + $0x338] sm:$0xff]
  %v116 = vld [vmem:[%s1 + $0x340] sm:$0xff]
  %v117 = vld [vmem:[%s1 + $0x348] sm:$0xff]
  %v118 = vld [vmem:[%s1 + $0x350] sm:$0xff]
  %v119 = vld [vmem:[%s1 + $0x358] sm:$0xff]
  %v120 = vld [vmem:[%s1 + $0x360] sm:$0xff]
  %v121 = vld [vmem:[%s1 + $0x368] sm:$0xff]
  %v122 = vld [vmem:[%s1 + $0x370] sm:$0xff]
  %v123 = vld [vmem:[%s1 + $0x378] sm:$0xff]
  %v124 = vld [vmem:[%s1 + $0x380] sm:$0xff]
  %v125 = vld [vmem:[%s1 + $0x388] sm:$0xff]
  %v126 = vld [vmem:[%s1 + $0x390] sm:$0xff]
  %v127 = vld [vmem:[%s1 + $0x398] sm:$0xff]
  %v128 = vld [vmem:[%s1 + $0x3a0] sm:$0xff]
  %v129 = vld [vmem:[%s1 + $0x3a8] sm:$0xff]
  %v130 = vld [vmem:[%s1 + $0x3b0] sm:$0xff]
  %v131 = vld [vmem:[%s1 + $0x3b8] sm:$0xff]
  %v132 = vld [vmem:[%s1 + $0x3c0] sm:$0xff]
  %v133 = vld [vmem:[%s1 + $0x3c8] sm:$0xff]
  %v134 = vld [vmem:[%s1 + $0x3d0] sm:$0xff]
  %v135 = vld [vmem:[%s1 + $0x3d8] sm:$0xff]
  %v136 = vld [vmem:[%s1 + $0x3e0] sm:$0xff]
  %v137 = vld [vmem:[%s1 + $0x3e8] sm:$0xff]
  %v138 = vld [vmem:[%s1 + $0x3f0] sm:$0xff]
  %v139 = vld [vmem:[%s1 + $0x3f8] sm:$0xff]
  %v140 = vld [vmem:[%s1 + $0x400] sm:$0xff]
  %v141 = vld [vmem:[%s1 + $0x408] sm:$0xff]
  %v142 = vld [vmem:[%s1 + $0x410] sm:$0xff]
  %v143 = vld [vmem:[%s1 + $0x418] sm:$0xff]
  %v144 = vld [vmem:[%s1 + $0x420] sm:$0xff]
  %v145 = vld [vmem:[%s1 + $0x428] sm:$0xff]
  %v146 = vld [vmem:[%s1 + $0x430] sm:$0xff]
  %v147 = vld [vmem:[%s1 + $0x438] sm:$0xff]
  %v148 = vld [vmem:[%s1 + $0x440] sm:$0xff]
  %v149 = vld [vmem:[%s1 + $0x448] sm:$0xff]
  %v150 = vld [vmem:[%s1 + $0x450] sm:$0xff]
  %v151 = vld [vmem:[%s1 + $0x458] sm:$0xff]
  %v152 = vld [vmem:[%s1 + $0x460] sm:$0xff]
  %v153 = vld [vmem:[%s1 + $0x468] sm:$0xff]
  %v154 = vld [vmem:[%s1 + $0x470] sm:$0xff]
  %v155 = vld [vmem:[%s1 + $0x478] sm:$0xff]
  %v156 = vld [vmem:[%s1 + $0x480] sm:$0xff]
  %v157 = vld [vmem:[%s1 + $0x488] sm:$0xff]
  %v158 = vld [vmem:[%s1 + $0x490] sm:$0xff]
  %v159 = vld [vmem:[%s1 + $0x498] sm:$0xff]
  %v160 = vld [vmem:[%s1 + $0x4a0] sm:$0xff]
  %v161 = vld [vmem:[%s1 + $0x4a8] sm:$0xff]
  %v162 = vld [vmem:[%s1 + $0x4b0] sm:$0xff]
  %v163 = vld [vmem:[%s1 + $0x4b8] sm:$0xff]
  %v164 = vld [vmem:[%s1 + $0x4c0] sm:$0xff]
  %v165 = vld [vmem:[%s1 + $0x4c8] sm:$0xff]
  %v166 = vld [vmem:[%s1 + $0x4d0] sm:$0xff]
  %v167 = vld [vmem:[%s1 + $0x4d8] sm:$0xff]
  %v168 = vld [vmem:[%s1 + $0x4e0] sm:$0xff]
  %v169 = vld [vmem:[%s1 + $0x4e8] sm:$0xff]
  %v170 = vld [vmem:[%s1 + $0x4f0] sm:$0xff]
  %v171 = vld [vmem:[%s1 + $0x4f8] sm:$0xff]
  %v172 = vld [vmem:[%s1 + $0x500] sm:$0xff]
  %v173 = vld [vmem:[%s1 + $0x508] sm:$0xff]
  %v174 = vld [vmem:[%s1 + $0x510] sm:$0xff]
  %v175 = vld [vmem:[%s1 + $0x518] sm:$0xff]
  %v176 = vld [vmem:[%s1 + $0x520] sm:$0xff]
  %v177 = vld [vmem:[%s1 + $0x528] sm:$0xff]
  %v178 = vld [vmem:[%s1 + $0x530] sm:$0xff]
  %v179 = vld [vmem:[%s1 + $0x538] sm:$0xff]
  %v180 = vld [vmem:[%s1 + $0x540] sm:$0xff]
  %v181 = vld [vmem:[%s1 + $0x548] sm:$0xff]
  %v182 = vld [vmem:[%s1 + $0x550] sm:$0xff]
  %v183 = vld [vmem:[%s1 + $0x558] sm:$0xff]
  %v184 = vld [vmem:[%s1 + $0x560] sm:$0xff]
  %v185 = vld [vmem:[%s1 + $0x568] sm:$0xff]
  %v186 = vld [vmem:[%s1 + $0x570] sm:$0xff]
  %v187 = vld [vmem:[%s1 + $0x578] sm:$0xff]
  %v188 = vld [vmem:[%s1 + $0x580] sm:$0xff]
  %v189 = vld [vmem:[%s1 + $0x588] sm:$0xff]
  %v190 = vld [vmem:[%s1 + $0x590] sm:$0xff]
  %v191 = vld [vmem:[%s1 + $0x598] sm:$0xff]
  %v192 = vld [vmem:[%s1 + $0x5a0] sm:$0xff]
  %v193 = vld [vmem:[%s1 + $0x5a8] sm:$0xff]
  %v194 = vld [vmem:[%s1 + $0x5b0] sm:$0xff]
  %v195 = vld [vmem:[%s1 + $0x5b8] sm:$0xff]
  %v196 = vld [vmem:[%s1 + $0x5c0] sm:$0xff]
  %v197 = vld [vmem:[%s1 + $0x5c8] sm:$0xff]
  %v198 = vld [vmem:[%s1 + $0x5d0] sm:$0xff]
  %v199 = vld [vmem:[%s1 + $0x5d8] sm:$0xff]
  %v200 = vld [vmem:[%s1 + $0x5e0] sm:$0xff]
  %v201 = vld [vmem:[%s1 + $0x5e8] sm:$0xff]
  %v202 = vld [vmem:[%s1 + $0x5f0] sm:$0xff]
  %v203 = vld [vmem:[%s1 + $0x5f8] sm:$0xff]
  %v204 = vld [vmem:[%s1 + $0x600] sm:$0xff]
  %v205 = vld [vmem:[%s1 + $0x608] sm:$0xff]
  %v206 = vld [vmem:[%s1 + $0x610] sm:$0xff]
  %v207 = vld [vmem:[%s1 + $0x618] sm:$0xff]
  %v208 = vld [vmem:[%s1 + $0x620] sm:$0xff]
  %v209 = vld [vmem:[%s1 + $0x628] sm:$0xff]
  %v210 = vld [vmem:[%s1 + $0x630] sm:$0xff]
  %v211 = vld [vmem:[%s1 + $0x638] sm:$0xff]
  %v212 = vld [vmem:[%s1 + $0x640] sm:$0xff]
  %v213 = vld [vmem:[%s1 + $0x648] sm:$0xff]
  %v214 = vld [vmem:[%s1 + $0x650] sm:$0xff]
  %v215 = vld [vmem:[%s1 + $0x658] sm:$0xff]
  %v216 = vld [vmem:[%s1 + $0x660] sm:$0xff]
  %v217 = vld [vmem:[%s1 + $0x668] sm:$0xff]
  %v218 = vld [vmem:[%s1 + $0x670] sm:$0xff]
  %v219 = vld [vmem:[%s1 + $0x678] sm:$0xff]
  %v220 = vld [vmem:[%s1 + $0x680] sm:$0xff]
  %v221 = vld [vmem:[%s1 + $0x688] sm:$0xff]
  %v222 = vld [vmem:[%s1 + $0x690] sm:$0xff]
  %v223 = vld [vmem:[%s1 + $0x698] sm:$0xff]
  %v224 = vld [vmem:[%s1 + $0x6a0] sm:$0xff]
  %v225 = vld [vmem:[%s1 + $0x6a8] sm:$0xff]
  %v226 = vld [vmem:[%s1 + $0x6b0] sm:$0xff]
  %v227 = vld [vmem:[%s1 + $0x6b8] sm:$0xff]
  %v228 = vld [vmem:[%s1 + $0x6c0] sm:$0xff]
  %v229 = vld [vmem:[%s1 + $0x6c8] sm:$0xff]
  %v230 = vld [vmem:[%s1 + $0x6d0] sm:$0xff]
  %v231 = vld [vmem:[%s1 + $0x6d8] sm:$0xff]
  %v232 = vld [vmem:[%s1 + $0x6e0] sm:$0xff]
  %v233 = vld [vmem:[%s1 + $0x6e8] sm:$0xff]
  %v234 = vld [vmem:[%s1 + $0x6f0] sm:$0xff]
  %v235 = vld [vmem:[%s1 + $0x6f8] sm:$0xff]
  %v236 = vld [vmem:[%s1 + $0x700] sm:$0xff]
  %v237 = vld [vmem:[%s1 + $0x708] sm:$0xff]
  %v238 = vld [vmem:[%s1 + $0x710] sm:$0xff]
  %v239 = vld [vmem:[%s1 + $0x718] sm:$0xff]
  %v240 = vld [vmem:[%s1 + $0x720] sm:$0xff]
  %v241 = vld [vmem:[%s1 + $0x728] sm:$0xff]
  %v242 = vld [vmem:[%s1 + $0x730] sm:$0xff]
  %v243 = vld [vmem:[%s1 + $0x738] sm:$0xff]
  %v244 = vld [vmem:[%s1 + $0x740] sm:$0xff]
  %v245 = vld [vmem:[%s1 + $0x748] sm:$0xff]
  %v246 = vld [vmem:[%s1 + $0x750] sm:$0xff]
  %v247 = vld [vmem:[%s1 + $0x758] sm:$0xff]
  %v248 = vld [vmem:[%s1 + $0x760] sm:$0xff]
  %v249 = vld [vmem:[%s1 + $0x768] sm:$0xff]
  %v250 = vld [vmem:[%s1 + $0x770] sm:$0xff]
  %v251 = vld [vmem:[%s1 + $0x778] sm:$0xff]
  %v252 = vld [vmem:[%s1 + $0x780] sm:$0xff]
  %v253 = vld [vmem:[%s1 + $0x788] sm:$0xff]
  %v254 = vld [vmem:[%s1 + $0x790] sm:$0xff]
  %v255 = vld [vmem:[%s1 + $0x798] sm:$0xff]
  %v256 = vld [vmem:[%s1 + $0x7a0] sm:$0xff]
  %v257 = vld [vmem:[%s1 + $0x7a8] sm:$0xff]
  %v258 = vld [vmem:[%s1 + $0x7b0] sm:$0xff]
  %v259 = vld [vmem:[%s1 + $0x7b8] sm:$0xff]
  %v260 = vld [vmem:[%s1 + $0x7c0] sm:$0xff]
  %v261 = vld [vmem:[%s1 + $0x7c8] sm:$0xff]
  %v262 = vld [vmem:[%s1 + $0x7d0] sm:$0xff]
  %v263 = vld [vmem:[%s1 + $0x7d8] sm:$0xff]
  %v264 = vld [vmem:[%s1 + $0x7e0] sm:$0xff]
  %v265 = vld [vmem:[%s1 + $0x7e8] sm:$0xff]
  %v266 = vld [vmem:[%s1 + $0x7f0] sm:$0xff]
  %v267 = vld [vmem:[%s1 + $0x7f8] sm:$0xff]
  %v269 = vunpack.c.l.b16 %v11
  %v270 = vunpack.c.h.b16 %v11
  %v271 = vpack.c.b16 %v269, %v269
  %v272 = vpack.c.b16 %v270, %v270
  %v531 = vunpack.c.l.b16 %v12
  %v532 = vunpack.c.h.b16 %v12
  %v533 = vunpack.c.l.b16 %v13
  %v534 = vunpack.c.h.b16 %v13
  %v535 = vunpack.c.l.b16 %v14
  %v536 = vunpack.c.h.b16 %v14
  %v537 = vunpack.c.l.b16 %v15
  %v538 = vunpack.c.h.b16 %v15
  %v539 = vunpack.c.l.b16 %v16
  %v540 = vunpack.c.h.b16 %v16
  %v541 = vunpack.c.l.b16 %v17
  %v542 = vunpack.c.h.b16 %v17
  %v543 = vunpack.c.l.b16 %v18
  %v544 = vunpack.c.h.b16 %v18
  %v545 = vunpack.c.l.b16 %v19
  %v546 = vunpack.c.h.b16 %v19
  %v547 = vunpack.c.l.b16 %v20
  %v548 = vunpack.c.h.b16 %v20
  %v549 = vunpack.c.l.b16 %v21
  %v550 = vunpack.c.h.b16 %v21
  %v551 = vunpack.c.l.b16 %v22
  %v552 = vunpack.c.h.b16 %v22
  %v553 = vunpack.c.l.b16 %v23
  %v554 = vunpack.c.h.b16 %v23
  %v555 = vunpack.c.l.b16 %v24
  %v556 = vunpack.c.h.b16 %v24
  %v557 = vunpack.c.l.b16 %v25
  %v558 = vunpack.c.h.b16 %v25
  %v559 = vunpack.c.l.b16 %v26
  %v560 = vunpack.c.h.b16 %v26
  %v561 = vunpack.c.l.b16 %v27
  %v562 = vunpack.c.h.b16 %v27
  %v563 = vunpack.c.l.b16 %v28
  %v564 = vunpack.c.h.b16 %v28
  %v565 = vunpack.c.l.b16 %v29
  %v566 = vunpack.c.h.b16 %v29
  %v567 = vunpack.c.l.b16 %v30
  %v568 = vunpack.c.h.b16 %v30
  %v569 = vunpack.c.l.b16 %v31
  %v570 = vunpack.c.h.b16 %v31
  %v571 = vunpack.c.l.b16 %v32
  %v572 = vunpack.c.h.b16 %v32
  %v573 = vunpack.c.l.b16 %v33
  %v574 = vunpack.c.h.b16 %v33
  %v575 = vunpack.c.l.b16 %v34
  %v576 = vunpack.c.h.b16 %v34
  %v577 = vunpack.c.l.b16 %v35
  %v578 = vunpack.c.h.b16 %v35
  %v579 = vunpack.c.l.b16 %v36
  %v580 = vunpack.c.h.b16 %v36
  %v581 = vunpack.c.l.b16 %v37
  %v582 = vunpack.c.h.b16 %v37
  %v583 = vunpack.c.l.b16 %v38
  %v584 = vunpack.c.h.b16 %v38
  %v585 = vunpack.c.l.b16 %v39
  %v586 = vunpack.c.h.b16 %v39
  %v587 = vunpack.c.l.b16 %v40
  %v588 = vunpack.c.h.b16 %v40
  %v589 = vunpack.c.l.b16 %v41
  %v590 = vunpack.c.h.b16 %v41
  %v591 = vunpack.c.l.b16 %v42
  %v592 = vunpack.c.h.b16 %v42
  %v593 = vunpack.c.l.b16 %v43
  %v594 = vunpack.c.h.b16 %v43
  %v595 = vunpack.c.l.b16 %v44
  %v596 = vunpack.c.h.b16 %v44
  %v597 = vunpack.c.l.b16 %v45
  %v598 = vunpack.c.h.b16 %v45
  %v599 = vunpack.c.l.b16 %v46
  %v600 = vunpack.c.h.b16 %v46
  %v601 = vunpack.c.l.b16 %v47
  %v602 = vunpack.c.h.b16 %v47
  %v603 = vunpack.c.l.b16 %v48
  %v604 = vunpack.c.h.b16 %v48
  %v605 = vunpack.c.l.b16 %v49
  %v606 = vunpack.c.h.b16 %v49
  %v607 = vunpack.c.l.b16 %v50
  %v608 = vunpack.c.h.b16 %v50
  %v609 = vunpack.c.l.b16 %v51
  %v610 = vunpack.c.h.b16 %v51
  %v611 = vunpack.c.l.b16 %v52
  %v612 = vunpack.c.h.b16 %v52
  %v613 = vunpack.c.l.b16 %v53
  %v614 = vunpack.c.h.b16 %v53
  %v615 = vunpack.c.l.b16 %v54
  %v616 = vunpack.c.h.b16 %v54
  %v617 = vunpack.c.l.b16 %v55
  %v618 = vunpack.c.h.b16 %v55
  %v619 = vunpack.c.l.b16 %v56
  %v620 = vunpack.c.h.b16 %v56
  %v621 = vunpack.c.l.b16 %v57
  %v622 = vunpack.c.h.b16 %v57
  %v623 = vunpack.c.l.b16 %v58
  %v624 = vunpack.c.h.b16 %v58
  %v625 = vunpack.c.l.b16 %v59
  %v626 = vunpack.c.h.b16 %v59
  %v627 = vunpack.c.l.b16 %v60
  %v628 = vunpack.c.h.b16 %v60
  %v629 = vunpack.c.l.b16 %v61
  %v630 = vunpack.c.h.b16 %v61
  %v631 = vunpack.c.l.b16 %v62
  %v632 = vunpack.c.h.b16 %v62
  %v633 = vunpack.c.l.b16 %v63
  %v634 = vunpack.c.h.b16 %v63
  %v635 = vunpack.c.l.b16 %v64
  %v636 = vunpack.c.h.b16 %v64
  %v637 = vunpack.c.l.b16 %v65
  %v638 = vunpack.c.h.b16 %v65
  %v639 = vunpack.c.l.b16 %v66
  %v640 = vunpack.c.h.b16 %v66
  %v641 = vunpack.c.l.b16 %v67
  %v642 = vunpack.c.h.b16 %v67
  %v643 = vunpack.c.l.b16 %v68
  %v644 = vunpack.c.h.b16 %v68
  %v645 = vunpack.c.l.b16 %v69
  %v646 = vunpack.c.h.b16 %v69
  %v647 = vunpack.c.l.b16 %v70
  %v648 = vunpack.c.h.b16 %v70
  %v649 = vunpack.c.l.b16 %v71
  %v650 = vunpack.c.h.b16 %v71
  %v651 = vunpack.c.l.b16 %v72
  %v652 = vunpack.c.h.b16 %v72
  %v653 = vunpack.c.l.b16 %v73
  %v654 = vunpack.c.h.b16 %v73
  %v655 = vunpack.c.l.b16 %v74
  %v656 = vunpack.c.h.b16 %v74
  %v657 = vunpack.c.l.b16 %v75
  %v658 = vunpack.c.h.b16 %v75
  %v659 = vunpack.c.l.b16 %v76
  %v660 = vunpack.c.h.b16 %v76
  %v661 = vunpack.c.l.b16 %v77
  %v662 = vunpack.c.h.b16 %v77
  %v663 = vunpack.c.l.b16 %v78
  %v664 = vunpack.c.h.b16 %v78
  %v665 = vunpack.c.l.b16 %v79
  %v666 = vunpack.c.h.b16 %v79
  %v667 = vunpack.c.l.b16 %v80
  %v668 = vunpack.c.h.b16 %v80
  %v669 = vunpack.c.l.b16 %v81
  %v670 = vunpack.c.h.b16 %v81
  %v671 = vunpack.c.l.b16 %v82
  %v672 = vunpack.c.h.b16 %v82
  %v673 = vunpack.c.l.b16 %v83
  %v674 = vunpack.c.h.b16 %v83
  %v675 = vunpack.c.l.b16 %v84
  %v676 = vunpack.c.h.b16 %v84
  %v677 = vunpack.c.l.b16 %v85
  %v678 = vunpack.c.h.b16 %v85
  %v679 = vunpack.c.l.b16 %v86
  %v680 = vunpack.c.h.b16 %v86
  %v681 = vunpack.c.l.b16 %v87
  %v682 = vunpack.c.h.b16 %v87
  %v683 = vunpack.c.l.b16 %v88
  %v684 = vunpack.c.h.b16 %v88
  %v685 = vunpack.c.l.b16 %v89
  %v686 = vunpack.c.h.b16 %v89
  %v687 = vunpack.c.l.b16 %v90
  %v688 = vunpack.c.h.b16 %v90
  %v689 = vunpack.c.l.b16 %v91
  %v690 = vunpack.c.h.b16 %v91
  %v691 = vunpack.c.l.b16 %v92
  %v692 = vunpack.c.h.b16 %v92
  %v693 = vunpack.c.l.b16 %v93
  %v694 = vunpack.c.h.b16 %v93
  %v695 = vunpack.c.l.b16 %v94
  %v696 = vunpack.c.h.b16 %v94
  %v697 = vunpack.c.l.b16 %v95
  %v698 = vunpack.c.h.b16 %v95
  %v699 = vunpack.c.l.b16 %v96
  %v700 = vunpack.c.h.b16 %v96
  %v701 = vunpack.c.l.b16 %v97
  %v702 = vunpack.c.h.b16 %v97
  %v703 = vunpack.c.l.b16 %v98
  %v704 = vunpack.c.h.b16 %v98
  %v705 = vunpack.c.l.b16 %v99
  %v706 = vunpack.c.h.b16 %v99
  %v707 = vunpack.c.l.b16 %v100
  %v708 = vunpack.c.h.b16 %v100
  %v709 = vunpack.c.l.b16 %v101
  %v710 = vunpack.c.h.b16 %v101
  %v711 = vunpack.c.l.b16 %v102
  %v712 = vunpack.c.h.b16 %v102
  %v713 = vunpack.c.l.b16 %v103
  %v714 = vunpack.c.h.b16 %v103
  %v715 = vunpack.c.l.b16 %v104
  %v716 = vunpack.c.h.b16 %v104
  %v717 = vunpack.c.l.b16 %v105
  %v718 = vunpack.c.h.b16 %v105
  %v719 = vunpack.c.l.b16 %v106
  %v720 = vunpack.c.h.b16 %v106
  %v721 = vunpack.c.l.b16 %v107
  %v722 = vunpack.c.h.b16 %v107
  %v723 = vunpack.c.l.b16 %v108
  %v724 = vunpack.c.h.b16 %v108
  %v725 = vunpack.c.l.b16 %v109
  %v726 = vunpack.c.h.b16 %v109
  %v727 = vunpack.c.l.b16 %v110
  %v728 = vunpack.c.h.b16 %v110
  %v729 = vunpack.c.l.b16 %v111
  %v730 = vunpack.c.h.b16 %v111
  %v731 = vunpack.c.l.b16 %v112
  %v732 = vunpack.c.h.b16 %v112
  %v733 = vunpack.c.l.b16 %v113
  %v734 = vunpack.c.h.b16 %v113
  %v735 = vunpack.c.l.b16 %v114
  %v736 = vunpack.c.h.b16 %v114
  %v737 = vunpack.c.l.b16 %v115
  %v738 = vunpack.c.h.b16 %v115
  %v739 = vunpack.c.l.b16 %v116
  %v740 = vunpack.c.h.b16 %v116
  %v741 = vunpack.c.l.b16 %v117
  %v742 = vunpack.c.h.b16 %v117
  %v743 = vunpack.c.l.b16 %v118
  %v744 = vunpack.c.h.b16 %v118
  %v745 = vunpack.c.l.b16 %v119
  %v746 = vunpack.c.h.b16 %v119
  %v747 = vunpack.c.l.b16 %v120
  %v748 = vunpack.c.h.b16 %v120
  %v749 = vunpack.c.l.b16 %v121
  %v750 = vunpack.c.h.b16 %v121
  %v751 = vunpack.c.l.b16 %v122
  %v752 = vunpack.c.h.b16 %v122
  %v753 = vunpack.c.l.b16 %v123
  %v754 = vunpack.c.h.b16 %v123
  %v755 = vunpack.c.l.b16 %v124
  %v756 = vunpack.c.h.b16 %v124
  %v757 = vunpack.c.l.b16 %v125
  %v758 = vunpack.c.h.b16 %v125
  %v759 = vunpack.c.l.b16 %v126
  %v760 = vunpack.c.h.b16 %v126
  %v761 = vunpack.c.l.b16 %v127
  %v762 = vunpack.c.h.b16 %v127
  %v763 = vunpack.c.l.b16 %v128
  %v764 = vunpack.c.h.b16 %v128
  %v765 = vunpack.c.l.b16 %v129
  %v766 = vunpack.c.h.b16 %v129
  %v767 = vunpack.c.l.b16 %v130
  %v768 = vunpack.c.h.b16 %v130
  %v769 = vunpack.c.l.b16 %v131
  %v770 = vunpack.c.h.b16 %v131
  %v771 = vunpack.c.l.b16 %v132
  %v772 = vunpack.c.h.b16 %v132
  %v773 = vunpack.c.l.b16 %v133
  %v774 = vunpack.c.h.b16 %v133
  %v775 = vunpack.c.l.b16 %v134
  %v776 = vunpack.c.h.b16 %v134
  %v777 = vunpack.c.l.b16 %v135
  %v778 = vunpack.c.h.b16 %v135
  %v779 = vunpack.c.l.b16 %v136
  %v780 = vunpack.c.h.b16 %v136
  %v781 = vunpack.c.l.b16 %v137
  %v782 = vunpack.c.h.b16 %v137
  %v783 = vunpack.c.l.b16 %v138
  %v784 = vunpack.c.h.b16 %v138
  %v785 = vunpack.c.l.b16 %v139
  %v786 = vunpack.c.h.b16 %v139
  %v787 = vunpack.c.l.b16 %v140
  %v788 = vunpack.c.h.b16 %v140
  %v789 = vunpack.c.l.b16 %v141
  %v790 = vunpack.c.h.b16 %v141
  %v791 = vunpack.c.l.b16 %v142
  %v792 = vunpack.c.h.b16 %v142
  %v793 = vunpack.c.l.b16 %v143
  %v794 = vunpack.c.h.b16 %v143
  %v795 = vunpack.c.l.b16 %v144
  %v796 = vunpack.c.h.b16 %v144
  %v797 = vunpack.c.l.b16 %v145
  %v798 = vunpack.c.h.b16 %v145
  %v799 = vunpack.c.l.b16 %v146
  %v800 = vunpack.c.h.b16 %v146
  %v801 = vunpack.c.l.b16 %v147
  %v802 = vunpack.c.h.b16 %v147
  %v803 = vunpack.c.l.b16 %v148
  %v804 = vunpack.c.h.b16 %v148
  %v805 = vunpack.c.l.b16 %v149
  %v806 = vunpack.c.h.b16 %v149
  %v807 = vunpack.c.l.b16 %v150
  %v808 = vunpack.c.h.b16 %v150
  %v809 = vunpack.c.l.b16 %v151
  %v810 = vunpack.c.h.b16 %v151
  %v811 = vunpack.c.l.b16 %v152
  %v812 = vunpack.c.h.b16 %v152
  %v813 = vunpack.c.l.b16 %v153
  %v814 = vunpack.c.h.b16 %v153
  %v815 = vunpack.c.l.b16 %v154
  %v816 = vunpack.c.h.b16 %v154
  %v817 = vunpack.c.l.b16 %v155
  %v818 = vunpack.c.h.b16 %v155
  %v819 = vunpack.c.l.b16 %v156
  %v820 = vunpack.c.h.b16 %v156
  %v821 = vunpack.c.l.b16 %v157
  %v822 = vunpack.c.h.b16 %v157
  %v823 = vunpack.c.l.b16 %v158
  %v824 = vunpack.c.h.b16 %v158
  %v825 = vunpack.c.l.b16 %v159
  %v826 = vunpack.c.h.b16 %v159
  %v827 = vunpack.c.l.b16 %v160
  %v828 = vunpack.c.h.b16 %v160
  %v829 = vunpack.c.l.b16 %v161
  %v830 = vunpack.c.h.b16 %v161
  %v831 = vunpack.c.l.b16 %v162
  %v832 = vunpack.c.h.b16 %v162
  %v833 = vunpack.c.l.b16 %v163
  %v834 = vunpack.c.h.b16 %v163
  %v835 = vunpack.c.l.b16 %v164
  %v836 = vunpack.c.h.b16 %v164
  %v837 = vunpack.c.l.b16 %v165
  %v838 = vunpack.c.h.b16 %v165
  %v839 = vunpack.c.l.b16 %v166
  %v840 = vunpack.c.h.b16 %v166
  %v841 = vunpack.c.l.b16 %v167
  %v842 = vunpack.c.h.b16 %v167
  %v843 = vunpack.c.l.b16 %v168
  %v844 = vunpack.c.h.b16 %v168
  %v845 = vunpack.c.l.b16 %v169
  %v846 = vunpack.c.h.b16 %v169
  %v847 = vunpack.c.l.b16 %v170
  %v848 = vunpack.c.h.b16 %v170
  %v849 = vunpack.c.l.b16 %v171
  %v850 = vunpack.c.h.b16 %v171
  %v851 = vunpack.c.l.b16 %v172
  %v852 = vunpack.c.h.b16 %v172
  %v853 = vunpack.c.l.b16 %v173
  %v854 = vunpack.c.h.b16 %v173
  %v855 = vunpack.c.l.b16 %v174
  %v856 = vunpack.c.h.b16 %v174
  %v857 = vunpack.c.l.b16 %v175
  %v858 = vunpack.c.h.b16 %v175
  %v859 = vunpack.c.l.b16 %v176
  %v860 = vunpack.c.h.b16 %v176
  %v861 = vunpack.c.l.b16 %v177
  %v862 = vunpack.c.h.b16 %v177
  %v863 = vunpack.c.l.b16 %v178
  %v864 = vunpack.c.h.b16 %v178
  %v865 = vunpack.c.l.b16 %v179
  %v866 = vunpack.c.h.b16 %v179
  %v867 = vunpack.c.l.b16 %v180
  %v868 = vunpack.c.h.b16 %v180
  %v869 = vunpack.c.l.b16 %v181
  %v870 = vunpack.c.h.b16 %v181
  %v871 = vunpack.c.l.b16 %v182
  %v872 = vunpack.c.h.b16 %v182
  %v873 = vunpack.c.l.b16 %v183
  %v874 = vunpack.c.h.b16 %v183
  %v875 = vunpack.c.l.b16 %v184
  %v876 = vunpack.c.h.b16 %v184
  %v877 = vunpack.c.l.b16 %v185
  %v878 = vunpack.c.h.b16 %v185
  %v879 = vunpack.c.l.b16 %v186
  %v880 = vunpack.c.h.b16 %v186
  %v881 = vunpack.c.l.b16 %v187
  %v882 = vunpack.c.h.b16 %v187
  %v883 = vunpack.c.l.b16 %v188
  %v884 = vunpack.c.h.b16 %v188
  %v885 = vunpack.c.l.b16 %v189
  %v886 = vunpack.c.h.b16 %v189
  %v887 = vunpack.c.l.b16 %v190
  %v888 = vunpack.c.h.b16 %v190
  %v889 = vunpack.c.l.b16 %v191
  %v890 = vunpack.c.h.b16 %v191
  %v891 = vunpack.c.l.b16 %v192
  %v892 = vunpack.c.h.b16 %v192
  %v893 = vunpack.c.l.b16 %v193
  %v894 = vunpack.c.h.b16 %v193
  %v895 = vunpack.c.l.b16 %v194
  %v896 = vunpack.c.h.b16 %v194
  %v897 = vunpack.c.l.b16 %v195
  %v898 = vunpack.c.h.b16 %v195
  %v899 = vunpack.c.l.b16 %v196
  %v900 = vunpack.c.h.b16 %v196
  %v901 = vunpack.c.l.b16 %v197
  %v902 = vunpack.c.h.b16 %v197
  %v903 = vunpack.c.l.b16 %v198
  %v904 = vunpack.c.h.b16 %v198
  %v905 = vunpack.c.l.b16 %v199
  %v906 = vunpack.c.h.b16 %v199
  %v907 = vunpack.c.l.b16 %v200
  %v908 = vunpack.c.h.b16 %v200
  %v909 = vunpack.c.l.b16 %v201
  %v910 = vunpack.c.h.b16 %v201
  %v911 = vunpack.c.l.b16 %v202
  %v912 = vunpack.c.h.b16 %v202
  %v913 = vunpack.c.l.b16 %v203
  %v914 = vunpack.c.h.b16 %v203
  %v915 = vunpack.c.l.b16 %v204
  %v916 = vunpack.c.h.b16 %v204
  %v917 = vunpack.c.l.b16 %v205
  %v918 = vunpack.c.h.b16 %v205
  %v919 = vunpack.c.l.b16 %v206
  %v920 = vunpack.c.h.b16 %v206
  %v921 = vunpack.c.l.b16 %v207
  %v922 = vunpack.c.h.b16 %v207
  %v923 = vunpack.c.l.b16 %v208
  %v924 = vunpack.c.h.b16 %v208
  %v925 = vunpack.c.l.b16 %v209
  %v926 = vunpack.c.h.b16 %v209
  %v927 = vunpack.c.l.b16 %v210
  %v928 = vunpack.c.h.b16 %v210
  %v929 = vunpack.c.l.b16 %v211
  %v930 = vunpack.c.h.b16 %v211
  %v931 = vunpack.c.l.b16 %v212
  %v932 = vunpack.c.h.b16 %v212
  %v933 = vunpack.c.l.b16 %v213
  %v934 = vunpack.c.h.b16 %v213
  %v935 = vunpack.c.l.b16 %v214
  %v936 = vunpack.c.h.b16 %v214
  %v937 = vunpack.c.l.b16 %v215
  %v938 = vunpack.c.h.b16 %v215
  %v939 = vunpack.c.l.b16 %v216
  %v940 = vunpack.c.h.b16 %v216
  %v941 = vunpack.c.l.b16 %v217
  %v942 = vunpack.c.h.b16 %v217
  %v943 = vunpack.c.l.b16 %v218
  %v944 = vunpack.c.h.b16 %v218
  %v945 = vunpack.c.l.b16 %v219
  %v946 = vunpack.c.h.b16 %v219
  %v947 = vunpack.c.l.b16 %v220
  %v948 = vunpack.c.h.b16 %v220
  %v949 = vunpack.c.l.b16 %v221
  %v950 = vunpack.c.h.b16 %v221
  %v951 = vunpack.c.l.b16 %v222
  %v952 = vunpack.c.h.b16 %v222
  %v953 = vunpack.c.l.b16 %v223
  %v954 = vunpack.c.h.b16 %v223
  %v955 = vunpack.c.l.b16 %v224
  %v956 = vunpack.c.h.b16 %v224
  %v957 = vunpack.c.l.b16 %v225
  %v958 = vunpack.c.h.b16 %v225
  %v959 = vunpack.c.l.b16 %v226
  %v960 = vunpack.c.h.b16 %v226
  %v961 = vunpack.c.l.b16 %v227
  %v962 = vunpack.c.h.b16 %v227
  %v963 = vunpack.c.l.b16 %v228
  %v964 = vunpack.c.h.b16 %v228
  %v965 = vunpack.c.l.b16 %v229
  %v966 = vunpack.c.h.b16 %v229
  %v967 = vunpack.c.l.b16 %v230
  %v968 = vunpack.c.h.b16 %v230
  %v969 = vunpack.c.l.b16 %v231
  %v970 = vunpack.c.h.b16 %v231
  %v971 = vunpack.c.l.b16 %v232
  %v972 = vunpack.c.h.b16 %v232
  %v973 = vunpack.c.l.b16 %v233
  %v974 = vunpack.c.h.b16 %v233
  %v975 = vunpack.c.l.b16 %v234
  %v976 = vunpack.c.h.b16 %v234
  %v977 = vunpack.c.l.b16 %v235
  %v978 = vunpack.c.h.b16 %v235
  %v979 = vunpack.c.l.b16 %v236
  %v980 = vunpack.c.h.b16 %v236
  %v981 = vunpack.c.l.b16 %v237
  %v982 = vunpack.c.h.b16 %v237
  %v983 = vunpack.c.l.b16 %v238
  %v984 = vunpack.c.h.b16 %v238
  %v985 = vunpack.c.l.b16 %v239
  %v986 = vunpack.c.h.b16 %v239
  %v987 = vunpack.c.l.b16 %v240
  %v988 = vunpack.c.h.b16 %v240
  %v989 = vunpack.c.l.b16 %v241
  %v990 = vunpack.c.h.b16 %v241
  %v991 = vunpack.c.l.b16 %v242
  %v992 = vunpack.c.h.b16 %v242
  %v993 = vunpack.c.l.b16 %v243
  %v994 = vunpack.c.h.b16 %v243
  %v995 = vunpack.c.l.b16 %v244
  %v996 = vunpack.c.h.b16 %v244
  %v997 = vunpack.c.l.b16 %v245
  %v998 = vunpack.c.h.b16 %v245
  %v999 = vunpack.c.l.b16 %v246
  %v1000 = vunpack.c.h.b16 %v246
  %v1001 = vunpack.c.l.b16 %v247
  %v1002 = vunpack.c.h.b16 %v247
  %v1003 = vunpack.c.l.b16 %v248
  %v1004 = vunpack.c.h.b16 %v248
  %v1005 = vunpack.c.l.b16 %v249
  %v1006 = vunpack.c.h.b16 %v249
  %v1007 = vunpack.c.l.b16 %v250
  %v1008 = vunpack.c.h.b16 %v250
  %v1009 = vunpack.c.l.b16 %v251
  %v1010 = vunpack.c.h.b16 %v251
  %v1011 = vunpack.c.l.b16 %v252
  %v1012 = vunpack.c.h.b16 %v252
  %v1013 = vunpack.c.l.b16 %v253
  %v1014 = vunpack.c.h.b16 %v253
  %v1015 = vunpack.c.l.b16 %v254
  %v1016 = vunpack.c.h.b16 %v254
  %v1017 = vunpack.c.l.b16 %v255
  %v1018 = vunpack.c.h.b16 %v255
  %v1019 = vunpack.c.l.b16 %v256
  %v1020 = vunpack.c.h.b16 %v256
  %v1021 = vunpack.c.l.b16 %v257
  %v1022 = vunpack.c.h.b16 %v257
  %v1023 = vunpack.c.l.b16 %v258
  %v1024 = vunpack.c.h.b16 %v258
  %v1025 = vunpack.c.l.b16 %v259
  %v1026 = vunpack.c.h.b16 %v259
  %v1027 = vunpack.c.l.b16 %v260
  %v1028 = vunpack.c.h.b16 %v260
  %v1029 = vunpack.c.l.b16 %v261
  %v1030 = vunpack.c.h.b16 %v261
  %v1031 = vunpack.c.l.b16 %v262
  %v1032 = vunpack.c.h.b16 %v262
  %v1033 = vunpack.c.l.b16 %v263
  %v1034 = vunpack.c.h.b16 %v263
  %v1035 = vunpack.c.l.b16 %v264
  %v1036 = vunpack.c.h.b16 %v264
  %v1037 = vunpack.c.l.b16 %v265
  %v1038 = vunpack.c.h.b16 %v265
  %v1039 = vunpack.c.l.b16 %v266
  %v1040 = vunpack.c.h.b16 %v266
  %v1041 = vunpack.c.l.b16 %v267
  %v1042 = vunpack.c.h.b16 %v267
  %v1043 = vpack.c.b16 %v547, %v531
  %v1044 = vpack.c.b16 %v548, %v532
  %v1045 = vpack.c.b16 %v549, %v533
  %v1046 = vpack.c.b16 %v550, %v534
  %v1047 = vpack.c.b16 %v551, %v535
  %v1048 = vpack.c.b16 %v552, %v536
  %v1049 = vpack.c.b16 %v553, %v537
  %v1050 = vpack.c.b16 %v554, %v538
  %v1051 = vpack.c.b16 %v555, %v539
  %v1052 = vpack.c.b16 %v556, %v540
  %v1053 = vpack.c.b16 %v557, %v541
  %v1054 = vpack.c.b16 %v558, %v542
  %v1055 = vpack.c.b16 %v559, %v543
  %v1056 = vpack.c.b16 %v560, %v544
  %v1057 = vpack.c.b16 %v561, %v545
  %v1058 = vpack.c.b16 %v562, %v546
  %v1059 = vpack.c.b16 %v579, %v563
  %v1060 = vpack.c.b16 %v580, %v564
  %v1061 = vpack.c.b16 %v581, %v565
  %v1062 = vpack.c.b16 %v582, %v566
  %v1063 = vpack.c.b16 %v583, %v567
  %v1064 = vpack.c.b16 %v584, %v568
  %v1065 = vpack.c.b16 %v585, %v569
  %v1066 = vpack.c.b16 %v586, %v570
  %v1067 = vpack.c.b16 %v587, %v571
  %v1068 = vpack.c.b16 %v588, %v572
  %v1069 = vpack.c.b16 %v589, %v573
  %v1070 = vpack.c.b16 %v590, %v574
  %v1071 = vpack.c.b16 %v591, %v575
  %v1072 = vpack.c.b16 %v592, %v576
  %v1073 = vpack.c.b16 %v593, %v577
  %v1074 = vpack.c.b16 %v594, %v578
  %v1075 = vpack.c.b16 %v611, %v595
  %v1076 = vpack.c.b16 %v612, %v596
  %v1077 = vpack.c.b16 %v613, %v597
  %v1078 = vpack.c.b16 %v614, %v598
  %v1079 = vpack.c.b16 %v615, %v599
  %v1080 = vpack.c.b16 %v616, %v600
  %v1081 = vpack.c.b16 %v617, %v601
  %v1082 = vpack.c.b16 %v618, %v602
  %v1083 = vpack.c.b16 %v619, %v603
  %v1084 = vpack.c.b16 %v620, %v604
  %v1085 = vpack.c.b16 %v621, %v605
  %v1086 = vpack.c.b16 %v622, %v606
  %v1087 = vpack.c.b16 %v623, %v607
  %v1088 = vpack.c.b16 %v624, %v608
  %v1089 = vpack.c.b16 %v625, %v609
  %v1090 = vpack.c.b16 %v626, %v610
  %v1091 = vpack.c.b16 %v643, %v627
  %v1092 = vpack.c.b16 %v644, %v628
  %v1093 = vpack.c.b16 %v645, %v629
  %v1094 = vpack.c.b16 %v646, %v630
  %v1095 = vpack.c.b16 %v647, %v631
  %v1096 = vpack.c.b16 %v648, %v632
  %v1097 = vpack.c.b16 %v649, %v633
  %v1098 = vpack.c.b16 %v650, %v634
  %v1099 = vpack.c.b16 %v651, %v635
  %v1100 = vpack.c.b16 %v652, %v636
  %v1101 = vpack.c.b16 %v653, %v637
  %v1102 = vpack.c.b16 %v654, %v638
  %v1103 = vpack.c.b16 %v655, %v639
  %v1104 = vpack.c.b16 %v656, %v640
  %v1105 = vpack.c.b16 %v657, %v641
  %v1106 = vpack.c.b16 %v658, %v642
  %v1107 = vpack.c.b16 %v675, %v659
  %v1108 = vpack.c.b16 %v676, %v660
  %v1109 = vpack.c.b16 %v677, %v661
  %v1110 = vpack.c.b16 %v678, %v662
  %v1111 = vpack.c.b16 %v679, %v663
  %v1112 = vpack.c.b16 %v680, %v664
  %v1113 = vpack.c.b16 %v681, %v665
  %v1114 = vpack.c.b16 %v682, %v666
  %v1115 = vpack.c.b16 %v683, %v667
  %v1116 = vpack.c.b16 %v684, %v668
  %v1117 = vpack.c.b16 %v685, %v669
  %v1118 = vpack.c.b16 %v686, %v670
  %v1119 = vpack.c.b16 %v687, %v671
  %v1120 = vpack.c.b16 %v688, %v672
  %v1121 = vpack.c.b16 %v689, %v673
  %v1122 = vpack.c.b16 %v690, %v674
  %v1123 = vpack.c.b16 %v707, %v691
  %v1124 = vpack.c.b16 %v708, %v692
  %v1125 = vpack.c.b16 %v709, %v693
  %v1126 = vpack.c.b16 %v710, %v694
  %v1127 = vpack.c.b16 %v711, %v695
  %v1128 = vpack.c.b16 %v712, %v696
  %v1129 = vpack.c.b16 %v713, %v697
  %v1130 = vpack.c.b16 %v714, %v698
  %v1131 = vpack.c.b16 %v715, %v699
  %v1132 = vpack.c.b16 %v716, %v700
  %v1133 = vpack.c.b16 %v717, %v701
  %v1134 = vpack.c.b16 %v718, %v702
  %v1135 = vpack.c.b16 %v719, %v703
  %v1136 = vpack.c.b16 %v720, %v704
  %v1137 = vpack.c.b16 %v721, %v705
  %v1138 = vpack.c.b16 %v722, %v706
  %v1139 = vpack.c.b16 %v739, %v723
  %v1140 = vpack.c.b16 %v740, %v724
  %v1141 = vpack.c.b16 %v741, %v725
  %v1142 = vpack.c.b16 %v742, %v726
  %v1143 = vpack.c.b16 %v743, %v727
  %v1144 = vpack.c.b16 %v744, %v728
  %v1145 = vpack.c.b16 %v745, %v729
  %v1146 = vpack.c.b16 %v746, %v730
  %v1147 = vpack.c.b16 %v747, %v731
  %v1148 = vpack.c.b16 %v748, %v732
  %v1149 = vpack.c.b16 %v749, %v733
  %v1150 = vpack.c.b16 %v750, %v734
  %v1151 = vpack.c.b16 %v751, %v735
  %v1152 = vpack.c.b16 %v752, %v736
  %v1153 = vpack.c.b16 %v753, %v737
  %v1154 = vpack.c.b16 %v754, %v738
  %v1155 = vpack.c.b16 %v771, %v755
  %v1156 = vpack.c.b16 %v772, %v756
  %v1157 = vpack.c.b16 %v773, %v757
  %v1158 = vpack.c.b16 %v774, %v758
  %v1159 = vpack.c.b16 %v775, %v759
  %v1160 = vpack.c.b16 %v776, %v760
  %v1161 = vpack.c.b16 %v777, %v761
  %v1162 = vpack.c.b16 %v778, %v762
  %v1163 = vpack.c.b16 %v779, %v763
  %v1164 = vpack.c.b16 %v780, %v764
  %v1165 = vpack.c.b16 %v781, %v765
  %v1166 = vpack.c.b16 %v782, %v766
  %v1167 = vpack.c.b16 %v783, %v767
  %v1168 = vpack.c.b16 %v784, %v768
  %v1169 = vpack.c.b16 %v785, %v769
  %v1170 = vpack.c.b16 %v786, %v770
  %v1171 = vpack.c.b16 %v803, %v787
  %v1172 = vpack.c.b16 %v804, %v788
  %v1173 = vpack.c.b16 %v805, %v789
  %v1174 = vpack.c.b16 %v806, %v790
  %v1175 = vpack.c.b16 %v807, %v791
  %v1176 = vpack.c.b16 %v808, %v792
  %v1177 = vpack.c.b16 %v809, %v793
  %v1178 = vpack.c.b16 %v810, %v794
  %v1179 = vpack.c.b16 %v811, %v795
  %v1180 = vpack.c.b16 %v812, %v796
  %v1181 = vpack.c.b16 %v813, %v797
  %v1182 = vpack.c.b16 %v814, %v798
  %v1183 = vpack.c.b16 %v815, %v799
  %v1184 = vpack.c.b16 %v816, %v800
  %v1185 = vpack.c.b16 %v817, %v801
  %v1186 = vpack.c.b16 %v818, %v802
  %v1187 = vpack.c.b16 %v835, %v819
  %v1188 = vpack.c.b16 %v836, %v820
  %v1189 = vpack.c.b16 %v837, %v821
  %v1190 = vpack.c.b16 %v838, %v822
  %v1191 = vpack.c.b16 %v839, %v823
  %v1192 = vpack.c.b16 %v840, %v824
  %v1193 = vpack.c.b16 %v841, %v825
  %v1194 = vpack.c.b16 %v842, %v826
  %v1195 = vpack.c.b16 %v843, %v827
  %v1196 = vpack.c.b16 %v844, %v828
  %v1197 = vpack.c.b16 %v845, %v829
  %v1198 = vpack.c.b16 %v846, %v830
  %v1199 = vpack.c.b16 %v847, %v831
  %v1200 = vpack.c.b16 %v848, %v832
  %v1201 = vpack.c.b16 %v849, %v833
  %v1202 = vpack.c.b16 %v850, %v834
  %v1203 = vpack.c.b16 %v867, %v851
  %v1204 = vpack.c.b16 %v868, %v852
  %v1205 = vpack.c.b16 %v869, %v853
  %v1206 = vpack.c.b16 %v870, %v854
  %v1207 = vpack.c.b16 %v871, %v855
  %v1208 = vpack.c.b16 %v872, %v856
  %v1209 = vpack.c.b16 %v873, %v857
  %v1210 = vpack.c.b16 %v874, %v858
  %v1211 = vpack.c.b16 %v875, %v859
  %v1212 = vpack.c.b16 %v876, %v860
  %v1213 = vpack.c.b16 %v877, %v861
  %v1214 = vpack.c.b16 %v878, %v862
  %v1215 = vpack.c.b16 %v879, %v863
  %v1216 = vpack.c.b16 %v880, %v864
  %v1217 = vpack.c.b16 %v881, %v865
  %v1218 = vpack.c.b16 %v882, %v866
  %v1219 = vpack.c.b16 %v899, %v883
  %v1220 = vpack.c.b16 %v900, %v884
  %v1221 = vpack.c.b16 %v901, %v885
  %v1222 = vpack.c.b16 %v902, %v886
  %v1223 = vpack.c.b16 %v903, %v887
  %v1224 = vpack.c.b16 %v904, %v888
  %v1225 = vpack.c.b16 %v905, %v889
  %v1226 = vpack.c.b16 %v906, %v890
  %v1227 = vpack.c.b16 %v907, %v891
  %v1228 = vpack.c.b16 %v908, %v892
  %v1229 = vpack.c.b16 %v909, %v893
  %v1230 = vpack.c.b16 %v910, %v894
  %v1231 = vpack.c.b16 %v911, %v895
  %v1232 = vpack.c.b16 %v912, %v896
  %v1233 = vpack.c.b16 %v913, %v897
  %v1234 = vpack.c.b16 %v914, %v898
  %v1235 = vpack.c.b16 %v931, %v915
  %v1236 = vpack.c.b16 %v932, %v916
  %v1237 = vpack.c.b16 %v933, %v917
  %v1238 = vpack.c.b16 %v934, %v918
  %v1239 = vpack.c.b16 %v935, %v919
  %v1240 = vpack.c.b16 %v936, %v920
  %v1241 = vpack.c.b16 %v937, %v921
  %v1242 = vpack.c.b16 %v938, %v922
  %v1243 = vpack.c.b16 %v939, %v923
  %v1244 = vpack.c.b16 %v940, %v924
  %v1245 = vpack.c.b16 %v941, %v925
  %v1246 = vpack.c.b16 %v942, %v926
  %v1247 = vpack.c.b16 %v943, %v927
  %v1248 = vpack.c.b16 %v944, %v928
  %v1249 = vpack.c.b16 %v945, %v929
  %v1250 = vpack.c.b16 %v946, %v930
  %v1251 = vpack.c.b16 %v963, %v947
  %v1252 = vpack.c.b16 %v964, %v948
  %v1253 = vpack.c.b16 %v965, %v949
  %v1254 = vpack.c.b16 %v966, %v950
  %v1255 = vpack.c.b16 %v967, %v951
  %v1256 = vpack.c.b16 %v968, %v952
  %v1257 = vpack.c.b16 %v969, %v953
  %v1258 = vpack.c.b16 %v970, %v954
  %v1259 = vpack.c.b16 %v971, %v955
  %v1260 = vpack.c.b16 %v972, %v956
  %v1261 = vpack.c.b16 %v973, %v957
  %v1262 = vpack.c.b16 %v974, %v958
  %v1263 = vpack.c.b16 %v975, %v959
  %v1264 = vpack.c.b16 %v976, %v960
  %v1265 = vpack.c.b16 %v977, %v961
  %v1266 = vpack.c.b16 %v978, %v962
  %v1267 = vpack.c.b16 %v995, %v979
  %v1268 = vpack.c.b16 %v996, %v980
  %v1269 = vpack.c.b16 %v997, %v981
  %v1270 = vpack.c.b16 %v998, %v982
  %v1271 = vpack.c.b16 %v999, %v983
  %v1272 = vpack.c.b16 %v1000, %v984
  %v1273 = vpack.c.b16 %v1001, %v985
  %v1274 = vpack.c.b16 %v1002, %v986
  %v1275 = vpack.c.b16 %v1003, %v987
  %v1276 = vpack.c.b16 %v1004, %v988
  %v1277 = vpack.c.b16 %v1005, %v989
  %v1278 = vpack.c.b16 %v1006, %v990
  %v1279 = vpack.c.b16 %v1007, %v991
  %v1280 = vpack.c.b16 %v1008, %v992
  %v1281 = vpack.c.b16 %v1009, %v993
  %v1282 = vpack.c.b16 %v1010, %v994
  %v1283 = vpack.c.b16 %v1027, %v1011
  %v1284 = vpack.c.b16 %v1028, %v1012
  %v1285 = vpack.c.b16 %v1029, %v1013
  %v1286 = vpack.c.b16 %v1030, %v1014
  %v1287 = vpack.c.b16 %v1031, %v1015
  %v1288 = vpack.c.b16 %v1032, %v1016
  %v1289 = vpack.c.b16 %v1033, %v1017
  %v1290 = vpack.c.b16 %v1034, %v1018
  %v1291 = vpack.c.b16 %v1035, %v1019
  %v1292 = vpack.c.b16 %v1036, %v1020
  %v1293 = vpack.c.b16 %v1037, %v1021
  %v1294 = vpack.c.b16 %v1038, %v1022
  %v1295 = vpack.c.b16 %v1039, %v1023
  %v1296 = vpack.c.b16 %v1040, %v1024
  %v1297 = vpack.c.b16 %v1041, %v1025
  %v1298 = vpack.c.b16 %v1042, %v1026
  %1555 = vmatpush.bf16.msra.mxu0 %v1155
  %1556 = vmatpush.bf16.msra.mxu0 %v1139
  %1557 = vmatpush.bf16.msra.mxu0 %v1123
  %1558 = vmatpush.bf16.msra.mxu0 %v1107
  %1559 = vmatpush.bf16.msra.mxu0 %v1091
  %1560 = vmatpush.bf16.msra.mxu0 %v1075
  %1561 = vmatpush.bf16.msra.mxu0 %v1059
  %1562 = vmatpush.bf16.msra.mxu0 %v1043
  %1563 = vmatmul.bf16.gmra.mxu0 %v271
  %v1564 = vpop.f32.mrf.mxu0
  %v1565 = vadd.f32 0.0, %v1564
  %v1566 = vpop.f32.mrf.mxu0
  %1567 = vdwg.mxu0
  %1568 = vmatpush.bf16.msra.mxu0 %v1283
  %1569 = vmatpush.bf16.msra.mxu0 %v1267
  %1570 = vmatpush.bf16.msra.mxu0 %v1251
  %1571 = vmatpush.bf16.msra.mxu0 %v1235
  %1572 = vmatpush.bf16.msra.mxu0 %v1219
  %1573 = vmatpush.bf16.msra.mxu0 %v1203
  %1574 = vmatpush.bf16.msra.mxu0 %v1187
  %1575 = vmatpush.bf16.msra.mxu0 %v1171
  %1576 = vmatmul.bf16.gmra.mxu0 %v272
  %v1577 = vpop.f32.mrf.mxu0
  %v1578 = vadd.f32 %v1565, %v1577
  %v1579 = vpop.f32.mrf.mxu0
  %1580 = vdwg.mxu0
  %1581 = vmatpush.bf16.msra.mxu0 %v1156
  %1582 = vmatpush.bf16.msra.mxu0 %v1140
  %1583 = vmatpush.bf16.msra.mxu0 %v1124
  %1584 = vmatpush.bf16.msra.mxu0 %v1108
  %1585 = vmatpush.bf16.msra.mxu0 %v1092
  %1586 = vmatpush.bf16.msra.mxu0 %v1076
  %1587 = vmatpush.bf16.msra.mxu0 %v1060
  %1588 = vmatpush.bf16.msra.mxu0 %v1044
  %1589 = vmatmul.bf16.gmra.mxu0 %v271
  %v1590 = vpop.f32.mrf.mxu0
  %v1591 = vadd.f32 0.0, %v1590
  %v1592 = vpop.f32.mrf.mxu0
  %1593 = vdwg.mxu0
  %1594 = vmatpush.bf16.msra.mxu0 %v1284
  %1595 = vmatpush.bf16.msra.mxu0 %v1268
  %1596 = vmatpush.bf16.msra.mxu0 %v1252
  %1597 = vmatpush.bf16.msra.mxu0 %v1236
  %1598 = vmatpush.bf16.msra.mxu0 %v1220
  %1599 = vmatpush.bf16.msra.mxu0 %v1204
  %1600 = vmatpush.bf16.msra.mxu0 %v1188
  %1601 = vmatpush.bf16.msra.mxu0 %v1172
  %1602 = vmatmul.bf16.gmra.mxu0 %v272
  %v1603 = vpop.f32.mrf.mxu0
  %v1604 = vadd.f32 %v1591, %v1603
  %v1605 = vpop.f32.mrf.mxu0
  %1606 = vdwg.mxu0
  %1607 = vmatpush.bf16.msra.mxu0 %v1157
  %1608 = vmatpush.bf16.msra.mxu0 %v1141
  %1609 = vmatpush.bf16.msra.mxu0 %v1125
  %1610 = vmatpush.bf16.msra.mxu0 %v1109
  %1611 = vmatpush.bf16.msra.mxu0 %v1093
  %1612 = vmatpush.bf16.msra.mxu0 %v1077
  %1613 = vmatpush.bf16.msra.mxu0 %v1061
  %1614 = vmatpush.bf16.msra.mxu0 %v1045
  %1615 = vmatmul.bf16.gmra.mxu0 %v271
  %v1616 = vpop.f32.mrf.mxu0
  %v1617 = vadd.f32 0.0, %v1616
  %v1618 = vpop.f32.mrf.mxu0
  %1619 = vdwg.mxu0
  %1620 = vmatpush.bf16.msra.mxu0 %v1285
  %1621 = vmatpush.bf16.msra.mxu0 %v1269
  %1622 = vmatpush.bf16.msra.mxu0 %v1253
  %1623 = vmatpush.bf16.msra.mxu0 %v1237
  %1624 = vmatpush.bf16.msra.mxu0 %v1221
  %1625 = vmatpush.bf16.msra.mxu0 %v1205
  %1626 = vmatpush.bf16.msra.mxu0 %v1189
  %1627 = vmatpush.bf16.msra.mxu0 %v1173
  %1628 = vmatmul.bf16.gmra.mxu0 %v272
  %v1629 = vpop.f32.mrf.mxu0
  %v1630 = vadd.f32 %v1617, %v1629
  %v1631 = vpop.f32.mrf.mxu0
  %1632 = vdwg.mxu0
  %1633 = vmatpush.bf16.msra.mxu0 %v1158
  %1634 = vmatpush.bf16.msra.mxu0 %v1142
  %1635 = vmatpush.bf16.msra.mxu0 %v1126
  %1636 = vmatpush.bf16.msra.mxu0 %v1110
  %1637 = vmatpush.bf16.msra.mxu0 %v1094
  %1638 = vmatpush.bf16.msra.mxu0 %v1078
  %1639 = vmatpush.bf16.msra.mxu0 %v1062
  %1640 = vmatpush.bf16.msra.mxu0 %v1046
  %1641 = vmatmul.bf16.gmra.mxu0 %v271
  %v1642 = vpop.f32.mrf.mxu0
  %v1643 = vadd.f32 0.0, %v1642
  %v1644 = vpop.f32.mrf.mxu0
  %1645 = vdwg.mxu0
  %1646 = vmatpush.bf16.msra.mxu0 %v1286
  %1647 = vmatpush.bf16.msra.mxu0 %v1270
  %1648 = vmatpush.bf16.msra.mxu0 %v1254
  %1649 = vmatpush.bf16.msra.mxu0 %v1238
  %1650 = vmatpush.bf16.msra.mxu0 %v1222
  %1651 = vmatpush.bf16.msra.mxu0 %v1206
  %1652 = vmatpush.bf16.msra.mxu0 %v1190
  %1653 = vmatpush.bf16.msra.mxu0 %v1174
  %1654 = vmatmul.bf16.gmra.mxu0 %v272
  %v1655 = vpop.f32.mrf.mxu0
  %v1656 = vadd.f32 %v1643, %v1655
  %v1657 = vpop.f32.mrf.mxu0
  %1658 = vdwg.mxu0
  %1659 = vmatpush.bf16.msra.mxu0 %v1159
  %1660 = vmatpush.bf16.msra.mxu0 %v1143
  %1661 = vmatpush.bf16.msra.mxu0 %v1127
  %1662 = vmatpush.bf16.msra.mxu0 %v1111
  %1663 = vmatpush.bf16.msra.mxu0 %v1095
  %1664 = vmatpush.bf16.msra.mxu0 %v1079
  %1665 = vmatpush.bf16.msra.mxu0 %v1063
  %1666 = vmatpush.bf16.msra.mxu0 %v1047
  %1667 = vmatmul.bf16.gmra.mxu0 %v271
  %v1668 = vpop.f32.mrf.mxu0
  %v1669 = vadd.f32 0.0, %v1668
  %v1670 = vpop.f32.mrf.mxu0
  %1671 = vdwg.mxu0
  %1672 = vmatpush.bf16.msra.mxu0 %v1287
  %1673 = vmatpush.bf16.msra.mxu0 %v1271
  %1674 = vmatpush.bf16.msra.mxu0 %v1255
  %1675 = vmatpush.bf16.msra.mxu0 %v1239
  %1676 = vmatpush.bf16.msra.mxu0 %v1223
  %1677 = vmatpush.bf16.msra.mxu0 %v1207
  %1678 = vmatpush.bf16.msra.mxu0 %v1191
  %1679 = vmatpush.bf16.msra.mxu0 %v1175
  %1680 = vmatmul.bf16.gmra.mxu0 %v272
  %v1681 = vpop.f32.mrf.mxu0
  %v1682 = vadd.f32 %v1669, %v1681
  %v1683 = vpop.f32.mrf.mxu0
  %1684 = vdwg.mxu0
  %1685 = vmatpush.bf16.msra.mxu0 %v1160
  %1686 = vmatpush.bf16.msra.mxu0 %v1144
  %1687 = vmatpush.bf16.msra.mxu0 %v1128
  %1688 = vmatpush.bf16.msra.mxu0 %v1112
  %1689 = vmatpush.bf16.msra.mxu0 %v1096
  %1690 = vmatpush.bf16.msra.mxu0 %v1080
  %1691 = vmatpush.bf16.msra.mxu0 %v1064
  %1692 = vmatpush.bf16.msra.mxu0 %v1048
  %1693 = vmatmul.bf16.gmra.mxu0 %v271
  %v1694 = vpop.f32.mrf.mxu0
  %v1695 = vadd.f32 0.0, %v1694
  %v1696 = vpop.f32.mrf.mxu0
  %1697 = vdwg.mxu0
  %1698 = vmatpush.bf16.msra.mxu0 %v1288
  %1699 = vmatpush.bf16.msra.mxu0 %v1272
  %1700 = vmatpush.bf16.msra.mxu0 %v1256
  %1701 = vmatpush.bf16.msra.mxu0 %v1240
  %1702 = vmatpush.bf16.msra.mxu0 %v1224
  %1703 = vmatpush.bf16.msra.mxu0 %v1208
  %1704 = vmatpush.bf16.msra.mxu0 %v1192
  %1705 = vmatpush.bf16.msra.mxu0 %v1176
  %1706 = vmatmul.bf16.gmra.mxu0 %v272
  %v1707 = vpop.f32.mrf.mxu0
  %v1708 = vadd.f32 %v1695, %v1707
  %v1709 = vpop.f32.mrf.mxu0
  %1710 = vdwg.mxu0
  %1711 = vmatpush.bf16.msra.mxu0 %v1161
  %1712 = vmatpush.bf16.msra.mxu0 %v1145
  %1713 = vmatpush.bf16.msra.mxu0 %v1129
  %1714 = vmatpush.bf16.msra.mxu0 %v1113
  %1715 = vmatpush.bf16.msra.mxu0 %v1097
  %1716 = vmatpush.bf16.msra.mxu0 %v1081
  %1717 = vmatpush.bf16.msra.mxu0 %v1065
  %1718 = vmatpush.bf16.msra.mxu0 %v1049
  %1719 = vmatmul.bf16.gmra.mxu0 %v271
  %v1720 = vpop.f32.mrf.mxu0
  %v1721 = vadd.f32 0.0, %v1720
  %v1722 = vpop.f32.mrf.mxu0
  %1723 = vdwg.mxu0
  %1724 = vmatpush.bf16.msra.mxu0 %v1289
  %1725 = vmatpush.bf16.msra.mxu0 %v1273
  %1726 = vmatpush.bf16.msra.mxu0 %v1257
  %1727 = vmatpush.bf16.msra.mxu0 %v1241
  %1728 = vmatpush.bf16.msra.mxu0 %v1225
  %1729 = vmatpush.bf16.msra.mxu0 %v1209
  %1730 = vmatpush.bf16.msra.mxu0 %v1193
  %1731 = vmatpush.bf16.msra.mxu0 %v1177
  %1732 = vmatmul.bf16.gmra.mxu0 %v272
  %v1733 = vpop.f32.mrf.mxu0
  %v1734 = vadd.f32 %v1721, %v1733
  %v1735 = vpop.f32.mrf.mxu0
  %1736 = vdwg.mxu0
  %1737 = vmatpush.bf16.msra.mxu0 %v1162
  %1738 = vmatpush.bf16.msra.mxu0 %v1146
  %1739 = vmatpush.bf16.msra.mxu0 %v1130
  %1740 = vmatpush.bf16.msra.mxu0 %v1114
  %1741 = vmatpush.bf16.msra.mxu0 %v1098
  %1742 = vmatpush.bf16.msra.mxu0 %v1082
  %1743 = vmatpush.bf16.msra.mxu0 %v1066
  %1744 = vmatpush.bf16.msra.mxu0 %v1050
  %1745 = vmatmul.bf16.gmra.mxu0 %v271
  %v1746 = vpop.f32.mrf.mxu0
  %v1747 = vadd.f32 0.0, %v1746
  %v1748 = vpop.f32.mrf.mxu0
  %1749 = vdwg.mxu0
  %1750 = vmatpush.bf16.msra.mxu0 %v1290
  %1751 = vmatpush.bf16.msra.mxu0 %v1274
  %1752 = vmatpush.bf16.msra.mxu0 %v1258
  %1753 = vmatpush.bf16.msra.mxu0 %v1242
  %1754 = vmatpush.bf16.msra.mxu0 %v1226
  %1755 = vmatpush.bf16.msra.mxu0 %v1210
  %1756 = vmatpush.bf16.msra.mxu0 %v1194
  %1757 = vmatpush.bf16.msra.mxu0 %v1178
  %1758 = vmatmul.bf16.gmra.mxu0 %v272
  %v1759 = vpop.f32.mrf.mxu0
  %v1760 = vadd.f32 %v1747, %v1759
  %v1761 = vpop.f32.mrf.mxu0
  %1762 = vdwg.mxu0
  %1763 = vmatpush.bf16.msra.mxu0 %v1163
  %1764 = vmatpush.bf16.msra.mxu0 %v1147
  %1765 = vmatpush.bf16.msra.mxu0 %v1131
  %1766 = vmatpush.bf16.msra.mxu0 %v1115
  %1767 = vmatpush.bf16.msra.mxu0 %v1099
  %1768 = vmatpush.bf16.msra.mxu0 %v1083
  %1769 = vmatpush.bf16.msra.mxu0 %v1067
  %1770 = vmatpush.bf16.msra.mxu0 %v1051
  %1771 = vmatmul.bf16.gmra.mxu0 %v271
  %v1772 = vpop.f32.mrf.mxu0
  %v1773 = vadd.f32 0.0, %v1772
  %v1774 = vpop.f32.mrf.mxu0
  %1775 = vdwg.mxu0
  %1776 = vmatpush.bf16.msra.mxu0 %v1291
  %1777 = vmatpush.bf16.msra.mxu0 %v1275
  %1778 = vmatpush.bf16.msra.mxu0 %v1259
  %1779 = vmatpush.bf16.msra.mxu0 %v1243
  %1780 = vmatpush.bf16.msra.mxu0 %v1227
  %1781 = vmatpush.bf16.msra.mxu0 %v1211
  %1782 = vmatpush.bf16.msra.mxu0 %v1195
  %1783 = vmatpush.bf16.msra.mxu0 %v1179
  %1784 = vmatmul.bf16.gmra.mxu0 %v272
  %v1785 = vpop.f32.mrf.mxu0
  %v1786 = vadd.f32 %v1773, %v1785
  %v1787 = vpop.f32.mrf.mxu0
  %1788 = vdwg.mxu0
  %1789 = vmatpush.bf16.msra.mxu0 %v1164
  %1790 = vmatpush.bf16.msra.mxu0 %v1148
  %1791 = vmatpush.bf16.msra.mxu0 %v1132
  %1792 = vmatpush.bf16.msra.mxu0 %v1116
  %1793 = vmatpush.bf16.msra.mxu0 %v1100
  %1794 = vmatpush.bf16.msra.mxu0 %v1084
  %1795 = vmatpush.bf16.msra.mxu0 %v1068
  %1796 = vmatpush.bf16.msra.mxu0 %v1052
  %1797 = vmatmul.bf16.gmra.mxu0 %v271
  %v1798 = vpop.f32.mrf.mxu0
  %v1799 = vadd.f32 0.0, %v1798
  %v1800 = vpop.f32.mrf.mxu0
  %1801 = vdwg.mxu0
  %1802 = vmatpush.bf16.msra.mxu0 %v1292
  %1803 = vmatpush.bf16.msra.mxu0 %v1276
  %1804 = vmatpush.bf16.msra.mxu0 %v1260
  %1805 = vmatpush.bf16.msra.mxu0 %v1244
  %1806 = vmatpush.bf16.msra.mxu0 %v1228
  %1807 = vmatpush.bf16.msra.mxu0 %v1212
  %1808 = vmatpush.bf16.msra.mxu0 %v1196
  %1809 = vmatpush.bf16.msra.mxu0 %v1180
  %1810 = vmatmul.bf16.gmra.mxu0 %v272
  %v1811 = vpop.f32.mrf.mxu0
  %v1812 = vadd.f32 %v1799, %v1811
  %v1813 = vpop.f32.mrf.mxu0
  %1814 = vdwg.mxu0
  %1815 = vmatpush.bf16.msra.mxu0 %v1165
  %1816 = vmatpush.bf16.msra.mxu0 %v1149
  %1817 = vmatpush.bf16.msra.mxu0 %v1133
  %1818 = vmatpush.bf16.msra.mxu0 %v1117
  %1819 = vmatpush.bf16.msra.mxu0 %v1101
  %1820 = vmatpush.bf16.msra.mxu0 %v1085
  %1821 = vmatpush.bf16.msra.mxu0 %v1069
  %1822 = vmatpush.bf16.msra.mxu0 %v1053
  %1823 = vmatmul.bf16.gmra.mxu0 %v271
  %v1824 = vpop.f32.mrf.mxu0
  %v1825 = vadd.f32 0.0, %v1824
  %v1826 = vpop.f32.mrf.mxu0
  %1827 = vdwg.mxu0
  %1828 = vmatpush.bf16.msra.mxu0 %v1293
  %1829 = vmatpush.bf16.msra.mxu0 %v1277
  %1830 = vmatpush.bf16.msra.mxu0 %v1261
  %1831 = vmatpush.bf16.msra.mxu0 %v1245
  %1832 = vmatpush.bf16.msra.mxu0 %v1229
  %1833 = vmatpush.bf16.msra.mxu0 %v1213
  %1834 = vmatpush.bf16.msra.mxu0 %v1197
  %1835 = vmatpush.bf16.msra.mxu0 %v1181
  %1836 = vmatmul.bf16.gmra.mxu0 %v272
  %v1837 = vpop.f32.mrf.mxu0
  %v1838 = vadd.f32 %v1825, %v1837
  %v1839 = vpop.f32.mrf.mxu0
  %1840 = vdwg.mxu0
  %1841 = vmatpush.bf16.msra.mxu0 %v1166
  %1842 = vmatpush.bf16.msra.mxu0 %v1150
  %1843 = vmatpush.bf16.msra.mxu0 %v1134
  %1844 = vmatpush.bf16.msra.mxu0 %v1118
  %1845 = vmatpush.bf16.msra.mxu0 %v1102
  %1846 = vmatpush.bf16.msra.mxu0 %v1086
  %1847 = vmatpush.bf16.msra.mxu0 %v1070
  %1848 = vmatpush.bf16.msra.mxu0 %v1054
  %1849 = vmatmul.bf16.gmra.mxu0 %v271
  %v1850 = vpop.f32.mrf.mxu0
  %v1851 = vadd.f32 0.0, %v1850
  %v1852 = vpop.f32.mrf.mxu0
  %1853 = vdwg.mxu0
  %1854 = vmatpush.bf16.msra.mxu0 %v1294
  %1855 = vmatpush.bf16.msra.mxu0 %v1278
  %1856 = vmatpush.bf16.msra.mxu0 %v1262
  %1857 = vmatpush.bf16.msra.mxu0 %v1246
  %1858 = vmatpush.bf16.msra.mxu0 %v1230
  %1859 = vmatpush.bf16.msra.mxu0 %v1214
  %1860 = vmatpush.bf16.msra.mxu0 %v1198
  %1861 = vmatpush.bf16.msra.mxu0 %v1182
  %1862 = vmatmul.bf16.gmra.mxu0 %v272
  %v1863 = vpop.f32.mrf.mxu0
  %v1864 = vadd.f32 %v1851, %v1863
  %v1865 = vpop.f32.mrf.mxu0
  %1866 = vdwg.mxu0
  %1867 = vmatpush.bf16.msra.mxu0 %v1167
  %1868 = vmatpush.bf16.msra.mxu0 %v1151
  %1869 = vmatpush.bf16.msra.mxu0 %v1135
  %1870 = vmatpush.bf16.msra.mxu0 %v1119
  %1871 = vmatpush.bf16.msra.mxu0 %v1103
  %1872 = vmatpush.bf16.msra.mxu0 %v1087
  %1873 = vmatpush.bf16.msra.mxu0 %v1071
  %1874 = vmatpush.bf16.msra.mxu0 %v1055
  %1875 = vmatmul.bf16.gmra.mxu0 %v271
  %v1876 = vpop.f32.mrf.mxu0
  %v1877 = vadd.f32 0.0, %v1876
  %v1878 = vpop.f32.mrf.mxu0
  %1879 = vdwg.mxu0
  %1880 = vmatpush.bf16.msra.mxu0 %v1295
  %1881 = vmatpush.bf16.msra.mxu0 %v1279
  %1882 = vmatpush.bf16.msra.mxu0 %v1263
  %1883 = vmatpush.bf16.msra.mxu0 %v1247
  %1884 = vmatpush.bf16.msra.mxu0 %v1231
  %1885 = vmatpush.bf16.msra.mxu0 %v1215
  %1886 = vmatpush.bf16.msra.mxu0 %v1199
  %1887 = vmatpush.bf16.msra.mxu0 %v1183
  %1888 = vmatmul.bf16.gmra.mxu0 %v272
  %v1889 = vpop.f32.mrf.mxu0
  %v1890 = vadd.f32 %v1877, %v1889
  %v1891 = vpop.f32.mrf.mxu0
  %1892 = vdwg.mxu0
  %1893 = vmatpush.bf16.msra.mxu0 %v1168
  %1894 = vmatpush.bf16.msra.mxu0 %v1152
  %1895 = vmatpush.bf16.msra.mxu0 %v1136
  %1896 = vmatpush.bf16.msra.mxu0 %v1120
  %1897 = vmatpush.bf16.msra.mxu0 %v1104
  %1898 = vmatpush.bf16.msra.mxu0 %v1088
  %1899 = vmatpush.bf16.msra.mxu0 %v1072
  %1900 = vmatpush.bf16.msra.mxu0 %v1056
  %1901 = vmatmul.bf16.gmra.mxu0 %v271
  %v1902 = vpop.f32.mrf.mxu0
  %v1903 = vadd.f32 0.0, %v1902
  %v1904 = vpop.f32.mrf.mxu0
  %1905 = vdwg.mxu0
  %1906 = vmatpush.bf16.msra.mxu0 %v1296
  %1907 = vmatpush.bf16.msra.mxu0 %v1280
  %1908 = vmatpush.bf16.msra.mxu0 %v1264
  %1909 = vmatpush.bf16.msra.mxu0 %v1248
  %1910 = vmatpush.bf16.msra.mxu0 %v1232
  %1911 = vmatpush.bf16.msra.mxu0 %v1216
  %1912 = vmatpush.bf16.msra.mxu0 %v1200
  %1913 = vmatpush.bf16.msra.mxu0 %v1184
  %1914 = vmatmul.bf16.gmra.mxu0 %v272
  %v1915 = vpop.f32.mrf.mxu0
  %v1916 = vadd.f32 %v1903, %v1915
  %v1917 = vpop.f32.mrf.mxu0
  %1918 = vdwg.mxu0
  %1919 = vmatpush.bf16.msra.mxu0 %v1169
  %1920 = vmatpush.bf16.msra.mxu0 %v1153
  %1921 = vmatpush.bf16.msra.mxu0 %v1137
  %1922 = vmatpush.bf16.msra.mxu0 %v1121
  %1923 = vmatpush.bf16.msra.mxu0 %v1105
  %1924 = vmatpush.bf16.msra.mxu0 %v1089
  %1925 = vmatpush.bf16.msra.mxu0 %v1073
  %1926 = vmatpush.bf16.msra.mxu0 %v1057
  %1927 = vmatmul.bf16.gmra.mxu0 %v271
  %v1928 = vpop.f32.mrf.mxu0
  %v1929 = vadd.f32 0.0, %v1928
  %v1930 = vpop.f32.mrf.mxu0
  %1931 = vdwg.mxu0
  %1932 = vmatpush.bf16.msra.mxu0 %v1297
  %1933 = vmatpush.bf16.msra.mxu0 %v1281
  %1934 = vmatpush.bf16.msra.mxu0 %v1265
  %1935 = vmatpush.bf16.msra.mxu0 %v1249
  %1936 = vmatpush.bf16.msra.mxu0 %v1233
  %1937 = vmatpush.bf16.msra.mxu0 %v1217
  %1938 = vmatpush.bf16.msra.mxu0 %v1201
  %1939 = vmatpush.bf16.msra.mxu0 %v1185
  %1940 = vmatmul.bf16.gmra.mxu0 %v272
  %v1941 = vpop.f32.mrf.mxu0
  %v1942 = vadd.f32 %v1929, %v1941
  %v1943 = vpop.f32.mrf.mxu0
  %1944 = vdwg.mxu0
  %1945 = vmatpush.bf16.msra.mxu0 %v1170
  %1946 = vmatpush.bf16.msra.mxu0 %v1154
  %1947 = vmatpush.bf16.msra.mxu0 %v1138
  %1948 = vmatpush.bf16.msra.mxu0 %v1122
  %1949 = vmatpush.bf16.msra.mxu0 %v1106
  %1950 = vmatpush.bf16.msra.mxu0 %v1090
  %1951 = vmatpush.bf16.msra.mxu0 %v1074
  %1952 = vmatpush.bf16.msra.mxu0 %v1058
  %1953 = vmatmul.bf16.gmra.mxu0 %v271
  %v1954 = vpop.f32.mrf.mxu0
  %v1955 = vadd.f32 0.0, %v1954
  %v1956 = vpop.f32.mrf.mxu0
  %1957 = vdwg.mxu0
  %1958 = vmatpush.bf16.msra.mxu0 %v1298
  %1959 = vmatpush.bf16.msra.mxu0 %v1282
  %1960 = vmatpush.bf16.msra.mxu0 %v1266
  %1961 = vmatpush.bf16.msra.mxu0 %v1250
  %1962 = vmatpush.bf16.msra.mxu0 %v1234
  %1963 = vmatpush.bf16.msra.mxu0 %v1218
  %1964 = vmatpush.bf16.msra.mxu0 %v1202
  %1965 = vmatpush.bf16.msra.mxu0 %v1186
  %1966 = vmatmul.bf16.gmra.mxu0 %v272
  %v1967 = vpop.f32.mrf.mxu0
  %v1968 = vadd.f32 %v1955, %v1967
  %v1969 = vpop.f32.mrf.mxu0
  %1970 = vdwg.mxu0
  %1971 = vst [vmem:[%s2] sm:$0xff] %v1578
  %1972 = vst [vmem:[%s2 + $0x8] sm:$0xff] %v1604
  %1973 = vst [vmem:[%s2 + $0x10] sm:$0xff] %v1630
  %1974 = vst [vmem:[%s2 + $0x18] sm:$0xff] %v1656
  %1975 = vst [vmem:[%s2 + $0x20] sm:$0xff] %v1682
  %1976 = vst [vmem:[%s2 + $0x28] sm:$0xff] %v1708
  %1977 = vst [vmem:[%s2 + $0x30] sm:$0xff] %v1734
  %1978 = vst [vmem:[%s2 + $0x38] sm:$0xff] %v1760
  %1979 = vst [vmem:[%s2 + $0x40] sm:$0xff] %v1786
  %1980 = vst [vmem:[%s2 + $0x48] sm:$0xff] %v1812
  %1981 = vst [vmem:[%s2 + $0x50] sm:$0xff] %v1838
  %1982 = vst [vmem:[%s2 + $0x58] sm:$0xff] %v1864
  %1983 = vst [vmem:[%s2 + $0x60] sm:$0xff] %v1890
  %1984 = vst [vmem:[%s2 + $0x68] sm:$0xff] %v1916
  %1985 = vst [vmem:[%s2 + $0x70] sm:$0xff] %v1942
  %1986 = vst [vmem:[%s2 + $0x78] sm:$0xff] %v1968
  // Predicated region
  $region10: #{generator_forward.15} parent=0 // pred_check
    _
  $region11: #{generator_forward.15} parent=0 // pred_check_branch
    %1988 = sbr.rel (0) target = $region13
  $region12: #{generator_forward.15} parent=0 // pred_region
    _
  $region13: #{generator_forward.15} parent=0 // pred_fallthru
    _
  // Predicated region
  $region14: #{generator_forward.15} parent=0 // pred_check
    _
  $region15: #{generator_forward.15} parent=0 // pred_check_branch
    %1990 = sbr.rel (0) target = $region17
  $region16: #{generator_forward.15} parent=0 // pred_region
    _
  $region17: #{generator_forward.15} parent=0 // pred_fallthru
    _

// kernel: generator_forward.17
$region0: #{generator_forward.17}
  #allocation0 [shape = 'u32[]', space=smem, size = 0x4, offset = 0x4, fixed_abs, tag = 'smem constant byte address 0x4 - core index']
  #allocation1 [shape = 'u32[72,128]{1,0:T(1,128)}', space=vmem, size = 0x9000, scoped, tag = 'internal scratch']
  %s0 = inlined_call_operand.vmem [shape: bf16[8,128], index: 0, kind: input, shape index: {}]
  %s1 = inlined_call_operand.vmem [shape: bf16[128,8192], index: 1, kind: input, shape index: {}]
  %s2 = inlined_call_operand.vmem [shape: f32[8,8192], index: 2, kind: output, shape index: {}]
  %s3 = sld [smem:[#allocation0]]
  $region64: #{generator_forward.17} parent=0
    _
  %s5 = ssub.s32 1, %s3
  %s6 = scalar_select 0, %s5, %s3
  $region1: #{generator_forward.17} parent=0
    #allocation2 [shape = 'u8[1048576]{0}', space=vmem, size = 0x100000, scoped, tag = 'input window, operand 1']
    loop: start=0, step=1, limit=6
    $region2: #{generator_forward.17} parent=1 // loop_pre_header
      _
    $region3: #{generator_forward.17} parent=1 // loop_header
      %s8 = sphi 0, %s12
      %p9 = scmp.ge.s32.totalorder %s8, 6
      %s16 = sphi 0, %s16
      %s18 = sphi 0, %s16
      %s19 = sphi 0, %s18
      %s33 = sphi 0, %s19
      %s39 = sphi 0, %s41
      %s42 = sphi 0, %s39
      %s43 = sphi 0, %s42
      %s59 = sphi 0, %s43
      %s65 = sphi 0, %s67
      %s68 = sphi 0, %s65
      %s69 = sphi 0, %s68
      %s85 = sphi 0, %s69
    $region4: #{generator_forward.17} parent=1 // loop_header_branch
      %11 = sbr.rel (%p9) target = $region8
    $region5: #{generator_forward.17} parent=1 // loop_body
      %s13 = ssub.s32 %s8, 1
      %s14 = ssub.s32 %s8, 2
      %s15 = sadd.s32 %s8, 1
      %s17 = sadd.s32 %s16, 1
      %p20 = scmp.eq.s32.totalorder %s8, 3
      %p21 = scmp.ne.s32.totalorder %s16, %s18
      %p22 = scmp.eq.s32.totalorder %s8, 0
      %p23 = por %p21, %p22
      %p24 = scmp.ne.s32.totalorder %s16, %s18
      %p25 = scmp.eq.s32.totalorder %s13, 3
      %p26 = por %p24, %p25
      %p27 = scmp.ne.s32.totalorder %s18, %s19
      %p28 = scmp.eq.s32.totalorder %s13, 0
      %p29 = por %p27, %p28
      %p30 = scmp.ne.s32.totalorder %s18, %s19
      %p31 = scmp.eq.s32.totalorder %s14, 3
      %p32 = por %p30, %p31
      %p34 = scmp.ne.s32.totalorder %s19, %s33
      %p35 = scmp.eq.s32.totalorder %s14, 0
      %p36 = por %p34, %p35
      %s37 = ssub.s32 %s8, %s15
      %p38 = scmp.eq.s32.totalorder %s37, 0
      %s40 = sadd.s32 %s39, 1
      %s41 = scalar_select %p38, %s39, %s40
      %p44 = pneg %p38
      %p45 = scmp.eq.s32.totalorder %s8, 3
      %p46 = por %p44, %p45
      %p47 = scmp.ne.s32.totalorder %s39, %s42
      %p48 = scmp.eq.s32.totalorder %s8, 0
      %p49 = por %p47, %p48
      %p50 = scmp.ne.s32.totalorder %s39, %s42
      %p51 = scmp.eq.s32.totalorder %s13, 3
      %p52 = por %p50, %p51
      %p53 = scmp.ne.s32.totalorder %s42, %s43
      %p54 = scmp.eq.s32.totalorder %s13, 0
      %p55 = por %p53, %p54
      %p56 = scmp.ne.s32.totalorder %s42, %s43
      %p57 = scmp.eq.s32.totalorder %s14, 3
      %p58 = por %p56, %p57
      %p60 = scmp.ne.s32.totalorder %s43, %s59
      %p61 = scmp.eq.s32.totalorder %s14, 0
      %p62 = por %p60, %p61
      %s63 = ssub.s32 %s8, %s15
      %p64 = scmp.eq.s32.totalorder %s63, 0
      %s66 = sadd.s32 %s65, 1
      %s67 = scalar_select %p64, %s65, %s66
      %p70 = pneg %p64
      %p71 = scmp.eq.s32.totalorder %s8, 3
      %p72 = por %p70, %p71
      %p73 = scmp.ne.s32.totalorder %s65, %s68
      %p74 = scmp.eq.s32.totalorder %s8, 0
      %p75 = por %p73, %p74
      %p76 = scmp.ne.s32.totalorder %s65, %s68
      %p77 = scmp.eq.s32.totalorder %s13, 3
      %p78 = por %p76, %p77
      %p79 = scmp.ne.s32.totalorder %s68, %s69
      %p80 = scmp.eq.s32.totalorder %s13, 0
      %p81 = por %p79, %p80
      %p82 = scmp.ne.s32.totalorder %s68, %s69
      %p83 = scmp.eq.s32.totalorder %s14, 3
      %p84 = por %p82, %p83
      %p86 = scmp.ne.s32.totalorder %s69, %s85
      %p87 = scmp.eq.s32.totalorder %s14, 0
      %p88 = por %p86, %p87
      %p89 = scmp.le.s32.totalorder 1, %s8
      %p90 = scmp.lt.s32.totalorder %s8, 5
      %p91 = pnand %p89, %p90
      %p92 = pneg %p91
      // Predicated region
      $region9: #{generator_forward.17} parent=5 // pred_check
        _
      $region10: #{generator_forward.17} parent=5 // pred_check_branch
        %94 = sbr.rel (%p91) target = $region12
      $region11: #{generator_forward.17} parent=5 // pred_region
        %s95 = ssub.s32 %s8, 1
        // Predicated region
        $region13: #{generator_forward.17} parent=11 // pred_check
          %p96 = pneg %p29
        $region14: #{generator_forward.17} parent=11 // pred_check_branch
          %98 = sbr.rel (%p96) target = $region16
        $region15: #{generator_forward.17} parent=11 // pred_region
          _
        $region16: #{generator_forward.17} parent=11 // pred_fallthru
          _
      $region12: #{generator_forward.17} parent=5 // pred_fallthru
        _
      %p99 = scmp.lt.s32.totalorder %s8, 4
      // Predicated region
      $region17: #{generator_forward.17} parent=5 // pred_check
        %p100 = pneg %p99
      $region18: #{generator_forward.17} parent=5 // pred_check_branch
        %102 = sbr.rel (%p100) target = $region20
      $region19: #{generator_forward.17} parent=5 // pred_region
        // Predicated region
        $region21: #{generator_forward.17} parent=19 // pred_check
          %p103 = pneg %p49
        $region22: #{generator_forward.17} parent=19 // pred_check_branch
          %105 = sbr.rel (%p103) target = $region24
        $region23: #{generator_forward.17} parent=19 // pred_region
          %s106 = sand.u32 %s39, 1
          %s107 = sand.u32 %s39, 1
          %s108 = smul.addr %s107, 1024
          %s109 = scalar_lea.vmem [#allocation2], %s108
          %s110 = smul.u32 16, %s8
          %s111 = smul.addr %s110, 4
          %s112 = scalar_lea.vmem %s1, %s111
          // Predicated region
          $region25: #{generator_forward.17} parent=23 // pred_check
            _
          $region26: #{generator_forward.17} parent=23 // pred_check_branch
            %114 = sbr.rel (0) target = $region28
          $region27: #{generator_forward.17} parent=23 // pred_region
            // Predicated region
            $region29: #{generator_forward.17} parent=27 // pred_check
              _
            $region30: #{generator_forward.17} parent=27 // pred_check_branch
              %116 = sbr.rel (0) target = $region32
            $region31: #{generator_forward.17} parent=27 // pred_region
              loop: start=0, step=1, limit=1
              $region33: #{generator_forward.17} parent=31 // loop_pre_header
                _
              $region34: #{generator_forward.17} parent=31 // loop_header
                %s118 = sphi 0, %s122
                %p119 = scmp.ge.s32.totalorder %s118, 1
                %s123 = sphi %s112, %s112
                %s124 = sphi %s109, %s109
              $region35: #{generator_forward.17} parent=31 // loop_header_branch
                %121 = sbr.rel (%p119) target = $region39
              $region36: #{generator_forward.17} parent=31 // loop_body
                %v125 = vld [vmem:[%s123] sm:$0xff]
                %126 = vst [vmem:[%s124] sm:$0xff] %v125
                %v127 = vld [vmem:[%s123 + $0x8] sm:$0xff]
                %128 = vst [vmem:[%s124 + $0x8] sm:$0xff] %v127
                %v129 = vld [vmem:[%s123 + $0x10] sm:$0xff]
                %130 = vst [vmem:[%s124 + $0x10] sm:$0xff] %v129
                %v131 = vld [vmem:[%s123 + $0x18] sm:$0xff]
                %132 = vst [vmem:[%s124 + $0x18] sm:$0xff] %v131
                %v133 = vld [vmem:[%s123 + $0x20] sm:$0xff]
                %134 = vst [vmem:[%s124 + $0x20] sm:$0xff] %v133
                %v135 = vld [vmem:[%s123 + $0x28] sm:$0xff]
                %136 = vst [vmem:[%s124 + $0x28] sm:$0xff] %v135
                %v137 = vld [vmem:[%s123 + $0x30] sm:$0xff]
                %138 = vst [vmem:[%s124 + $0x30] sm:$0xff] %v137
                %v139 = vld [vmem:[%s123 + $0x38] sm:$0xff]
                %140 = vst [vmem:[%s124 + $0x38] sm:$0xff] %v139
                %v141 = vld [vmem:[%s123 + $0x100] sm:$0xff]
                %142 = vst [vmem:[%s124 + $0x40] sm:$0xff] %v141
                %v143 = vld [vmem:[%s123 + $0x108] sm:$0xff]
                %144 = vst [vmem:[%s124 + $0x48] sm:$0xff] %v143
                %v145 = vld [vmem:[%s123 + $0x110] sm:$0xff]
                %146 = vst [vmem:[%s124 + $0x50] sm:$0xff] %v145
                %v147 = vld [vmem:[%s123 + $0x118] sm:$0xff]
                %148 = vst [vmem:[%s124 + $0x58] sm:$0xff] %v147
                %v149 = vld [vmem:[%s123 + $0x120] sm:$0xff]
                %150 = vst [vmem:[%s124 + $0x60] sm:$0xff] %v149
                %v151 = vld [vmem:[%s123 + $0x128] sm:$0xff]
                %152 = vst [vmem:[%s124 + $0x68] sm:$0xff] %v151
                %v153 = vld [vmem:[%s123 + $0x130] sm:$0xff]
                %154 = vst [vmem:[%s124 + $0x70] sm:$0xff] %v153
                %v155 = vld [vmem:[%s123 + $0x138] sm:$0xff]
                %156 = vst [vmem:[%s124 + $0x78] sm:$0xff] %v155
                %v157 = vld [vmem:[%s123 + $0x200] sm:$0xff]
                %158 = vst [vmem:[%s124 + $0x80] sm:$0xff] %v157
                %v159 = vld [vmem:[%s123 + $0x208] sm:$0xff]
                %160 = vst [vmem:[%s124 + $0x88] sm:$0xff] %v159
                %v161 = vld [vmem:[%s123 + $0x210] sm:$0xff]
                %162 = vst [vmem:[%s124 + $0x90] sm:$0xff] %v161
                %v163 = vld [vmem:[%s123 + $0x218] sm:$0xff]
                %164 = vst [vmem:[%s124 + $0x98] sm:$0xff] %v163
                %v165 = vld [vmem:[%s123 + $0x220] sm:$0xff]
                %166 = vst [vmem:[%s124 + $0xa0] sm:$0xff] %v165
                %v167 = vld [vmem:[%s123 + $0x228] sm:$0xff]
                %168 = vst [vmem:[%s124 + $0xa8] sm:$0xff] %v167
                %v169 = vld [vmem:[%s123 + $0x230] sm:$0xff]
                %170 = vst [vmem:[%s124 + $0xb0] sm:$0xff] %v169
                %v171 = vld [vmem:[%s123 + $0x238] sm:$0xff]
                %172 = vst [vmem:[%s124 + $0xb8] sm:$0xff] %v171
                %v173 = vld [vmem:[%s123 + $0x300] sm:$0xff]
                %174 = vst [vmem:[%s124 + $0xc0] sm:$0xff] %v173
                %v175 = vld [vmem:[%s123 + $0x308] sm:$0xff]
                %176 = vst [vmem:[%s124 + $0xc8] sm:$0xff] %v175
                %v177 = vld [vmem:[%s123 + $0x310] sm:$0xff]
                %178 = vst [vmem:[%s124 + $0xd0] sm:$0xff] %v177
                %v179 = vld [vmem:[%s123 + $0x318] sm:$0xff]
                %180 = vst [vmem:[%s124 + $0xd8] sm:$0xff] %v179
                %v181 = vld [vmem:[%s123 + $0x320] sm:$0xff]
                %182 = vst [vmem:[%s124 + $0xe0] sm:$0xff] %v181
                %v183 = vld [vmem:[%s123 + $0x328] sm:$0xff]
                %184 = vst [vmem:[%s124 + $0xe8] sm:$0xff] %v183
                %v185 = vld [vmem:[%s123 + $0x330] sm:$0xff]
                %186 = vst [vmem:[%s124 + $0xf0] sm:$0xff] %v185
                %v187 = vld [vmem:[%s123 + $0x338] sm:$0xff]
                %188 = vst [vmem:[%s124 + $0xf8] sm:$0xff] %v187
                %v189 = vld [vmem:[%s123 + $0x400] sm:$0xff]
                %190 = vst [vmem:[%s124 + $0x100] sm:$0xff] %v189
                %v191 = vld [vmem:[%s123 + $0x408] sm:$0xff]
                %192 = vst [vmem:[%s124 + $0x108] sm:$0xff] %v191
                %v193 = vld [vmem:[%s123 + $0x410] sm:$0xff]
                %194 = vst [vmem:[%s124 + $0x110] sm:$0xff] %v193
                %v195 = vld [vmem:[%s123 + $0x418] sm:$0xff]
                %196 = vst [vmem:[%s124 + $0x118] sm:$0xff] %v195
                %v197 = vld [vmem:[%s123 + $0x420] sm:$0xff]
                %198 = vst [vmem:[%s124 + $0x120] sm:$0xff] %v197
                %v199 = vld [vmem:[%s123 + $0x428] sm:$0xff]
                %200 = vst [vmem:[%s124 + $0x128] sm:$0xff] %v199
                %v201 = vld [vmem:[%s123 + $0x430] sm:$0xff]
                %202 = vst [vmem:[%s124 + $0x130] sm:$0xff] %v201
                %v203 = vld [vmem:[%s123 + $0x438] sm:$0xff]
                %204 = vst [vmem:[%s124 + $0x138] sm:$0xff] %v203
                %v205 = vld [vmem:[%s123 + $0x500] sm:$0xff]
                %206 = vst [vmem:[%s124 + $0x140] sm:$0xff] %v205
                %v207 = vld [vmem:[%s123 + $0x508] sm:$0xff]
                %208 = vst [vmem:[%s124 + $0x148] sm:$0xff] %v207
                %v209 = vld [vmem:[%s123 + $0x510] sm:$0xff]
                %210 = vst [vmem:[%s124 + $0x150] sm:$0xff] %v209
                %v211 = vld [vmem:[%s123 + $0x518] sm:$0xff]
                %212 = vst [vmem:[%s124 + $0x158] sm:$0xff] %v211
                %v213 = vld [vmem:[%s123 + $0x520] sm:$0xff]
                %214 = vst [vmem:[%s124 + $0x160] sm:$0xff] %v213
                %v215 = vld [vmem:[%s123 + $0x528] sm:$0xff]
                %216 = vst [vmem:[%s124 + $0x168] sm:$0xff] %v215
                %v217 = vld [vmem:[%s123 + $0x530] sm:$0xff]
                %218 = vst [vmem:[%s124 + $0x170] sm:$0xff] %v217
                %v219 = vld [vmem:[%s123 + $0x538] sm:$0xff]
                %220 = vst [vmem:[%s124 + $0x178] sm:$0xff] %v219
                %v221 = vld [vmem:[%s123 + $0x600] sm:$0xff]
                %222 = vst [vmem:[%s124 + $0x180] sm:$0xff] %v221
                %v223 = vld [vmem:[%s123 + $0x608] sm:$0xff]
                %224 = vst [vmem:[%s124 + $0x188] sm:$0xff] %v223
                %v225 = vld [vmem:[%s123 + $0x610] sm:$0xff]
                %226 = vst [vmem:[%s124 + $0x190] sm:$0xff] %v225
                %v227 = vld [vmem:[%s123 + $0x618] sm:$0xff]
                %228 = vst [vmem:[%s124 + $0x198] sm:$0xff] %v227
                %v229 = vld [vmem:[%s123 + $0x620] sm:$0xff]
                %230 = vst [vmem:[%s124 + $0x1a0] sm:$0xff] %v229
                %v231 = vld [vmem:[%s123 + $0x628] sm:$0xff]
                %232 = vst [vmem:[%s124 + $0x1a8] sm:$0xff] %v231
                %v233 = vld [vmem:[%s123 + $0x630] sm:$0xff]
                %234 = vst [vmem:[%s124 + $0x1b0] sm:$0xff] %v233
                %v235 = vld [vmem:[%s123 + $0x638] sm:$0xff]
                %236 = vst [vmem:[%s124 + $0x1b8] sm:$0xff] %v235
                %v237 = vld [vmem:[%s123 + $0x700] sm:$0xff]
                %238 = vst [vmem:[%s124 + $0x1c0] sm:$0xff] %v237
                %v239 = vld [vmem:[%s123 + $0x708] sm:$0xff]
                %240 = vst [vmem:[%s124 + $0x1c8] sm:$0xff] %v239
                %v241 = vld [vmem:[%s123 + $0x710] sm:$0xff]
                %242 = vst [vmem:[%s124 + $0x1d0] sm:$0xff] %v241
                %v243 = vld [vmem:[%s123 + $0x718] sm:$0xff]
                %244 = vst [vmem:[%s124 + $0x1d8] sm:$0xff] %v243
                %v245 = vld [vmem:[%s123 + $0x720] sm:$0xff]
                %246 = vst [vmem:[%s124 + $0x1e0] sm:$0xff] %v245
                %v247 = vld [vmem:[%s123 + $0x728] sm:$0xff]
                %248 = vst [vmem:[%s124 + $0x1e8] sm:$0xff] %v247
                %v249 = vld [vmem:[%s123 + $0x730] sm:$0xff]
                %250 = vst [vmem:[%s124 + $0x1f0] sm:$0xff] %v249
                %v251 = vld [vmem:[%s123 + $0x738] sm:$0xff]
                %252 = vst [vmem:[%s124 + $0x1f8] sm:$0xff] %v251
                %v253 = vld [vmem:[%s123 + $0x800] sm:$0xff]
                %254 = vst [vmem:[%s124 + $0x200] sm:$0xff] %v253
                %v255 = vld [vmem:[%s123 + $0x808] sm:$0xff]
                %256 = vst [vmem:[%s124 + $0x208] sm:$0xff] %v255
                %v257 = vld [vmem:[%s123 + $0x810] sm:$0xff]
                %258 = vst [vmem:[%s124 + $0x210] sm:$0xff] %v257
                %v259 = vld [vmem:[%s123 + $0x818] sm:$0xff]
                %260 = vst [vmem:[%s124 + $0x218] sm:$0xff] %v259
                %v261 = vld [vmem:[%s123 + $0x820] sm:$0xff]
                %262 = vst [vmem:[%s124 + $0x220] sm:$0xff] %v261
                %v263 = vld [vmem:[%s123 + $0x828] sm:$0xff]
                %264 = vst [vmem:[%s124 + $0x228] sm:$0xff] %v263
                %v265 = vld [vmem:[%s123 + $0x830] sm:$0xff]
                %266 = vst [vmem:[%s124 + $0x230] sm:$0xff] %v265
                %v267 = vld [vmem:[%s123 + $0x838] sm:$0xff]
                %268 = vst [vmem:[%s124 + $0x238] sm:$0xff] %v267
                %v269 = vld [vmem:[%s123 + $0x900] sm:$0xff]
                %270 = vst [vmem:[%s124 + $0x240] sm:$0xff] %v269
                %v271 = vld [vmem:[%s123 + $0x908] sm:$0xff]
                %272 = vst [vmem:[%s124 + $0x248] sm:$0xff] %v271
                %v273 = vld [vmem:[%s123 + $0x910] sm:$0xff]
                %274 = vst [vmem:[%s124 + $0x250] sm:$0xff] %v273
                %v275 = vld [vmem:[%s123 + $0x918] sm:$0xff]
                %276 = vst [vmem:[%s124 + $0x258] sm:$0xff] %v275
                %v277 = vld [vmem:[%s123 + $0x920] sm:$0xff]
                %278 = vst [vmem:[%s124 + $0x260] sm:$0xff] %v277
                %v279 = vld [vmem:[%s123 + $0x928] sm:$0xff]
                %280 = vst [vmem:[%s124 + $0x268] sm:$0xff] %v279
                %v281 = vld [vmem:[%s123 + $0x930] sm:$0xff]
                %282 = vst [vmem:[%s124 + $0x270] sm:$0xff] %v281
                %v283 = vld [vmem:[%s123 + $0x938] sm:$0xff]
                %284 = vst [vmem:[%s124 + $0x278] sm:$0xff] %v283
                %v285 = vld [vmem:[%s123 + $0xa00] sm:$0xff]
                %286 = vst [vmem:[%s124 + $0x280] sm:$0xff] %v285
                %v287 = vld [vmem:[%s123 + $0xa08] sm:$0xff]
                %288 = vst [vmem:[%s124 + $0x288] sm:$0xff] %v287
                %v289 = vld [vmem:[%s123 + $0xa10] sm:$0xff]
                %290 = vst [vmem:[%s124 + $0x290] sm:$0xff] %v289
                %v291 = vld [vmem:[%s123 + $0xa18] sm:$0xff]
                %292 = vst [vmem:[%s124 + $0x298] sm:$0xff] %v291
                %v293 = vld [vmem:[%s123 + $0xa20] sm:$0xff]
                %294 = vst [vmem:[%s124 + $0x2a0] sm:$0xff] %v293
                %v295 = vld [vmem:[%s123 + $0xa28] sm:$0xff]
                %296 = vst [vmem:[%s124 + $0x2a8] sm:$0xff] %v295
                %v297 = vld [vmem:[%s123 + $0xa30] sm:$0xff]
                %298 = vst [vmem:[%s124 + $0x2b0] sm:$0xff] %v297
                %v299 = vld [vmem:[%s123 + $0xa38] sm:$0xff]
                %300 = vst [vmem:[%s124 + $0x2b8] sm:$0xff] %v299
                %v301 = vld [vmem:[%s123 + $0xb00] sm:$0xff]
                %302 = vst [vmem:[%s124 + $0x2c0] sm:$0xff] %v301
                %v303 = vld [vmem:[%s123 + $0xb08] sm:$0xff]
                %304 = vst [vmem:[%s124 + $0x2c8] sm:$0xff] %v303
                %v305 = vld [vmem:[%s123 + $0xb10] sm:$0xff]
                %306 = vst [vmem:[%s124 + $0x2d0] sm:$0xff] %v305
                %v307 = vld [vmem:[%s123 + $0xb18] sm:$0xff]
                %308 = vst [vmem:[%s124 + $0x2d8] sm:$0xff] %v307
                %v309 = vld [vmem:[%s123 + $0xb20] sm:$0xff]
                %310 = vst [vmem:[%s124 + $0x2e0] sm:$0xff] %v309
                %v311 = vld [vmem:[%s123 + $0xb28] sm:$0xff]
                %312 = vst [vmem:[%s124 + $0x2e8] sm:$0xff] %v311
                %v313 = vld [vmem:[%s123 + $0xb30] sm:$0xff]
                %314 = vst [vmem:[%s124 + $0x2f0] sm:$0xff] %v313
                %v315 = vld [vmem:[%s123 + $0xb38] sm:$0xff]
                %316 = vst [vmem:[%s124 + $0x2f8] sm:$0xff] %v315
                %v317 = vld [vmem:[%s123 + $0xc00] sm:$0xff]
                %318 = vst [vmem:[%s124 + $0x300] sm:$0xff] %v317
                %v319 = vld [vmem:[%s123 + $0xc08] sm:$0xff]
                %320 = vst [vmem:[%s124 + $0x308] sm:$0xff] %v319
                %v321 = vld [vmem:[%s123 + $0xc10] sm:$0xff]
                %322 = vst [vmem:[%s124 + $0x310] sm:$0xff] %v321
                %v323 = vld [vmem:[%s123 + $0xc18] sm:$0xff]
                %324 = vst [vmem:[%s124 + $0x318] sm:$0xff] %v323
                %v325 = vld [vmem:[%s123 + $0xc20] sm:$0xff]
                %326 = vst [vmem:[%s124 + $0x320] sm:$0xff] %v325
                %v327 = vld [vmem:[%s123 + $0xc28] sm:$0xff]
                %328 = vst [vmem:[%s124 + $0x328] sm:$0xff] %v327
                %v329 = vld [vmem:[%s123 + $0xc30] sm:$0xff]
                %330 = vst [vmem:[%s124 + $0x330] sm:$0xff] %v329
                %v331 = vld [vmem:[%s123 + $0xc38] sm:$0xff]
                %332 = vst [vmem:[%s124 + $0x338] sm:$0xff] %v331
                %v333 = vld [vmem:[%s123 + $0xd00] sm:$0xff]
                %334 = vst [vmem:[%s124 + $0x340] sm:$0xff] %v333
                %v335 = vld [vmem:[%s123 + $0xd08] sm:$0xff]
                %336 = vst [vmem:[%s124 + $0x348] sm:$0xff] %v335
                %v337 = vld [vmem:[%s123 + $0xd10] sm:$0xff]
                %338 = vst [vmem:[%s124 + $0x350] sm:$0xff] %v337
                %v339 = vld [vmem:[%s123 + $0xd18] sm:$0xff]
                %340 = vst [vmem:[%s124 + $0x358] sm:$0xff] %v339
                %v341 = vld [vmem:[%s123 + $0xd20] sm:$0xff]
                %342 = vst [vmem:[%s124 + $0x360] sm:$0xff] %v341
                %v343 = vld [vmem:[%s123 + $0xd28] sm:$0xff]
                %344 = vst [vmem:[%s124 + $0x368] sm:$0xff] %v343
                %v345 = vld [vmem:[%s123 + $0xd30] sm:$0xff]
                %346 = vst [vmem:[%s124 + $0x370] sm:$0xff] %v345
                %v347 = vld [vmem:[%s123 + $0xd38] sm:$0xff]
                %348 = vst [vmem:[%s124 + $0x378] sm:$0xff] %v347
                %v349 = vld [vmem:[%s123 + $0xe00] sm:$0xff]
                %350 = vst [vmem:[%s124 + $0x380] sm:$0xff] %v349
                %v351 = vld [vmem:[%s123 + $0xe08] sm:$0xff]
                %352 = vst [vmem:[%s124 + $0x388] sm:$0xff] %v351
                %v353 = vld [vmem:[%s123 + $0xe10] sm:$0xff]
                %354 = vst [vmem:[%s124 + $0x390] sm:$0xff] %v353
                %v355 = vld [vmem:[%s123 + $0xe18] sm:$0xff]
                %356 = vst [vmem:[%s124 + $0x398] sm:$0xff] %v355
                %v357 = vld [vmem:[%s123 + $0xe20] sm:$0xff]
                %358 = vst [vmem:[%s124 + $0x3a0] sm:$0xff] %v357
                %v359 = vld [vmem:[%s123 + $0xe28] sm:$0xff]
                %360 = vst [vmem:[%s124 + $0x3a8] sm:$0xff] %v359
                %v361 = vld [vmem:[%s123 + $0xe30] sm:$0xff]
                %362 = vst [vmem:[%s124 + $0x3b0] sm:$0xff] %v361
                %v363 = vld [vmem:[%s123 + $0xe38] sm:$0xff]
                %364 = vst [vmem:[%s124 + $0x3b8] sm:$0xff] %v363
                %v365 = vld [vmem:[%s123 + $0xf00] sm:$0xff]
                %366 = vst [vmem:[%s124 + $0x3c0] sm:$0xff] %v365
                %v367 = vld [vmem:[%s123 + $0xf08] sm:$0xff]
                %368 = vst [vmem:[%s124 + $0x3c8] sm:$0xff] %v367
                %v369 = vld [vmem:[%s123 + $0xf10] sm:$0xff]
                %370 = vst [vmem:[%s124 + $0x3d0] sm:$0xff] %v369
                %v371 = vld [vmem:[%s123 + $0xf18] sm:$0xff]
                %372 = vst [vmem:[%s124 + $0x3d8] sm:$0xff] %v371
                %v373 = vld [vmem:[%s123 + $0xf20] sm:$0xff]
                %374 = vst [vmem:[%s124 + $0x3e0] sm:$0xff] %v373
                %v375 = vld [vmem:[%s123 + $0xf28] sm:$0xff]
                %376 = vst [vmem:[%s124 + $0x3e8] sm:$0xff] %v375
                %v377 = vld [vmem:[%s123 + $0xf30] sm:$0xff]
                %378 = vst [vmem:[%s124 + $0x3f0] sm:$0xff] %v377
                %v379 = vld [vmem:[%s123 + $0xf38] sm:$0xff]
                %380 = vst [vmem:[%s124 + $0x3f8] sm:$0xff] %v379
              $region37: #{generator_forward.17} parent=31 // loop_footer
                %s122 = sadd.s32 1, %s118
              $region38: #{generator_forward.17} parent=31 // loop_footer_branch
                %117 = sbr.rel target = $region34
              $region39: #{generator_forward.17} parent=31 // loop_exit
                _
            $region32: #{generator_forward.17} parent=27 // pred_fallthru
              _
            // Predicated region
            $region40: #{generator_forward.17} parent=27 // pred_check
              _
            $region41: #{generator_forward.17} parent=27 // pred_check_branch
              %382 = sbr.rel target = $region43
            $region42: #{generator_forward.17} parent=27 // pred_region
              _
            $region43: #{generator_forward.17} parent=27 // pred_fallthru
              _
          $region28: #{generator_forward.17} parent=23 // pred_fallthru
            _
          %383 = vnop
        $region24: #{generator_forward.17} parent=19 // pred_fallthru
          _
      $region20: #{generator_forward.17} parent=5 // pred_fallthru
        _
      %p384 = scmp.le.s32.totalorder 1, %s8
      %p385 = scmp.lt.s32.totalorder %s8, 5
      %p386 = pnand %p384, %p385
      %p387 = pneg %p386
      // Predicated region
      $region44: #{generator_forward.17} parent=5 // pred_check
        _
      $region45: #{generator_forward.17} parent=5 // pred_check_branch
        %389 = sbr.rel (%p386) target = $region47
      $region46: #{generator_forward.17} parent=5 // pred_region
        %s390 = ssub.s32 %s8, 1
        %s391 = sand.u32 %s42, 1
        %s392 = sand.u32 %s42, 1
        %s393 = smul.addr %s392, 1024
        %s394 = scalar_lea.vmem [#allocation2], %s393
        // Predicated region
        $region48: #{generator_forward.17} parent=46 // pred_check
          %p395 = pneg %p55
        $region49: #{generator_forward.17} parent=46 // pred_check_branch
          %397 = sbr.rel (%p395) target = $region51
        $region50: #{generator_forward.17} parent=46 // pred_region
          _
        $region51: #{generator_forward.17} parent=46 // pred_fallthru
          _
        %p398 = pneg %p29
        %p399 = pneg %p26
        %s400 = sand.u32 %s42, 1
        %s401 = sand.u32 %s42, 1
        %s402 = smul.addr %s401, 1024
        %s403 = scalar_lea.vmem [#allocation2], %s402
        %p404 = pneg %p55
        %p405 = pneg %p52
        %p406 = pneg %p81
        %p407 = pneg %p78
        %s408 = smul.u32 16, %s13
        %p409 = scmp.lt.s32.totalorder %s408, 63
        %s410 = scalar_select %p409, %s408, 63
        %s411 = smul.addr %s410, 8
        %s412 = scalar_lea.vmem %s2, %s411
        %s413 = smul.u32 16, %s13
        %s414 = smul.u32 16, %s13
        %p415 = scmp.lt.s32.totalorder %s414, 63
        %s416 = scalar_select %p415, %s414, 63
        %s417 = smul.addr %s416, 8
        %s418 = scalar_lea.vmem %s2, %s417
        %s419 = smul.u32 16, %s13
        %v420 = vld [vmem:[%s0] sm:$0xf]
        %v421 = vld [vmem:[%s394] sm:$0xff]
        %v422 = vld [vmem:[%s394 + $0x8] sm:$0xff]
        %v423 = vld [vmem:[%s394 + $0x10] sm:$0xff]
        %v424 = vld [vmem:[%s394 + $0x18] sm:$0xff]
        %v425 = vld [vmem:[%s394 + $0x20] sm:$0xff]
        %v426 = vld [vmem:[%s394 + $0x28] sm:$0xff]
        %v427 = vld [vmem:[%s394 + $0x30] sm:$0xff]
        %v428 = vld [vmem:[%s394 + $0x38] sm:$0xff]
        %v429 = vld [vmem:[%s394 + $0x40] sm:$0xff]
        %v430 = vld [vmem:[%s394 + $0x48] sm:$0xff]
        %v431 = vld [vmem:[%s394 + $0x50] sm:$0xff]
        %v432 = vld [vmem:[%s394 + $0x58] sm:$0xff]
        %v433 = vld [vmem:[%s394 + $0x60] sm:$0xff]
        %v434 = vld [vmem:[%s394 + $0x68] sm:$0xff]
        %v435 = vld [vmem:[%s394 + $0x70] sm:$0xff]
        %v436 = vld [vmem:[%s394 + $0x78] sm:$0xff]
        %v437 = vld [vmem:[%s394 + $0x80] sm:$0xff]
        %v438 = vld [vmem:[%s394 + $0x88] sm:$0xff]
        %v439 = vld [vmem:[%s394 + $0x90] sm:$0xff]
        %v440 = vld [vmem:[%s394 + $0x98] sm:$0xff]
        %v441 = vld [vmem:[%s394 + $0xa0] sm:$0xff]
        %v442 = vld [vmem:[%s394 + $0xa8] sm:$0xff]
        %v443 = vld [vmem:[%s394 + $0xb0] sm:$0xff]
        %v444 = vld [vmem:[%s394 + $0xb8] sm:$0xff]
        %v445 = vld [vmem:[%s394 + $0xc0] sm:$0xff]
        %v446 = vld [vmem:[%s394 + $0xc8] sm:$0xff]
        %v447 = vld [vmem:[%s394 + $0xd0] sm:$0xff]
        %v448 = vld [vmem:[%s394 + $0xd8] sm:$0xff]
        %v449 = vld [vmem:[%s394 + $0xe0] sm:$0xff]
        %v450 = vld [vmem:[%s394 + $0xe8] sm:$0xff]
        %v451 = vld [vmem:[%s394 + $0xf0] sm:$0xff]
        %v452 = vld [vmem:[%s394 + $0xf8] sm:$0xff]
        %v453 = vld [vmem:[%s394 + $0x100] sm:$0xff]
        %v454 = vld [vmem:[%s394 + $0x108] sm:$0xff]
        %v455 = vld [vmem:[%s394 + $0x110] sm:$0xff]
        %v456 = vld [vmem:[%s394 + $0x118] sm:$0xff]
        %v457 = vld [vmem:[%s394 + $0x120] sm:$0xff]
        %v458 = vld [vmem:[%s394 + $0x128] sm:$0xff]
        %v459 = vld [vmem:[%s394 + $0x130] sm:$0xff]
        %v460 = vld [vmem:[%s394 + $0x138] sm:$0xff]
        %v461 = vld [vmem:[%s394 + $0x140] sm:$0xff]
        %v462 = vld [vmem:[%s394 + $0x148] sm:$0xff]
        %v463 = vld [vmem:[%s394 + $0x150] sm:$0xff]
        %v464 = vld [vmem:[%s394 + $0x158] sm:$0xff]
        %v465 = vld [vmem:[%s394 + $0x160] sm:$0xff]
        %v466 = vld [vmem:[%s394 + $0x168] sm:$0xff]
        %v467 = vld [vmem:[%s394 + $0x170] sm:$0xff]
        %v468 = vld [vmem:[%s394 + $0x178] sm:$0xff]
        %v469 = vld [vmem:[%s394 + $0x180] sm:$0xff]
        %v470 = vld [vmem:[%s394 + $0x188] sm:$0xff]
        %v471 = vld [vmem:[%s394 + $0x190] sm:$0xff]
        %v472 = vld [vmem:[%s394 + $0x198] sm:$0xff]
        %v473 = vld [vmem:[%s394 + $0x1a0] sm:$0xff]
        %v474 = vld [vmem:[%s394 + $0x1a8] sm:$0xff]
        %v475 = vld [vmem:[%s394 + $0x1b0] sm:$0xff]
        %v476 = vld [vmem:[%s394 + $0x1b8] sm:$0xff]
        %v477 = vld [vmem:[%s394 + $0x1c0] sm:$0xff]
        %v478 = vld [vmem:[%s394 + $0x1c8] sm:$0xff]
        %v479 = vld [vmem:[%s394 + $0x1d0] sm:$0xff]
        %v480 = vld [vmem:[%s394 + $0x1d8] sm:$0xff]
        %v481 = vld [vmem:[%s394 + $0x1e0] sm:$0xff]
        %v482 = vld [vmem:[%s394 + $0x1e8] sm:$0xff]
        %v483 = vld [vmem:[%s394 + $0x1f0] sm:$0xff]
        %v484 = vld [vmem:[%s394 + $0x1f8] sm:$0xff]
        %v485 = vld [vmem:[%s394 + $0x200] sm:$0xff]
        %v486 = vld [vmem:[%s394 + $0x208] sm:$0xff]
        %v487 = vld [vmem:[%s394 + $0x210] sm:$0xff]
        %v488 = vld [vmem:[%s394 + $0x218] sm:$0xff]
        %v489 = vld [vmem:[%s394 + $0x220] sm:$0xff]
        %v490 = vld [vmem:[%s394 + $0x228] sm:$0xff]
        %v491 = vld [vmem:[%s394 + $0x230] sm:$0xff]
        %v492 = vld [vmem:[%s394 + $0x238] sm:$0xff]
        %v493 = vld [vmem:[%s394 + $0x240] sm:$0xff]
        %v494 = vld [vmem:[%s394 + $0x248] sm:$0xff]
        %v495 = vld [vmem:[%s394 + $0x250] sm:$0xff]
        %v496 = vld [vmem:[%s394 + $0x258] sm:$0xff]
        %v497 = vld [vmem:[%s394 + $0x260] sm:$0xff]
        %v498 = vld [vmem:[%s394 + $0x268] sm:$0xff]
        %v499 = vld [vmem:[%s394 + $0x270] sm:$0xff]
        %v500 = vld [vmem:[%s394 + $0x278] sm:$0xff]
        %v501 = vld [vmem:[%s394 + $0x280] sm:$0xff]
        %v502 = vld [vmem:[%s394 + $0x288] sm:$0xff]
        %v503 = vld [vmem:[%s394 + $0x290] sm:$0xff]
        %v504 = vld [vmem:[%s394 + $0x298] sm:$0xff]
        %v505 = vld [vmem:[%s394 + $0x2a0] sm:$0xff]
        %v506 = vld [vmem:[%s394 + $0x2a8] sm:$0xff]
        %v507 = vld [vmem:[%s394 + $0x2b0] sm:$0xff]
        %v508 = vld [vmem:[%s394 + $0x2b8] sm:$0xff]
        %v509 = vld [vmem:[%s394 + $0x2c0] sm:$0xff]
        %v510 = vld [vmem:[%s394 + $0x2c8] sm:$0xff]
        %v511 = vld [vmem:[%s394 + $0x2d0] sm:$0xff]
        %v512 = vld [vmem:[%s394 + $0x2d8] sm:$0xff]
        %v513 = vld [vmem:[%s394 + $0x2e0] sm:$0xff]
        %v514 = vld [vmem:[%s394 + $0x2e8] sm:$0xff]
        %v515 = vld [vmem:[%s394 + $0x2f0] sm:$0xff]
        %v516 = vld [vmem:[%s394 + $0x2f8] sm:$0xff]
        %v517 = vld [vmem:[%s394 + $0x300] sm:$0xff]
        %v518 = vld [vmem:[%s394 + $0x308] sm:$0xff]
        %v519 = vld [vmem:[%s394 + $0x310] sm:$0xff]
        %v520 = vld [vmem:[%s394 + $0x318] sm:$0xff]
        %v521 = vld [vmem:[%s394 + $0x320] sm:$0xff]
        %v522 = vld [vmem:[%s394 + $0x328] sm:$0xff]
        %v523 = vld [vmem:[%s394 + $0x330] sm:$0xff]
        %v524 = vld [vmem:[%s394 + $0x338] sm:$0xff]
        %v525 = vld [vmem:[%s394 + $0x340] sm:$0xff]
        %v526 = vld [vmem:[%s394 + $0x348] sm:$0xff]
        %v527 = vld [vmem:[%s394 + $0x350] sm:$0xff]
        %v528 = vld [vmem:[%s394 + $0x358] sm:$0xff]
        %v529 = vld [vmem:[%s394 + $0x360] sm:$0xff]
        %v530 = vld [vmem:[%s394 + $0x368] sm:$0xff]
        %v531 = vld [vmem:[%s394 + $0x370] sm:$0xff]
        %v532 = vld [vmem:[%s394 + $0x378] sm:$0xff]
        %v533 = vld [vmem:[%s394 + $0x380] sm:$0xff]
        %v534 = vld [vmem:[%s394 + $0x388] sm:$0xff]
        %v535 = vld [vmem:[%s394 + $0x390] sm:$0xff]
        %v536 = vld [vmem:[%s394 + $0x398] sm:$0xff]
        %v537 = vld [vmem:[%s394 + $0x3a0] sm:$0xff]
        %v538 = vld [vmem:[%s394 + $0x3a8] sm:$0xff]
        %v539 = vld [vmem:[%s394 + $0x3b0] sm:$0xff]
        %v540 = vld [vmem:[%s394 + $0x3b8] sm:$0xff]
        %v541 = vld [vmem:[%s394 + $0x3c0] sm:$0xff]
        %v542 = vld [vmem:[%s394 + $0x3c8] sm:$0xff]
        %v543 = vld [vmem:[%s394 + $0x3d0] sm:$0xff]
        %v544 = vld [vmem:[%s394 + $0x3d8] sm:$0xff]
        %v545 = vld [vmem:[%s394 + $0x3e0] sm:$0xff]
        %v546 = vld [vmem:[%s394 + $0x3e8] sm:$0xff]
        %v547 = vld [vmem:[%s394 + $0x3f0] sm:$0xff]
        %v548 = vld [vmem:[%s394 + $0x3f8] sm:$0xff]
        %v677 = vunpack.c.l.b16 %v421
        %v678 = vunpack.c.h.b16 %v421
        %v679 = vunpack.c.l.b16 %v422
        %v680 = vunpack.c.h.b16 %v422
        %v681 = vunpack.c.l.b16 %v423
        %v682 = vunpack.c.h.b16 %v423
        %v683 = vunpack.c.l.b16 %v424
        %v684 = vunpack.c.h.b16 %v424
        %v685 = vunpack.c.l.b16 %v425
        %v686 = vunpack.c.h.b16 %v425
        %v687 = vunpack.c.l.b16 %v426
        %v688 = vunpack.c.h.b16 %v426
        %v689 = vunpack.c.l.b16 %v427
        %v690 = vunpack.c.h.b16 %v427
        %v691 = vunpack.c.l.b16 %v428
        %v692 = vunpack.c.h.b16 %v428
        %v693 = vunpack.c.l.b16 %v429
        %v694 = vunpack.c.h.b16 %v429
        %v695 = vunpack.c.l.b16 %v430
        %v696 = vunpack.c.h.b16 %v430
        %v697 = vunpack.c.l.b16 %v431
        %v698 = vunpack.c.h.b16 %v431
        %v699 = vunpack.c.l.b16 %v432
        %v700 = vunpack.c.h.b16 %v432
        %v701 = vunpack.c.l.b16 %v433
        %v702 = vunpack.c.h.b16 %v433
        %v703 = vunpack.c.l.b16 %v434
        %v704 = vunpack.c.h.b16 %v434
        %v705 = vunpack.c.l.b16 %v435
        %v706 = vunpack.c.h.b16 %v435
        %v707 = vunpack.c.l.b16 %v436
        %v708 = vunpack.c.h.b16 %v436
        %v709 = vunpack.c.l.b16 %v437
        %v710 = vunpack.c.h.b16 %v437
        %v711 = vunpack.c.l.b16 %v438
        %v712 = vunpack.c.h.b16 %v438
        %v713 = vunpack.c.l.b16 %v439
        %v714 = vunpack.c.h.b16 %v439
        %v715 = vunpack.c.l.b16 %v440
        %v716 = vunpack.c.h.b16 %v440
        %v717 = vunpack.c.l.b16 %v441
        %v718 = vunpack.c.h.b16 %v441
        %v719 = vunpack.c.l.b16 %v442
        %v720 = vunpack.c.h.b16 %v442
        %v721 = vunpack.c.l.b16 %v443
        %v722 = vunpack.c.h.b16 %v443
        %v723 = vunpack.c.l.b16 %v444
        %v724 = vunpack.c.h.b16 %v444
        %v725 = vunpack.c.l.b16 %v445
        %v726 = vunpack.c.h.b16 %v445
        %v727 = vunpack.c.l.b16 %v446
        %v728 = vunpack.c.h.b16 %v446
        %v729 = vunpack.c.l.b16 %v447
        %v730 = vunpack.c.h.b16 %v447
        %v731 = vunpack.c.l.b16 %v448
        %v732 = vunpack.c.h.b16 %v448
        %v733 = vunpack.c.l.b16 %v449
        %v734 = vunpack.c.h.b16 %v449
        %v735 = vunpack.c.l.b16 %v450
        %v736 = vunpack.c.h.b16 %v450
        %v737 = vunpack.c.l.b16 %v451
        %v738 = vunpack.c.h.b16 %v451
        %v739 = vunpack.c.l.b16 %v452
        %v740 = vunpack.c.h.b16 %v452
        %v741 = vunpack.c.l.b16 %v453
        %v742 = vunpack.c.h.b16 %v453
        %v743 = vunpack.c.l.b16 %v454
        %v744 = vunpack.c.h.b16 %v454
        %v745 = vunpack.c.l.b16 %v455
        %v746 = vunpack.c.h.b16 %v455
        %v747 = vunpack.c.l.b16 %v456
        %v748 = vunpack.c.h.b16 %v456
        %v749 = vunpack.c.l.b16 %v457
        %v750 = vunpack.c.h.b16 %v457
        %v751 = vunpack.c.l.b16 %v458
        %v752 = vunpack.c.h.b16 %v458
        %v753 = vunpack.c.l.b16 %v459
        %v754 = vunpack.c.h.b16 %v459
        %v755 = vunpack.c.l.b16 %v460
        %v756 = vunpack.c.h.b16 %v460
        %v757 = vunpack.c.l.b16 %v461
        %v758 = vunpack.c.h.b16 %v461
        %v759 = vunpack.c.l.b16 %v462
        %v760 = vunpack.c.h.b16 %v462
        %v761 = vunpack.c.l.b16 %v463
        %v762 = vunpack.c.h.b16 %v463
        %v763 = vunpack.c.l.b16 %v464
        %v764 = vunpack.c.h.b16 %v464
        %v765 = vunpack.c.l.b16 %v465
        %v766 = vunpack.c.h.b16 %v465
        %v767 = vunpack.c.l.b16 %v466
        %v768 = vunpack.c.h.b16 %v466
        %v769 = vunpack.c.l.b16 %v467
        %v770 = vunpack.c.h.b16 %v467
        %v771 = vunpack.c.l.b16 %v468
        %v772 = vunpack.c.h.b16 %v468
        %v773 = vunpack.c.l.b16 %v469
        %v774 = vunpack.c.h.b16 %v469
        %v775 = vunpack.c.l.b16 %v470
        %v776 = vunpack.c.h.b16 %v470
        %v777 = vunpack.c.l.b16 %v471
        %v778 = vunpack.c.h.b16 %v471
        %v779 = vunpack.c.l.b16 %v472
        %v780 = vunpack.c.h.b16 %v472
        %v781 = vunpack.c.l.b16 %v473
        %v782 = vunpack.c.h.b16 %v473
        %v783 = vunpack.c.l.b16 %v474
        %v784 = vunpack.c.h.b16 %v474
        %v785 = vunpack.c.l.b16 %v475
        %v786 = vunpack.c.h.b16 %v475
        %v787 = vunpack.c.l.b16 %v476
        %v788 = vunpack.c.h.b16 %v476
        %v789 = vunpack.c.l.b16 %v477
        %v790 = vunpack.c.h.b16 %v477
        %v791 = vunpack.c.l.b16 %v478
        %v792 = vunpack.c.h.b16 %v478
        %v793 = vunpack.c.l.b16 %v479
        %v794 = vunpack.c.h.b16 %v479
        %v795 = vunpack.c.l.b16 %v480
        %v796 = vunpack.c.h.b16 %v480
        %v797 = vunpack.c.l.b16 %v481
        %v798 = vunpack.c.h.b16 %v481
        %v799 = vunpack.c.l.b16 %v482
        %v800 = vunpack.c.h.b16 %v482
        %v801 = vunpack.c.l.b16 %v483
        %v802 = vunpack.c.h.b16 %v483
        %v803 = vunpack.c.l.b16 %v484
        %v804 = vunpack.c.h.b16 %v484
        %v805 = vunpack.c.l.b16 %v485
        %v806 = vunpack.c.h.b16 %v485
        %v807 = vunpack.c.l.b16 %v486
        %v808 = vunpack.c.h.b16 %v486
        %v809 = vunpack.c.l.b16 %v487
        %v810 = vunpack.c.h.b16 %v487
        %v811 = vunpack.c.l.b16 %v488
        %v812 = vunpack.c.h.b16 %v488
        %v813 = vunpack.c.l.b16 %v489
        %v814 = vunpack.c.h.b16 %v489
        %v815 = vunpack.c.l.b16 %v490
        %v816 = vunpack.c.h.b16 %v490
        %v817 = vunpack.c.l.b16 %v491
        %v818 = vunpack.c.h.b16 %v491
        %v819 = vunpack.c.l.b16 %v492
        %v820 = vunpack.c.h.b16 %v492
        %v821 = vunpack.c.l.b16 %v493
        %v822 = vunpack.c.h.b16 %v493
        %v823 = vunpack.c.l.b16 %v494
        %v824 = vunpack.c.h.b16 %v494
        %v825 = vunpack.c.l.b16 %v495
        %v826 = vunpack.c.h.b16 %v495
        %v827 = vunpack.c.l.b16 %v496
        %v828 = vunpack.c.h.b16 %v496
        %v829 = vunpack.c.l.b16 %v497
        %v830 = vunpack.c.h.b16 %v497
        %v831 = vunpack.c.l.b16 %v498
        %v832 = vunpack.c.h.b16 %v498
        %v833 = vunpack.c.l.b16 %v499
        %v834 = vunpack.c.h.b16 %v499
        %v835 = vunpack.c.l.b16 %v500
        %v836 = vunpack.c.h.b16 %v500
        %v837 = vunpack.c.l.b16 %v501
        %v838 = vunpack.c.h.b16 %v501
        %v839 = vunpack.c.l.b16 %v502
        %v840 = vunpack.c.h.b16 %v502
        %v841 = vunpack.c.l.b16 %v503
        %v842 = vunpack.c.h.b16 %v503
        %v843 = vunpack.c.l.b16 %v504
        %v844 = vunpack.c.h.b16 %v504
        %v845 = vunpack.c.l.b16 %v505
        %v846 = vunpack.c.h.b16 %v505
        %v847 = vunpack.c.l.b16 %v506
        %v848 = vunpack.c.h.b16 %v506
        %v849 = vunpack.c.l.b16 %v507
        %v850 = vunpack.c.h.b16 %v507
        %v851 = vunpack.c.l.b16 %v508
        %v852 = vunpack.c.h.b16 %v508
        %v853 = vunpack.c.l.b16 %v509
        %v854 = vunpack.c.h.b16 %v509
        %v855 = vunpack.c.l.b16 %v510
        %v856 = vunpack.c.h.b16 %v510
        %v857 = vunpack.c.l.b16 %v511
        %v858 = vunpack.c.h.b16 %v511
        %v859 = vunpack.c.l.b16 %v512
        %v860 = vunpack.c.h.b16 %v512
        %v861 = vunpack.c.l.b16 %v513
        %v862 = vunpack.c.h.b16 %v513
        %v863 = vunpack.c.l.b16 %v514
        %v864 = vunpack.c.h.b16 %v514
        %v865 = vunpack.c.l.b16 %v515
        %v866 = vunpack.c.h.b16 %v515
        %v867 = vunpack.c.l.b16 %v516
        %v868 = vunpack.c.h.b16 %v516
        %v869 = vunpack.c.l.b16 %v517
        %v870 = vunpack.c.h.b16 %v517
        %v871 = vunpack.c.l.b16 %v518
        %v872 = vunpack.c.h.b16 %v518
        %v873 = vunpack.c.l.b16 %v519
        %v874 = vunpack.c.h.b16 %v519
        %v875 = vunpack.c.l.b16 %v520
        %v876 = vunpack.c.h.b16 %v520
        %v877 = vunpack.c.l.b16 %v521
        %v878 = vunpack.c.h.b16 %v521
        %v879 = vunpack.c.l.b16 %v522
        %v880 = vunpack.c.h.b16 %v522
        %v881 = vunpack.c.l.b16 %v523
        %v882 = vunpack.c.h.b16 %v523
        %v883 = vunpack.c.l.b16 %v524
        %v884 = vunpack.c.h.b16 %v524
        %v885 = vunpack.c.l.b16 %v525
        %v886 = vunpack.c.h.b16 %v525
        %v887 = vunpack.c.l.b16 %v526
        %v888 = vunpack.c.h.b16 %v526
        %v889 = vunpack.c.l.b16 %v527
        %v890 = vunpack.c.h.b16 %v527
        %v891 = vunpack.c.l.b16 %v528
        %v892 = vunpack.c.h.b16 %v528
        %v893 = vunpack.c.l.b16 %v529
        %v894 = vunpack.c.h.b16 %v529
        %v895 = vunpack.c.l.b16 %v530
        %v896 = vunpack.c.h.b16 %v530
        %v897 = vunpack.c.l.b16 %v531
        %v898 = vunpack.c.h.b16 %v531
        %v899 = vunpack.c.l.b16 %v532
        %v900 = vunpack.c.h.b16 %v532
        %v901 = vunpack.c.l.b16 %v533
        %v902 = vunpack.c.h.b16 %v533
        %v903 = vunpack.c.l.b16 %v534
        %v904 = vunpack.c.h.b16 %v534
        %v905 = vunpack.c.l.b16 %v535
        %v906 = vunpack.c.h.b16 %v535
        %v907 = vunpack.c.l.b16 %v536
        %v908 = vunpack.c.h.b16 %v536
        %v909 = vunpack.c.l.b16 %v537
        %v910 = vunpack.c.h.b16 %v537
        %v911 = vunpack.c.l.b16 %v538
        %v912 = vunpack.c.h.b16 %v538
        %v913 = vunpack.c.l.b16 %v539
        %v914 = vunpack.c.h.b16 %v539
        %v915 = vunpack.c.l.b16 %v540
        %v916 = vunpack.c.h.b16 %v540
        %v917 = vunpack.c.l.b16 %v541
        %v918 = vunpack.c.h.b16 %v541
        %v919 = vunpack.c.l.b16 %v542
        %v920 = vunpack.c.h.b16 %v542
        %v921 = vunpack.c.l.b16 %v543
        %v922 = vunpack.c.h.b16 %v543
        %v923 = vunpack.c.l.b16 %v544
        %v924 = vunpack.c.h.b16 %v544
        %v925 = vunpack.c.l.b16 %v545
        %v926 = vunpack.c.h.b16 %v545
        %v927 = vunpack.c.l.b16 %v546
        %v928 = vunpack.c.h.b16 %v546
        %v929 = vunpack.c.l.b16 %v547
        %v930 = vunpack.c.h.b16 %v547
        %v931 = vunpack.c.l.b16 %v548
        %v932 = vunpack.c.h.b16 %v548
        %v933 = vpack.c.b16 %v693, %v677
        %v934 = vpack.c.b16 %v694, %v678
        %v935 = vpack.c.b16 %v695, %v679
        %v936 = vpack.c.b16 %v696, %v680
        %v937 = vpack.c.b16 %v697, %v681
        %v938 = vpack.c.b16 %v698, %v682
        %v939 = vpack.c.b16 %v699, %v683
        %v940 = vpack.c.b16 %v700, %v684
        %v941 = vpack.c.b16 %v701, %v685
        %v942 = vpack.c.b16 %v702, %v686
        %v943 = vpack.c.b16 %v703, %v687
        %v944 = vpack.c.b16 %v704, %v688
        %v945 = vpack.c.b16 %v705, %v689
        %v946 = vpack.c.b16 %v706, %v690
        %v947 = vpack.c.b16 %v707, %v691
        %v948 = vpack.c.b16 %v708, %v692
        %v949 = vpack.c.b16 %v725, %v709
        %v950 = vpack.c.b16 %v726, %v710
        %v951 = vpack.c.b16 %v727, %v711
        %v952 = vpack.c.b16 %v728, %v712
        %v953 = vpack.c.b16 %v729, %v713
        %v954 = vpack.c.b16 %v730, %v714
        %v955 = vpack.c.b16 %v731, %v715
        %v956 = vpack.c.b16 %v732, %v716
        %v957 = vpack.c.b16 %v733, %v717
        %v958 = vpack.c.b16 %v734, %v718
        %v959 = vpack.c.b16 %v735, %v719
        %v960 = vpack.c.b16 %v736, %v720
        %v961 = vpack.c.b16 %v737, %v721
        %v962 = vpack.c.b16 %v738, %v722
        %v963 = vpack.c.b16 %v739, %v723
        %v964 = vpack.c.b16 %v740, %v724
        %v965 = vpack.c.b16 %v757, %v741
        %v966 = vpack.c.b16 %v758, %v742
        %v967 = vpack.c.b16 %v759, %v743
        %v968 = vpack.c.b16 %v760, %v744
        %v969 = vpack.c.b16 %v761, %v745
        %v970 = vpack.c.b16 %v762, %v746
        %v971 = vpack.c.b16 %v763, %v747
        %v972 = vpack.c.b16 %v764, %v748
        %v973 = vpack.c.b16 %v765, %v749
        %v974 = vpack.c.b16 %v766, %v750
        %v975 = vpack.c.b16 %v767, %v751
        %v976 = vpack.c.b16 %v768, %v752
        %v977 = vpack.c.b16 %v769, %v753
        %v978 = vpack.c.b16 %v770, %v754
        %v979 = vpack.c.b16 %v771, %v755
        %v980 = vpack.c.b16 %v772, %v756
        %v981 = vpack.c.b16 %v789, %v773
        %v982 = vpack.c.b16 %v790, %v774
        %v983 = vpack.c.b16 %v791, %v775
        %v984 = vpack.c.b16 %v792, %v776
        %v985 = vpack.c.b16 %v793, %v777
        %v986 = vpack.c.b16 %v794, %v778
        %v987 = vpack.c.b16 %v795, %v779
        %v988 = vpack.c.b16 %v796, %v780
        %v989 = vpack.c.b16 %v797, %v781
        %v990 = vpack.c.b16 %v798, %v782
        %v991 = vpack.c.b16 %v799, %v783
        %v992 = vpack.c.b16 %v800, %v784
        %v993 = vpack.c.b16 %v801, %v785
        %v994 = vpack.c.b16 %v802, %v786
        %v995 = vpack.c.b16 %v803, %v787
        %v996 = vpack.c.b16 %v804, %v788
        %v997 = vpack.c.b16 %v821, %v805
        %v998 = vpack.c.b16 %v822, %v806
        %v999 = vpack.c.b16 %v823, %v807
        %v1000 = vpack.c.b16 %v824, %v808
        %v1001 = vpack.c.b16 %v825, %v809
        %v1002 = vpack.c.b16 %v826, %v810
        %v1003 = vpack.c.b16 %v827, %v811
        %v1004 = vpack.c.b16 %v828, %v812
        %v1005 = vpack.c.b16 %v829, %v813
        %v1006 = vpack.c.b16 %v830, %v814
        %v1007 = vpack.c.b16 %v831, %v815
        %v1008 = vpack.c.b16 %v832, %v816
        %v1009 = vpack.c.b16 %v833, %v817
        %v1010 = vpack.c.b16 %v834, %v818
        %v1011 = vpack.c.b16 %v835, %v819
        %v1012 = vpack.c.b16 %v836, %v820
        %v1013 = vpack.c.b16 %v853, %v837
        %v1014 = vpack.c.b16 %v854, %v838
        %v1015 = vpack.c.b16 %v855, %v839
        %v1016 = vpack.c.b16 %v856, %v840
        %v1017 = vpack.c.b16 %v857, %v841
        %v1018 = vpack.c.b16 %v858, %v842
        %v1019 = vpack.c.b16 %v859, %v843
        %v1020 = vpack.c.b16 %v860, %v844
        %v1021 = vpack.c.b16 %v861, %v845
        %v1022 = vpack.c.b16 %v862, %v846
        %v1023 = vpack.c.b16 %v863, %v847
        %v1024 = vpack.c.b16 %v864, %v848
        %v1025 = vpack.c.b16 %v865, %v849
        %v1026 = vpack.c.b16 %v866, %v850
        %v1027 = vpack.c.b16 %v867, %v851
        %v1028 = vpack.c.b16 %v868, %v852
        %v1029 = vpack.c.b16 %v885, %v869
        %v1030 = vpack.c.b16 %v886, %v870
        %v1031 = vpack.c.b16 %v887, %v871
        %v1032 = vpack.c.b16 %v888, %v872
        %v1033 = vpack.c.b16 %v889, %v873
        %v1034 = vpack.c.b16 %v890, %v874
        %v1035 = vpack.c.b16 %v891, %v875
        %v1036 = vpack.c.b16 %v892, %v876
        %v1037 = vpack.c.b16 %v893, %v877
        %v1038 = vpack.c.b16 %v894, %v878
        %v1039 = vpack.c.b16 %v895, %v879
        %v1040 = vpack.c.b16 %v896, %v880
        %v1041 = vpack.c.b16 %v897, %v881
        %v1042 = vpack.c.b16 %v898, %v882
        %v1043 = vpack.c.b16 %v899, %v883
        %v1044 = vpack.c.b16 %v900, %v884
        %v1045 = vpack.c.b16 %v917, %v901
        %v1046 = vpack.c.b16 %v918, %v902
        %v1047 = vpack.c.b16 %v919, %v903
        %v1048 = vpack.c.b16 %v920, %v904
        %v1049 = vpack.c.b16 %v921, %v905
        %v1050 = vpack.c.b16 %v922, %v906
        %v1051 = vpack.c.b16 %v923, %v907
        %v1052 = vpack.c.b16 %v924, %v908
        %v1053 = vpack.c.b16 %v925, %v909
        %v1054 = vpack.c.b16 %v926, %v910
        %v1055 = vpack.c.b16 %v927, %v911
        %v1056 = vpack.c.b16 %v928, %v912
        %v1057 = vpack.c.b16 %v929, %v913
        %v1058 = vpack.c.b16 %v930, %v914
        %v1059 = vpack.c.b16 %v931, %v915
        %v1060 = vpack.c.b16 %v932, %v916
        %1189 = vmatpush.bf16.msra.mxu0 %v1045
        %1190 = vmatpush.bf16.msra.mxu0 %v1029
        %1191 = vmatpush.bf16.msra.mxu0 %v1013
        %1192 = vmatpush.bf16.msra.mxu0 %v997
        %1193 = vmatpush.bf16.msra.mxu0 %v981
        %1194 = vmatpush.bf16.msra.mxu0 %v965
        %1195 = vmatpush.bf16.msra.mxu0 %v949
        %1196 = vmatpush.bf16.msra.mxu0 %v933
        %1197 = vmatmul.bf16.gmra.mxu0 %v420
        %v1198 = vpop.f32.mrf.mxu0
        %v1199 = vadd.f32 0.0, %v1198
        %v1200 = vpop.f32.mrf.mxu0
        %1201 = vdwg.mxu0
        %1202 = vmatpush.bf16.msra.mxu0 %v1046
        %1203 = vmatpush.bf16.msra.mxu0 %v1030
        %1204 = vmatpush.bf16.msra.mxu0 %v1014
        %1205 = vmatpush.bf16.msra.mxu0 %v998
        %1206 = vmatpush.bf16.msra.mxu0 %v982
        %1207 = vmatpush.bf16.msra.mxu0 %v966
        %1208 = vmatpush.bf16.msra.mxu0 %v950
        %1209 = vmatpush.bf16.msra.mxu0 %v934
        %1210 = vmatmul.bf16.gmra.mxu0 %v420
        %v1211 = vpop.f32.mrf.mxu0
        %v1212 = vadd.f32 0.0, %v1211
        %v1213 = vpop.f32.mrf.mxu0
        %1214 = vdwg.mxu0
        %1215 = vmatpush.bf16.msra.mxu0 %v1047
        %1216 = vmatpush.bf16.msra.mxu0 %v1031
        %1217 = vmatpush.bf16.msra.mxu0 %v1015
        %1218 = vmatpush.bf16.msra.mxu0 %v999
        %1219 = vmatpush.bf16.msra.mxu0 %v983
        %1220 = vmatpush.bf16.msra.mxu0 %v967
        %1221 = vmatpush.bf16.msra.mxu0 %v951
        %1222 = vmatpush.bf16.msra.mxu0 %v935
        %1223 = vmatmul.bf16.gmra.mxu0 %v420
        %v1224 = vpop.f32.mrf.mxu0
        %v1225 = vadd.f32 0.0, %v1224
        %v1226 = vpop.f32.mrf.mxu0
        %1227 = vdwg.mxu0
        %1228 = vmatpush.bf16.msra.mxu0 %v1048
        %1229 = vmatpush.bf16.msra.mxu0 %v1032
        %1230 = vmatpush.bf16.msra.mxu0 %v1016
        %1231 = vmatpush.bf16.msra.mxu0 %v1000
        %1232 = vmatpush.bf16.msra.mxu0 %v984
        %1233 = vmatpush.bf16.msra.mxu0 %v968
        %1234 = vmatpush.bf16.msra.mxu0 %v952
        %1235 = vmatpush.bf16.msra.mxu0 %v936
        %1236 = vmatmul.bf16.gmra.mxu0 %v420
        %v1237 = vpop.f32.mrf.mxu0
        %v1238 = vadd.f32 0.0, %v1237
        %v1239 = vpop.f32.mrf.mxu0
        %1240 = vdwg.mxu0
        %1241 = vmatpush.bf16.msra.mxu0 %v1049
        %1242 = vmatpush.bf16.msra.mxu0 %v1033
        %1243 = vmatpush.bf16.msra.mxu0 %v1017
        %1244 = vmatpush.bf16.msra.mxu0 %v1001
        %1245 = vmatpush.bf16.msra.mxu0 %v985
        %1246 = vmatpush.bf16.msra.mxu0 %v969
        %1247 = vmatpush.bf16.msra.mxu0 %v953
        %1248 = vmatpush.bf16.msra.mxu0 %v937
        %1249 = vmatmul.bf16.gmra.mxu0 %v420
        %v1250 = vpop.f32.mrf.mxu0
        %v1251 = vadd.f32 0.0, %v1250
        %v1252 = vpop.f32.mrf.mxu0
        %1253 = vdwg.mxu0
        %1254 = vmatpush.bf16.msra.mxu0 %v1050
        %1255 = vmatpush.bf16.msra.mxu0 %v1034
        %1256 = vmatpush.bf16.msra.mxu0 %v1018
        %1257 = vmatpush.bf16.msra.mxu0 %v1002
        %1258 = vmatpush.bf16.msra.mxu0 %v986
        %1259 = vmatpush.bf16.msra.mxu0 %v970
        %1260 = vmatpush.bf16.msra.mxu0 %v954
        %1261 = vmatpush.bf16.msra.mxu0 %v938
        %1262 = vmatmul.bf16.gmra.mxu0 %v420
        %v1263 = vpop.f32.mrf.mxu0
        %v1264 = vadd.f32 0.0, %v1263
        %v1265 = vpop.f32.mrf.mxu0
        %1266 = vdwg.mxu0
        %1267 = vmatpush.bf16.msra.mxu0 %v1051
        %1268 = vmatpush.bf16.msra.mxu0 %v1035
        %1269 = vmatpush.bf16.msra.mxu0 %v1019
        %1270 = vmatpush.bf16.msra.mxu0 %v1003
        %1271 = vmatpush.bf16.msra.mxu0 %v987
        %1272 = vmatpush.bf16.msra.mxu0 %v971
        %1273 = vmatpush.bf16.msra.mxu0 %v955
        %1274 = vmatpush.bf16.msra.mxu0 %v939
        %1275 = vmatmul.bf16.gmra.mxu0 %v420
        %v1276 = vpop.f32.mrf.mxu0
        %v1277 = vadd.f32 0.0, %v1276
        %v1278 = vpop.f32.mrf.mxu0
        %1279 = vdwg.mxu0
        %1280 = vmatpush.bf16.msra.mxu0 %v1052
        %1281 = vmatpush.bf16.msra.mxu0 %v1036
        %1282 = vmatpush.bf16.msra.mxu0 %v1020
        %1283 = vmatpush.bf16.msra.mxu0 %v1004
        %1284 = vmatpush.bf16.msra.mxu0 %v988
        %1285 = vmatpush.bf16.msra.mxu0 %v972
        %1286 = vmatpush.bf16.msra.mxu0 %v956
        %1287 = vmatpush.bf16.msra.mxu0 %v940
        %1288 = vmatmul.bf16.gmra.mxu0 %v420
        %v1289 = vpop.f32.mrf.mxu0
        %v1290 = vadd.f32 0.0, %v1289
        %v1291 = vpop.f32.mrf.mxu0
        %1292 = vdwg.mxu0
        %1293 = vmatpush.bf16.msra.mxu0 %v1053
        %1294 = vmatpush.bf16.msra.mxu0 %v1037
        %1295 = vmatpush.bf16.msra.mxu0 %v1021
        %1296 = vmatpush.bf16.msra.mxu0 %v1005
        %1297 = vmatpush.bf16.msra.mxu0 %v989
        %1298 = vmatpush.bf16.msra.mxu0 %v973
        %1299 = vmatpush.bf16.msra.mxu0 %v957
        %1300 = vmatpush.bf16.msra.mxu0 %v941
        %1301 = vmatmul.bf16.gmra.mxu0 %v420
        %v1302 = vpop.f32.mrf.mxu0
        %v1303 = vadd.f32 0.0, %v1302
        %v1304 = vpop.f32.mrf.mxu0
        %1305 = vdwg.mxu0
        %1306 = vmatpush.bf16.msra.mxu0 %v1054
        %1307 = vmatpush.bf16.msra.mxu0 %v1038
        %1308 = vmatpush.bf16.msra.mxu0 %v1022
        %1309 = vmatpush.bf16.msra.mxu0 %v1006
        %1310 = vmatpush.bf16.msra.mxu0 %v990
        %1311 = vmatpush.bf16.msra.mxu0 %v974
        %1312 = vmatpush.bf16.msra.mxu0 %v958
        %1313 = vmatpush.bf16.msra.mxu0 %v942
        %1314 = vmatmul.bf16.gmra.mxu0 %v420
        %v1315 = vpop.f32.mrf.mxu0
        %v1316 = vadd.f32 0.0, %v1315
        %v1317 = vpop.f32.mrf.mxu0
        %1318 = vdwg.mxu0
        %1319 = vmatpush.bf16.msra.mxu0 %v1055
        %1320 = vmatpush.bf16.msra.mxu0 %v1039
        %1321 = vmatpush.bf16.msra.mxu0 %v1023
        %1322 = vmatpush.bf16.msra.mxu0 %v1007
        %1323 = vmatpush.bf16.msra.mxu0 %v991
        %1324 = vmatpush.bf16.msra.mxu0 %v975
        %1325 = vmatpush.bf16.msra.mxu0 %v959
        %1326 = vmatpush.bf16.msra.mxu0 %v943
        %1327 = vmatmul.bf16.gmra.mxu0 %v420
        %v1328 = vpop.f32.mrf.mxu0
        %v1329 = vadd.f32 0.0, %v1328
        %v1330 = vpop.f32.mrf.mxu0
        %1331 = vdwg.mxu0
        %1332 = vmatpush.bf16.msra.mxu0 %v1056
        %1333 = vmatpush.bf16.msra.mxu0 %v1040
        %1334 = vmatpush.bf16.msra.mxu0 %v1024
        %1335 = vmatpush.bf16.msra.mxu0 %v1008
        %1336 = vmatpush.bf16.msra.mxu0 %v992
        %1337 = vmatpush.bf16.msra.mxu0 %v976
        %1338 = vmatpush.bf16.msra.mxu0 %v960
        %1339 = vmatpush.bf16.msra.mxu0 %v944
        %1340 = vmatmul.bf16.gmra.mxu0 %v420
        %v1341 = vpop.f32.mrf.mxu0
        %v1342 = vadd.f32 0.0, %v1341
        %v1343 = vpop.f32.mrf.mxu0
        %1344 = vdwg.mxu0
        %1345 = vmatpush.bf16.msra.mxu0 %v1057
        %1346 = vmatpush.bf16.msra.mxu0 %v1041
        %1347 = vmatpush.bf16.msra.mxu0 %v1025
        %1348 = vmatpush.bf16.msra.mxu0 %v1009
        %1349 = vmatpush.bf16.msra.mxu0 %v993
        %1350 = vmatpush.bf16.msra.mxu0 %v977
        %1351 = vmatpush.bf16.msra.mxu0 %v961
        %1352 = vmatpush.bf16.msra.mxu0 %v945
        %1353 = vmatmul.bf16.gmra.mxu0 %v420
        %v1354 = vpop.f32.mrf.mxu0
        %v1355 = vadd.f32 0.0, %v1354
        %v1356 = vpop.f32.mrf.mxu0
        %1357 = vdwg.mxu0
        %1358 = vmatpush.bf16.msra.mxu0 %v1058
        %1359 = vmatpush.bf16.msra.mxu0 %v1042
        %1360 = vmatpush.bf16.msra.mxu0 %v1026
        %1361 = vmatpush.bf16.msra.mxu0 %v1010
        %1362 = vmatpush.bf16.msra.mxu0 %v994
        %1363 = vmatpush.bf16.msra.mxu0 %v978
        %1364 = vmatpush.bf16.msra.mxu0 %v962
        %1365 = vmatpush.bf16.msra.mxu0 %v946
        %1366 = vmatmul.bf16.gmra.mxu0 %v420
        %v1367 = vpop.f32.mrf.mxu0
        %v1368 = vadd.f32 0.0, %v1367
        %v1369 = vpop.f32.mrf.mxu0
        %1370 = vdwg.mxu0
        %1371 = vmatpush.bf16.msra.mxu0 %v1059
        %1372 = vmatpush.bf16.msra.mxu0 %v1043
        %1373 = vmatpush.bf16.msra.mxu0 %v1027
        %1374 = vmatpush.bf16.msra.mxu0 %v1011
        %1375 = vmatpush.bf16.msra.mxu0 %v995
        %1376 = vmatpush.bf16.msra.mxu0 %v979
        %1377 = vmatpush.bf16.msra.mxu0 %v963
        %1378 = vmatpush.bf16.msra.mxu0 %v947
        %1379 = vmatmul.bf16.gmra.mxu0 %v420
        %v1380 = vpop.f32.mrf.mxu0
        %v1381 = vadd.f32 0.0, %v1380
        %v1382 = vpop.f32.mrf.mxu0
        %1383 = vdwg.mxu0
        %1384 = vmatpush.bf16.msra.mxu0 %v1060
        %1385 = vmatpush.bf16.msra.mxu0 %v1044
        %1386 = vmatpush.bf16.msra.mxu0 %v1028
        %1387 = vmatpush.bf16.msra.mxu0 %v1012
        %1388 = vmatpush.bf16.msra.mxu0 %v996
        %1389 = vmatpush.bf16.msra.mxu0 %v980
        %1390 = vmatpush.bf16.msra.mxu0 %v964
        %1391 = vmatpush.bf16.msra.mxu0 %v948
        %1392 = vmatmul.bf16.gmra.mxu0 %v420
        %v1393 = vpop.f32.mrf.mxu0
        %v1394 = vadd.f32 0.0, %v1393
        %v1395 = vpop.f32.mrf.mxu0
        %1396 = vdwg.mxu0
        %v1397 = vtanh.pop %v1199
        %v1398 = vtanh.pop %v1212
        %v1399 = vtanh.pop %v1225
        %v1400 = vtanh.pop %v1238
        %v1401 = vtanh.pop %v1251
        %v1402 = vtanh.pop %v1264
        %v1403 = vtanh.pop %v1277
        %v1404 = vtanh.pop %v1290
        %v1405 = vtanh.pop %v1303
        %v1406 = vtanh.pop %v1316
        %v1407 = vtanh.pop %v1329
        %v1408 = vtanh.pop %v1342
        %v1409 = vtanh.pop %v1355
        %v1410 = vtanh.pop %v1368
        %v1411 = vtanh.pop %v1381
        %v1412 = vtanh.pop %v1394
        %1413 = vst [vmem:[%s418] sm:$0xff] %v1397
        %1414 = vst [vmem:[%s418 + $0x8] sm:$0xff] %v1398
        %1415 = vst [vmem:[%s418 + $0x10] sm:$0xff] %v1399
        %1416 = vst [vmem:[%s418 + $0x18] sm:$0xff] %v1400
        %1417 = vst [vmem:[%s418 + $0x20] sm:$0xff] %v1401
        %1418 = vst [vmem:[%s418 + $0x28] sm:$0xff] %v1402
        %1419 = vst [vmem:[%s418 + $0x30] sm:$0xff] %v1403
        %1420 = vst [vmem:[%s418 + $0x38] sm:$0xff] %v1404
        %1421 = vst [vmem:[%s418 + $0x40] sm:$0xff] %v1405
        %1422 = vst [vmem:[%s418 + $0x48] sm:$0xff] %v1406
        %1423 = vst [vmem:[%s418 + $0x50] sm:$0xff] %v1407
        %1424 = vst [vmem:[%s418 + $0x58] sm:$0xff] %v1408
        %1425 = vst [vmem:[%s418 + $0x60] sm:$0xff] %v1409
        %1426 = vst [vmem:[%s418 + $0x68] sm:$0xff] %v1410
        %1427 = vst [vmem:[%s418 + $0x70] sm:$0xff] %v1411
        %1428 = vst [vmem:[%s418 + $0x78] sm:$0xff] %v1412
        %s1429 = smul.u32 16, %s13
        %p1430 = scmp.lt.s32.totalorder %s1429, 63
        %s1431 = scalar_select %p1430, %s1429, 63
        %s1432 = smul.addr %s1431, 8
        %s1433 = scalar_lea.vmem %s2, %s1432
        // Predicated region
        $region52: #{generator_forward.17} parent=46 // pred_check
          %p1434 = pneg %p78
        $region53: #{generator_forward.17} parent=46 // pred_check_branch
          %1436 = sbr.rel (%p1434) target = $region55
        $region54: #{generator_forward.17} parent=46 // pred_region
          %s1437 = smul.u32 16, %s13
        $region55: #{generator_forward.17} parent=46 // pred_fallthru
          _
      $region47: #{generator_forward.17} parent=5 // pred_fallthru
        _
      %p1438 = scmp.le.s32.totalorder 2, %s8
      // Predicated region
      $region56: #{generator_forward.17} parent=5 // pred_check
        %p1439 = pneg %p1438
      $region57: #{generator_forward.17} parent=5 // pred_check_branch
        %1441 = sbr.rel (%p1439) target = $region59
      $region58: #{generator_forward.17} parent=5 // pred_region
        %s1442 = ssub.s32 %s8, 2
        // Predicated region
        $region60: #{generator_forward.17} parent=58 // pred_check
          %p1443 = pneg %p84
        $region61: #{generator_forward.17} parent=58 // pred_check_branch
          %1445 = sbr.rel (%p1443) target = $region63
        $region62: #{generator_forward.17} parent=58 // pred_region
          %s1446 = smul.u32 16, %s14
          %p1447 = scmp.lt.s32.totalorder %s1446, 63
          %s1448 = scalar_select %p1447, %s1446, 63
          %s1449 = smul.addr %s1448, 8
          %s1450 = scalar_lea.vmem %s2, %s1449
        $region63: #{generator_forward.17} parent=58 // pred_fallthru
          _
      $region59: #{generator_forward.17} parent=5 // pred_fallthru
        _
    $region6: #{generator_forward.17} parent=1 // loop_footer
      %s12 = sadd.s32 1, %s8
    $region7: #{generator_forward.17} parent=1 // loop_footer_branch
      %7 = sbr.rel target = $region3
    $region8: #{generator_forward.17} parent=1 // loop_exit
      _

</llo_original>
